<compile_context>
chip_gen: v5e
topology: v5e:2x2
jax: 0.10.0
libtpu: 0.0.40
codegen_flags: <defaults>
</compile_context>

<pallas_src>
import functools
import math

import numpy as np
import jax
import jax.numpy as jnp
from jax.experimental import pallas as pl
from jax.experimental.pallas import tpu as pltpu


# ------------------------------ small helpers ------------------------------

def _round_up(x, m):
    return ((x + m - 1) // m) * m


def _choose_bm(M, K, N, budget_bytes=12 * 1024 * 1024):
    """Row-tile size: multiple of 8, <=512, double-buffered working set well
    under the smallest default scoped-VMEM limit (v5e: 16 MiB)."""
    Mp = _round_up(M, 8)
    bm = min(Mp, 512)
    while bm > 8 and 4 * (2 * bm * K + 2 * K * N + 2 * bm * N) > budget_bytes:
        bm = max(8, _round_up(bm // 2, 8))
    return bm


def _pad_rows(x, mp):
    m = x.shape[0]
    if m == mp:
        return x
    return jnp.pad(x, ((0, mp - m), (0, 0)))


def _layer_norm(y, g, b, eps):
    mu = jnp.mean(y, axis=-1, keepdims=True)
    var = jnp.mean(jnp.square(y - mu), axis=-1, keepdims=True)
    return (y - mu) * jax.lax.rsqrt(var + eps) * g + b


# --------------------------- stem matmul kernel ---------------------------

def _matmul_bias_kernel(a_ref, w_ref, b_ref, o_ref, *, apply_relu, cast_bf16):
    a = a_ref[...]
    w = w_ref[...]
    if cast_bf16:
        a = a.astype(jnp.bfloat16)
        w = w.astype(jnp.bfloat16)
    acc = jnp.dot(a, w, preferred_element_type=jnp.float32) + b_ref[...]
    if apply_relu:
        acc = jnp.maximum(acc, 0.0)
    o_ref[...] = acc.astype(o_ref.dtype)


def linear_padded(x, w, b, *, relu=False, bf16=False):
    """x:(M,K) @ w:(K,Np) + b:(1,Np).  w/b are pre-padded so Np % 128 == 0
    (lane-dense stores); no runtime column padding/slicing."""
    M, K = x.shape
    Np = w.shape[1]
    bm = _choose_bm(M, K, Np)
    Mp = _round_up(M, bm)
    xp = _pad_rows(x, Mp)
    out = pl.pallas_call(
        functools.partial(_matmul_bias_kernel, apply_relu=relu, cast_bf16=bf16),
        out_shape=jax.ShapeDtypeStruct((Mp, Np), jnp.float32),
        grid=(Mp // bm,),
        in_specs=[
            pl.BlockSpec((bm, K), lambda i: (i, 0)),
            pl.BlockSpec((K, Np), lambda i: (0, 0)),
            pl.BlockSpec((1, Np), lambda i: (0, 0)),
        ],
        out_specs=pl.BlockSpec((bm, Np), lambda i: (i, 0)),
        compiler_params=pltpu.CompilerParams(dimension_semantics=("parallel",)),
    )(xp, w, b)
    return out if Mp == M else out[:M]


def conv2d_nhwc(x, wmat, b, *, ksize, stride, pad, relu=False, bf16=False):
    """Conv in NHWC via im2col (glue) + Pallas matmul (hot path).
    wmat is pre-laid-out as (kh*kw*Cin, Cout_padded)."""
    # TODO(synk): replace im2col with a Pallas conv (shifted-index_map accumulation)
    # or lax.conv for the real ResNet34 backbone at 224x224.
    N, H, W, C = x.shape
    kh = kw = ksize
    xp = jnp.pad(x, ((0, 0), (pad, pad), (pad, pad), (0, 0)))
    Ho = (H + 2 * pad - kh) // stride + 1
    Wo = (W + 2 * pad - kw) // stride + 1
    cols = []
    for i in range(kh):
        for j in range(kw):
            cols.append(xp[:, i:i + stride * (Ho - 1) + 1:stride,
                              j:j + stride * (Wo - 1) + 1:stride, :])
    patches = jnp.stack(cols, axis=3)                       # (N, Ho, Wo, kh*kw, C)
    a = patches.reshape(N * Ho * Wo, kh * kw * C)
    y = linear_padded(a, wmat, b, relu=relu, bf16=bf16)     # (N*Ho*Wo, Cout_pad)
    return y.reshape(N, Ho, Wo, -1)


# ---------------- fused reduce-conv + decoder stack + fc kernel ----------------

def _decoder_head_kernel(feat_ref, pe_ref, rw_ref, rb_ref,
                         wqkv_ref, bqkv_ref, wo_ref, bo_ref,
                         ln1g_ref, ln1b_ref, w1_ref, b1_ref, w2_ref, b2_ref,
                         ln2g_ref, ln2b_ref, fcw_ref, fcb_ref,
                         o_ref, x_state, *, n_heads, eps, scale):
    l = pl.program_id(1)

    @pl.when(l == 0)
    def _init():
        # 1x1 reduce conv (applied after global avg pool - exactly commutes)
        # + position encoding, done once per batch element.
        x_state[...] = (jnp.dot(feat_ref[0], rw_ref[...],
                                preferred_element_type=jnp.float32)
                        + rb_ref[...] + pe_ref[...])

    x = x_state[...]                                        # (T, D) fp32
    T, D = x.shape
    dk = D // n_heads

    # fused Q|K|V projection
    qkv = jnp.dot(x, wqkv_ref[0], preferred_element_type=jnp.float32) + bqkv_ref[0]
    q = qkv[:, :D]
    k = qkv[:, D:2 * D]
    v = qkv[:, 2 * D:3 * D]

    # per-head attention with static in-kernel slices (no dk-lane padding,
    # no HBM transposes); everything stays resident in vregs/VMEM.
    head_outs = []
    for h in range(n_heads):
        lo, hi = h * dk, (h + 1) * dk
        qh = q[:, lo:hi]
        kh = k[:, lo:hi]
        vh = v[:, lo:hi]
        s = jax.lax.dot_general(qh, kh, (((1,), (1,)), ((), ())),
                                preferred_element_type=jnp.float32) * scale
        s = s - jnp.max(s, axis=-1, keepdims=True)
        p = jnp.exp(s)
        p = p * pl.reciprocal(jnp.sum(p, axis=-1, keepdims=True), approx=False)
        head_outs.append(jnp.dot(p, vh, preferred_element_type=jnp.float32))
    attn = jnp.concatenate(head_outs, axis=-1)              # (T, D)

    # output projection + residual + LayerNorm
    y = jnp.dot(attn, wo_ref[0], preferred_element_type=jnp.float32) + bo_ref[0] + x
    y = _layer_norm(y, ln1g_ref[0], ln1b_ref[0], eps)

    # FFN (w1 -> ReLU -> w2) + residual + LayerNorm
    hdn = jnp.dot(y, w1_ref[0], preferred_element_type=jnp.float32) + b1_ref[0]
    hdn = jnp.maximum(hdn, 0.0)
    z = jnp.dot(hdn, w2_ref[0], preferred_element_type=jnp.float32) + b2_ref[0] + y
    z = _layer_norm(z, ln2g_ref[0], ln2b_ref[0], eps)

    x_state[...] = z

    @pl.when(l == pl.num_programs(1) - 1)
    def _final():
        # classifier head; lane-dense (128-padded) output store.
        o_ref[0] = (jnp.dot(z, fcw_ref[...], preferred_element_type=jnp.float32)
                    + fcb_ref[...]).astype(o_ref.dtype)


def decoder_head(feat, prep, *, n_heads, eps=1e-5):
    """feat: (B, T, Fp) pooled, channel-padded features.
    Returns padded logits (B, T, Ncls_pad)."""
    B, T, Fp = feat.shape
    D = prep['red_w'].shape[1]
    L = prep['w_qkv'].shape[0]
    inner = prep['w1'].shape[2]
    ncp = prep['fc_w'].shape[1]
    scale = 1.0 / math.sqrt(D // n_heads)

    kernel = functools.partial(_decoder_head_kernel,
                               n_heads=n_heads, eps=eps, scale=scale)
    in_specs = [
        pl.BlockSpec((1, T, Fp), lambda b, l: (b, 0, 0)),      # pooled features
        pl.BlockSpec((T, D), lambda b, l: (0, 0)),             # position encoding
        pl.BlockSpec((Fp, D), lambda b, l: (0, 0)),            # reduce_conv weight
        pl.BlockSpec((1, D), lambda b, l: (0, 0)),             # reduce_conv bias
        pl.BlockSpec((1, D, 3 * D), lambda b, l: (l, 0, 0)),   # w_qkv (stacked)
        pl.BlockSpec((1, 1, 3 * D), lambda b, l: (l, 0, 0)),   # b_qkv
        pl.BlockSpec((1, D, D), lambda b, l: (l, 0, 0)),       # wo
        pl.BlockSpec((1, 1, D), lambda b, l: (l, 0, 0)),       # bo
        pl.BlockSpec((1, 1, D), lambda b, l: (l, 0, 0)),       # ln1_g
        pl.BlockSpec((1, 1, D), lambda b, l: (l, 0, 0)),       # ln1_b
        pl.BlockSpec((1, D, inner), lambda b, l: (l, 0, 0)),   # w1
        pl.BlockSpec((1, 1, inner), lambda b, l: (l, 0, 0)),   # b1
        pl.BlockSpec((1, inner, D), lambda b, l: (l, 0, 0)),   # w2
        pl.BlockSpec((1, 1, D), lambda b, l: (l, 0, 0)),       # b2
        pl.BlockSpec((1, 1, D), lambda b, l: (l, 0, 0)),       # ln2_g
        pl.BlockSpec((1, 1, D), lambda b, l: (l, 0, 0)),       # ln2_b
        pl.BlockSpec((D, ncp), lambda b, l: (0, 0)),           # fc weight
        pl.BlockSpec((1, ncp), lambda b, l: (0, 0)),           # fc bias
    ]
    return pl.pallas_call(
        kernel,
        out_shape=jax.ShapeDtypeStruct((B, T, ncp), jnp.float32),
        grid=(B, L),
        in_specs=in_specs,
        out_specs=pl.BlockSpec((1, T, ncp), lambda b, l: (b, 0, 0)),
        scratch_shapes=[pltpu.VMEM((T, D), jnp.float32)],
        compiler_params=pltpu.CompilerParams(
            dimension_semantics=("parallel", "arbitrary")),
    )(feat, prep['pe'], prep['red_w'], prep['red_b'],
      prep['w_qkv'], prep['b_qkv'], prep['wo'], prep['bo'],
      prep['ln1_g'], prep['ln1_b'], prep['w1'], prep['b1'],
      prep['w2'], prep['b2'], prep['ln2_g'], prep['ln2_b'],
      prep['fc_w'], prep['fc_b'])


# ------------------------------- parameters -------------------------------

def sinusoid_position_encoding(n_pos, dim):
    pos = np.arange(n_pos)[:, None].astype(np.float64)
    j = np.arange(dim)[None, :]
    angle = pos / np.power(10000.0, 2.0 * (j // 2) / dim)
    pe = np.zeros((n_pos, dim), dtype=np.float32)
    pe[:, 0::2] = np.sin(angle[:, 0::2])
    pe[:, 1::2] = np.cos(angle[:, 1::2])
    return jnp.asarray(pe)


def init_params(key, *, in_ch, stem_ch, feat_ch, embed, n_layers, n_classes,
                inner_factor=2):
    keys = jax.random.split(key, 8 * n_layers + 16)
    ki = iter(keys)

    def nrm(shape, scale=0.02):
        return jax.random.normal(next(ki), shape, jnp.float32) * scale

    params = {
        'conv1_w': nrm((stem_ch, in_ch, 3, 3), 0.1),
        'conv1_b': jnp.zeros((stem_ch,), jnp.float32),
        'conv2_w': nrm((feat_ch, stem_ch, 3, 3), 0.1),
        'conv2_b': jnp.zeros((feat_ch,), jnp.float32),
        'reduce_w': nrm((embed, feat_ch, 1, 1), 0.1),
        'reduce_b': jnp.zeros((embed,), jnp.float32),
        # fc: weight ~ N(0, 0.02), bias = 0   (matches init_weights)
        'fc_w': nrm((embed, n_classes), 0.02),
        'fc_b': jnp.zeros((n_classes,), jnp.float32),
        'layers': [],
    }
    inner = embed * inner_factor
    for _ in range(n_layers):
        lp = {
            'w_qkv': nrm((embed, 3 * embed)),
            'b_qkv': jnp.zeros((3 * embed,), jnp.float32),
            'wo': nrm((embed, embed)), 'bo': jnp.zeros((embed,), jnp.float32),
            'ln1_g': jnp.ones((embed,), jnp.float32), 'ln1_b': jnp.zeros((embed,), jnp.float32),
            'w1': nrm((embed, inner)), 'b1': jnp.zeros((inner,), jnp.float32),
            'w2': nrm((inner, embed)), 'b2': jnp.zeros((embed,), jnp.float32),
            'ln2_g': jnp.ones((embed,), jnp.float32), 'ln2_b': jnp.zeros((embed,), jnp.float32),
        }
        params['layers'].append(lp)
    return params


def _conv_wmat(w, cin_pad, cout_pad):
    """(Cout, Cin, kh, kw) PyTorch layout -> (kh*kw*cin_pad, cout_pad) im2col
    matmul layout, patch order (i, j, c), zero-padded once."""
    cout, cin, kh, kw = w.shape
    w = jnp.pad(w, ((0, cout_pad - cout), (0, cin_pad - cin), (0, 0), (0, 0)))
    return jnp.transpose(w, (2, 3, 1, 0)).reshape(kh * kw * cin_pad, cout_pad)


def prepare_params(raw, *, sequence_size):
    """One-time (outside jit): pad weights/biases to 128-lane layouts, build
    im2col weight matrices, stack per-layer decoder weights along a leading
    layer axis, precompute the position encoding."""
    stem_ch = raw['conv1_w'].shape[0]
    feat_ch = raw['conv2_w'].shape[0]
    in_ch = raw['conv1_w'].shape[1]
    embed = raw['reduce_w'].shape[0]
    n_classes = raw['fc_w'].shape[1]

    stem_p = _round_up(stem_ch, 128)
    feat_p = _round_up(feat_ch, 128)
    ncls_p = _round_up(n_classes, 128)

    def pad_row(v, n):
        return jnp.pad(v, (0, n - v.shape[0])).reshape(1, n)

    prep = {
        # conv stem (NHWC, channel dims kept 128-padded between layers)
        'conv1_wmat': _conv_wmat(raw['conv1_w'], in_ch, stem_p),
        'conv1_b': pad_row(raw['conv1_b'], stem_p),
        'conv2_wmat': _conv_wmat(raw['conv2_w'], stem_p, feat_p),
        'conv2_b': pad_row(raw['conv2_b'], feat_p),
        # 1x1 reduce conv, consumed inside the fused decoder kernel
        'red_w': jnp.pad(raw['reduce_w'].reshape(embed, feat_ch).T,
                         ((0, feat_p - feat_ch), (0, 0))),
        'red_b': raw['reduce_b'].reshape(1, embed),
        # classifier head, consumed inside the fused decoder kernel
        'fc_w': jnp.pad(raw['fc_w'], ((0, 0), (0, ncls_p - n_classes))),
        'fc_b': pad_row(raw['fc_b'], ncls_p),
        # position encoding
        'pe': sinusoid_position_encoding(sequence_size, embed),
    }

    def stack(name, as_row=False):
        a = jnp.stack([lp[name] for lp in raw['layers']])
        if as_row:
            a = a[:, None, :]
        return a

    prep.update({
        'w_qkv': stack('w_qkv'), 'b_qkv': stack('b_qkv', True),
        'wo': stack('wo'), 'bo': stack('bo', True),
        'ln1_g': stack('ln1_g', True), 'ln1_b': stack('ln1_b', True),
        'w1': stack('w1'), 'b1': stack('b1', True),
        'w2': stack('w2'), 'b2': stack('b2', True),
        'ln2_g': stack('ln2_g', True), 'ln2_b': stack('ln2_b', True),
    })
    return prep


# --------------------------------- forward ---------------------------------

@functools.partial(jax.jit, static_argnames=("sequence_size", "n_heads", "n_classes"))
def video_transformer_forward(rgb_clip, prep, *, sequence_size, n_heads, n_classes):
    B, T, C, H, W = rgb_clip.shape
    assert T == sequence_size
    # squash_dims(rgb_clip, (0, 1)); one NCHW->NHWC layout change, stem stays NHWC
    x = rgb_clip.reshape(B * T, C, H, W).transpose(0, 2, 3, 1)

    # TODO(synk): make_encoder/ResNet34 source not provided; backbone stands in as a 2-conv stem.
    x = conv2d_nhwc(x, prep['conv1_wmat'], prep['conv1_b'],
                    ksize=3, stride=2, pad=1, relu=True, bf16=True)
    x = conv2d_nhwc(x, prep['conv2_wmat'], prep['conv2_b'],
                    ksize=3, stride=2, pad=1, relu=True, bf16=True)

    # F.avg_pool2d over full spatial extent, applied BEFORE the 1x1 reduce conv
    # (the 1x1 conv is linear, so it commutes exactly with spatial averaging).
    feat = jnp.mean(x, axis=(1, 2))                          # (B*T, feat_ch padded to 128)
    feat = feat.reshape(B, sequence_size, -1)

    # 1x1 reduce conv + PositionEncoding + all decoder blocks + fc: ONE kernel.
    logits = decoder_head(feat, prep, n_heads=n_heads)       # (B, T, ncls_pad)
    return logits[..., :n_classes]


# ----------------------------------- main -----------------------------------

if __name__ == "__main__":
    key = jax.random.PRNGKey(0)
    B, T, C, H, W = 2, 8, 3, 16, 16          # batch=2, sequence_size=8, RGB 16x16 frames
    embed, n_heads, n_layers, n_classes = 32, 8, 2, 16

    k_in, k_par = jax.random.split(key)
    rgb_clip = jax.random.normal(k_in, (B, T, C, H, W), jnp.float32)
    raw = init_params(k_par, in_ch=C, stem_ch=16, feat_ch=64, embed=embed,
                      n_layers=n_layers, n_classes=n_classes)
    prep = prepare_params(raw, sequence_size=T)   # one-time pad/stack, outside jit

    out = video_transformer_forward(rgb_clip, prep, sequence_size=T,
                                    n_heads=n_heads, n_classes=n_classes)
    out = jax.block_until_ready(out)
    assert out.shape == (B, T, n_classes)
    assert bool(jnp.all(jnp.isfinite(out)))
    print("KERNEL_OK")
</pallas_src>

<mosaic_0001>
module attributes {stable_mosaic.version = 11 : i64} {
  func.func @_matmul_bias_kernel(%arg0: i32, %arg1: memref<512x27xf32, #tpu.memory_space<vmem>>, %arg2: memref<27x128xf32, #tpu.memory_space<vmem>>, %arg3: memref<1x128xf32, #tpu.memory_space<vmem>>, %arg4: memref<512x128xf32, #tpu.memory_space<vmem>>) attributes {dimension_semantics = [#tpu.dimension_semantics<parallel>], iteration_bounds = array<i64: 2>, scalar_prefetch = 0 : i64, scratch_operands = 0 : i64, tpu.core_type = #tpu.core_type<tc>, window_params = [{transform_indices = @transform_0, window_bounds = array<i64: 512, 27>}, {pipeline_mode = #tpu.pipeline_mode<synchronous>, transform_indices = @transform_1, window_bounds = array<i64: 27, 128>}, {pipeline_mode = #tpu.pipeline_mode<synchronous>, transform_indices = @transform_2, window_bounds = array<i64: 1, 128>}, {transform_indices = @transform_3, window_bounds = array<i64: 512, 128>}]} {
    %c0 = arith.constant 0 : index
    %c0_0 = arith.constant 0 : index
    %0 = vector.load %arg1[%c0, %c0_0] : memref<512x27xf32, #tpu.memory_space<vmem>>, vector<512x27xf32>
    %c0_1 = arith.constant 0 : index
    %c0_2 = arith.constant 0 : index
    %1 = vector.load %arg2[%c0_1, %c0_2] : memref<27x128xf32, #tpu.memory_space<vmem>>, vector<27x128xf32>
    %2 = arith.truncf %0 : vector<512x27xf32> to vector<512x27xbf16>
    %3 = arith.truncf %1 : vector<27x128xf32> to vector<27x128xbf16>
    %cst = arith.constant dense<0.000000e+00> : vector<512x128xf32>
    %4 = tpu.matmul %2, %3, %cst {dimension_numbers = #tpu.dot_dimension_numbers<[1], [0], [0], [1], [0, 0, 1, 1], [], []>} : vector<512x27xbf16>, vector<27x128xbf16>, vector<512x128xf32> -> vector<512x128xf32>
    %c0_3 = arith.constant 0 : index
    %c0_4 = arith.constant 0 : index
    %5 = vector.load %arg3[%c0_3, %c0_4] : memref<1x128xf32, #tpu.memory_space<vmem>>, vector<1x128xf32>
    %6 = vector.broadcast %5 : vector<1x128xf32> to vector<512x128xf32>
    %7 = arith.addf %4, %6 : vector<512x128xf32>
    %cst_5 = arith.constant 0.000000e+00 : f32
    %8 = vector.broadcast %cst_5 : f32 to vector<512x128xf32>
    %9 = arith.maximumf %7, %8 : vector<512x128xf32>
    %c0_6 = arith.constant 0 : index
    %c0_7 = arith.constant 0 : index
    %10 = vector.load %arg4[%c0_6, %c0_7] : memref<512x128xf32, #tpu.memory_space<vmem>>, vector<512x128xf32>
    tpu.vector_store %arg4[%c0_6, %c0_7], %9 {strides = array<i32>} : memref<512x128xf32, #tpu.memory_space<vmem>>, vector<512x128xf32>,
    return
  }
  func.func @transform_0(%arg0: i32) -> (i32, i32) {
    %c0_i32 = arith.constant 0 : i32
    %c0_i32_0 = arith.constant 0 : i32
    return %arg0, %c0_i32 : i32, i32
  }
  func.func @transform_1(%arg0: i32) -> (i32, i32) {
    %c0_i32 = arith.constant 0 : i32
    %c0_i32_0 = arith.constant 0 : i32
    %c0_i32_1 = arith.constant 0 : i32
    return %c0_i32, %c0_i32_0 : i32, i32
  }
  func.func @transform_2(%arg0: i32) -> (i32, i32) {
    %c0_i32 = arith.constant 0 : i32
    %c0_i32_0 = arith.constant 0 : i32
    %c0_i32_1 = arith.constant 0 : i32
    return %c0_i32, %c0_i32_0 : i32, i32
  }
  func.func @transform_3(%arg0: i32) -> (i32, i32) {
    %c0_i32 = arith.constant 0 : i32
    %c0_i32_0 = arith.constant 0 : i32
    return %arg0, %c0_i32 : i32, i32
  }
}

module attributes {stable_mosaic.version = 11 : i64} {
  func.func @_matmul_bias_kernel(%arg0: i32, %arg1: memref<256x1152xf32, #tpu.memory_space<vmem>>, %arg2: memref<1152x128xf32, #tpu.memory_space<vmem>>, %arg3: memref<1x128xf32, #tpu.memory_space<vmem>>, %arg4: memref<256x128xf32, #tpu.memory_space<vmem>>) attributes {dimension_semantics = [#tpu.dimension_semantics<parallel>], iteration_bounds = array<i64: 1>, scalar_prefetch = 0 : i64, scratch_operands = 0 : i64, tpu.core_type = #tpu.core_type<tc>, window_params = [{transform_indices = @transform_0, window_bounds = array<i64: 256, 1152>}, {pipeline_mode = #tpu.pipeline_mode<synchronous>, transform_indices = @transform_1, window_bounds = array<i64: 1152, 128>}, {pipeline_mode = #tpu.pipeline_mode<synchronous>, transform_indices = @transform_2, window_bounds = array<i64: 1, 128>}, {transform_indices = @transform_3, window_bounds = array<i64: 256, 128>}]} {
    %c0 = arith.constant 0 : index
    %c0_0 = arith.constant 0 : index
    %0 = vector.load %arg1[%c0, %c0_0] : memref<256x1152xf32, #tpu.memory_space<vmem>>, vector<256x1152xf32>
    %c0_1 = arith.constant 0 : index
    %c0_2 = arith.constant 0 : index
    %1 = vector.load %arg2[%c0_1, %c0_2] : memref<1152x128xf32, #tpu.memory_space<vmem>>, vector<1152x128xf32>
    %2 = arith.truncf %0 : vector<256x1152xf32> to vector<256x1152xbf16>
    %3 = arith.truncf %1 : vector<1152x128xf32> to vector<1152x128xbf16>
    %cst = arith.constant dense<0.000000e+00> : vector<256x128xf32>
    %4 = tpu.matmul %2, %3, %cst {dimension_numbers = #tpu.dot_dimension_numbers<[1], [0], [0], [1], [0, 0, 1, 1], [], []>} : vector<256x1152xbf16>, vector<1152x128xbf16>, vector<256x128xf32> -> vector<256x128xf32>
    %c0_3 = arith.constant 0 : index
    %c0_4 = arith.constant 0 : index
    %5 = vector.load %arg3[%c0_3, %c0_4] : memref<1x128xf32, #tpu.memory_space<vmem>>, vector<1x128xf32>
    %6 = vector.broadcast %5 : vector<1x128xf32> to vector<256x128xf32>
    %7 = arith.addf %4, %6 : vector<256x128xf32>
    %cst_5 = arith.constant 0.000000e+00 : f32
    %8 = vector.broadcast %cst_5 : f32 to vector<256x128xf32>
    %9 = arith.maximumf %7, %8 : vector<256x128xf32>
    %c0_6 = arith.constant 0 : index
    %c0_7 = arith.constant 0 : index
    %10 = vector.load %arg4[%c0_6, %c0_7] : memref<256x128xf32, #tpu.memory_space<vmem>>, vector<256x128xf32>
    tpu.vector_store %arg4[%c0_6, %c0_7], %9 {strides = array<i32>} : memref<256x128xf32, #tpu.memory_space<vmem>>, vector<256x128xf32>,
    return
  }
  func.func @transform_0(%arg0: i32) -> (i32, i32) {
    %c0_i32 = arith.constant 0 : i32
    %c0_i32_0 = arith.constant 0 : i32
    return %arg0, %c0_i32 : i32, i32
  }
  func.func @transform_1(%arg0: i32) -> (i32, i32) {
    %c0_i32 = arith.constant 0 : i32
    %c0_i32_0 = arith.constant 0 : i32
    %c0_i32_1 = arith.constant 0 : i32
    return %c0_i32, %c0_i32_0 : i32, i32
  }
  func.func @transform_2(%arg0: i32) -> (i32, i32) {
    %c0_i32 = arith.constant 0 : i32
    %c0_i32_0 = arith.constant 0 : i32
    %c0_i32_1 = arith.constant 0 : i32
    return %c0_i32, %c0_i32_0 : i32, i32
  }
  func.func @transform_3(%arg0: i32) -> (i32, i32) {
    %c0_i32 = arith.constant 0 : i32
    %c0_i32_0 = arith.constant 0 : i32
    return %arg0, %c0_i32 : i32, i32
  }
}

module attributes {stable_mosaic.version = 11 : i64} {
  func.func @_decoder_head_kernel(%arg0: i32, %arg1: i32, %arg2: memref<1x8x128xf32, #tpu.memory_space<vmem>>, %arg3: memref<8x32xf32, #tpu.memory_space<vmem>>, %arg4: memref<128x32xf32, #tpu.memory_space<vmem>>, %arg5: memref<1x32xf32, #tpu.memory_space<vmem>>, %arg6: memref<1x32x96xf32, #tpu.memory_space<vmem>>, %arg7: memref<1x1x96xf32, #tpu.memory_space<vmem>>, %arg8: memref<1x32x32xf32, #tpu.memory_space<vmem>>, %arg9: memref<1x1x32xf32, #tpu.memory_space<vmem>>, %arg10: memref<1x1x32xf32, #tpu.memory_space<vmem>>, %arg11: memref<1x1x32xf32, #tpu.memory_space<vmem>>, %arg12: memref<1x32x64xf32, #tpu.memory_space<vmem>>, %arg13: memref<1x1x64xf32, #tpu.memory_space<vmem>>, %arg14: memref<1x64x32xf32, #tpu.memory_space<vmem>>, %arg15: memref<1x1x32xf32, #tpu.memory_space<vmem>>, %arg16: memref<1x1x32xf32, #tpu.memory_space<vmem>>, %arg17: memref<1x1x32xf32, #tpu.memory_space<vmem>>, %arg18: memref<32x128xf32, #tpu.memory_space<vmem>>, %arg19: memref<1x128xf32, #tpu.memory_space<vmem>>, %arg20: memref<1x8x128xf32, #tpu.memory_space<vmem>>, %arg21: memref<8x32xf32, #tpu.memory_space<vmem>>) attributes {dimension_semantics = [#tpu.dimension_semantics<parallel>, #tpu.dimension_semantics<arbitrary>], iteration_bounds = array<i64: 2, 2>, scalar_prefetch = 0 : i64, scratch_operands = 1 : i64, tpu.core_type = #tpu.core_type<tc>, window_params = [{transform_indices = @transform_0, window_bounds = array<i64: 1, 8, 128>}, {pipeline_mode = #tpu.pipeline_mode<synchronous>, transform_indices = @transform_1, window_bounds = array<i64: 8, 32>}, {pipeline_mode = #tpu.pipeline_mode<synchronous>, transform_indices = @transform_2, window_bounds = array<i64: 128, 32>}, {pipeline_mode = #tpu.pipeline_mode<synchronous>, transform_indices = @transform_3, window_bounds = array<i64: 1, 32>}, {transform_indices = @transform_4, window_bounds = array<i64: 1, 32, 96>}, {transform_indices = @transform_5, window_bounds = array<i64: 1, 1, 96>}, {transform_indices = @transform_6, window_bounds = array<i64: 1, 32, 32>}, {transform_indices = @transform_7, window_bounds = array<i64: 1, 1, 32>}, {transform_indices = @transform_8, window_bounds = array<i64: 1, 1, 32>}, {transform_indices = @transform_9, window_bounds = array<i64: 1, 1, 32>}, {transform_indices = @transform_10, window_bounds = array<i64: 1, 32, 64>}, {transform_indices = @transform_11, window_bounds = array<i64: 1, 1, 64>}, {transform_indices = @transform_12, window_bounds = array<i64: 1, 64, 32>}, {transform_indices = @transform_13, window_bounds = array<i64: 1, 1, 32>}, {transform_indices = @transform_14, window_bounds = array<i64: 1, 1, 32>}, {transform_indices = @transform_15, window_bounds = array<i64: 1, 1, 32>}, {pipeline_mode = #tpu.pipeline_mode<synchronous>, transform_indices = @transform_16, window_bounds = array<i64: 32, 128>}, {pipeline_mode = #tpu.pipeline_mode<synchronous>, transform_indices = @transform_17, window_bounds = array<i64: 1, 128>}, {transform_indices = @transform_18, window_bounds = array<i64: 1, 8, 128>}]} {
    %c0_i32 = arith.constant 0 : i32
    %0 = arith.cmpi eq, %arg1, %c0_i32 : i32
    %1 = arith.extui %0 : i1 to i32
    %c0_i32_0 = arith.constant 0 : i32
    %2 = arith.cmpi ne, %1, %c0_i32_0 : i32
    scf.if %2 {
      %c0_95 = arith.constant 0 : index
      %c0_96 = arith.constant 0 : index
      %c0_97 = arith.constant 0 : index
      %232 = vector.load %arg2[%c0_95, %c0_96, %c0_97] : memref<1x8x128xf32, #tpu.memory_space<vmem>>, vector<1x8x128xf32>
      %233 = vector.shape_cast %232 : vector<1x8x128xf32> to vector<8x128xf32>
      %c0_98 = arith.constant 0 : index
      %c0_99 = arith.constant 0 : index
      %234 = vector.load %arg4[%c0_98, %c0_99] : memref<128x32xf32, #tpu.memory_space<vmem>>, vector<128x32xf32>
      %cst_100 = arith.constant dense<0.000000e+00> : vector<8x32xf32>
      %235 = tpu.matmul %233, %234, %cst_100 {dimension_numbers = #tpu.dot_dimension_numbers<[1], [0], [0], [1], [0, 0, 1, 1], [], []>} : vector<8x128xf32>, vector<128x32xf32>, vector<8x32xf32> -> vector<8x32xf32>
      %c0_101 = arith.constant 0 : index
      %c0_102 = arith.constant 0 : index
      %236 = vector.load %arg5[%c0_101, %c0_102] : memref<1x32xf32, #tpu.memory_space<vmem>>, vector<1x32xf32>
      %237 = vector.broadcast %236 : vector<1x32xf32> to vector<8x32xf32>
      %238 = arith.addf %235, %237 : vector<8x32xf32>
      %c0_103 = arith.constant 0 : index
      %c0_104 = arith.constant 0 : index
      %239 = vector.load %arg3[%c0_103, %c0_104] : memref<8x32xf32, #tpu.memory_space<vmem>>, vector<8x32xf32>
      %240 = arith.addf %238, %239 : vector<8x32xf32>
      %c0_105 = arith.constant 0 : index
      %c0_106 = arith.constant 0 : index
      %241 = vector.load %arg21[%c0_105, %c0_106] : memref<8x32xf32, #tpu.memory_space<vmem>>, vector<8x32xf32>
      tpu.vector_store %arg21[%c0_105, %c0_106], %240 {strides = array<i32>} : memref<8x32xf32, #tpu.memory_space<vmem>>, vector<8x32xf32>,
    } else {
    }
    %c0 = arith.constant 0 : index
    %c0_1 = arith.constant 0 : index
    %3 = vector.load %arg21[%c0, %c0_1] : memref<8x32xf32, #tpu.memory_space<vmem>>, vector<8x32xf32>
    %c0_2 = arith.constant 0 : index
    %c0_3 = arith.constant 0 : index
    %c0_4 = arith.constant 0 : index
    %4 = vector.load %arg6[%c0_2, %c0_3, %c0_4] : memref<1x32x96xf32, #tpu.memory_space<vmem>>, vector<1x32x96xf32>
    %5 = vector.shape_cast %4 : vector<1x32x96xf32> to vector<32x96xf32>
    %cst = arith.constant dense<0.000000e+00> : vector<8x96xf32>
    %6 = tpu.matmul %3, %5, %cst {dimension_numbers = #tpu.dot_dimension_numbers<[1], [0], [0], [1], [0, 0, 1, 1], [], []>} : vector<8x32xf32>, vector<32x96xf32>, vector<8x96xf32> -> vector<8x96xf32>
    %c0_5 = arith.constant 0 : index
    %c0_6 = arith.constant 0 : index
    %c0_7 = arith.constant 0 : index
    %7 = vector.load %arg7[%c0_5, %c0_6, %c0_7] : memref<1x1x96xf32, #tpu.memory_space<vmem>>, vector<1x1x96xf32>
    %8 = vector.shape_cast %7 : vector<1x1x96xf32> to vector<1x96xf32>
    %9 = vector.broadcast %8 : vector<1x96xf32> to vector<8x96xf32>
    %10 = arith.addf %6, %9 : vector<8x96xf32>
    %11 = vector.extract_strided_slice %10 {offsets = [0, 0], sizes = [8, 32], strides = [1, 1]} : vector<8x96xf32> to vector<8x32xf32>
    %12 = vector.extract_strided_slice %10 {offsets = [0, 32], sizes = [8, 32], strides = [1, 1]} : vector<8x96xf32> to vector<8x32xf32>
    %13 = vector.extract_strided_slice %10 {offsets = [0, 64], sizes = [8, 32], strides = [1, 1]} : vector<8x96xf32> to vector<8x32xf32>
    %14 = vector.extract_strided_slice %11 {offsets = [0, 0], sizes = [8, 4], strides = [1, 1]} : vector<8x32xf32> to vector<8x4xf32>
    %15 = vector.extract_strided_slice %12 {offsets = [0, 0], sizes = [8, 4], strides = [1, 1]} : vector<8x32xf32> to vector<8x4xf32>
    %16 = vector.extract_strided_slice %13 {offsets = [0, 0], sizes = [8, 4], strides = [1, 1]} : vector<8x32xf32> to vector<8x4xf32>
    %cst_8 = arith.constant dense<0.000000e+00> : vector<8x8xf32>
    %17 = tpu.matmul %14, %15, %cst_8 {dimension_numbers = #tpu.dot_dimension_numbers<[1], [1], [0], [0], [0, 0, 1, 0], [], []>} : vector<8x4xf32>, vector<8x4xf32>, vector<8x8xf32> -> vector<8x8xf32>
    %cst_9 = arith.constant 5.000000e-01 : f32
    %18 = vector.broadcast %cst_9 : f32 to vector<8x8xf32>
    %19 = arith.mulf %17, %18 : vector<8x8xf32>
    %cst_10 = arith.constant dense<0xFF800000> : vector<8xf32>
    %20 = vector.multi_reduction <maximumf>, %19, %cst_10 [1] : vector<8x8xf32> to vector<8xf32>
    %21 = vector.shape_cast %20 : vector<8xf32> to vector<8x1xf32>
    %22 = vector.broadcast %21 : vector<8x1xf32> to vector<8x8xf32>
    %23 = arith.subf %19, %22 : vector<8x8xf32>
    %24 = math.exp %23 : vector<8x8xf32>
    %cst_11 = arith.constant dense<0.000000e+00> : vector<8xf32>
    %25 = vector.multi_reduction <add>, %24, %cst_11 [1] : vector<8x8xf32> to vector<8xf32>
    %26 = vector.shape_cast %25 : vector<8xf32> to vector<8x1xf32>
    %27 = tpu.reciprocal %26 : vector<8x1xf32> -> vector<8x1xf32>
    %28 = vector.broadcast %27 : vector<8x1xf32> to vector<8x8xf32>
    %29 = arith.mulf %24, %28 : vector<8x8xf32>
    %cst_12 = arith.constant dense<0.000000e+00> : vector<8x4xf32>
    %30 = tpu.matmul %29, %16, %cst_12 {dimension_numbers = #tpu.dot_dimension_numbers<[1], [0], [0], [1], [0, 0, 1, 1], [], []>} : vector<8x8xf32>, vector<8x4xf32>, vector<8x4xf32> -> vector<8x4xf32>
    %31 = vector.extract_strided_slice %11 {offsets = [0, 4], sizes = [8, 4], strides = [1, 1]} : vector<8x32xf32> to vector<8x4xf32>
    %32 = vector.extract_strided_slice %12 {offsets = [0, 4], sizes = [8, 4], strides = [1, 1]} : vector<8x32xf32> to vector<8x4xf32>
    %33 = vector.extract_strided_slice %13 {offsets = [0, 4], sizes = [8, 4], strides = [1, 1]} : vector<8x32xf32> to vector<8x4xf32>
    %cst_13 = arith.constant dense<0.000000e+00> : vector<8x8xf32>
    %34 = tpu.matmul %31, %32, %cst_13 {dimension_numbers = #tpu.dot_dimension_numbers<[1], [1], [0], [0], [0, 0, 1, 0], [], []>} : vector<8x4xf32>, vector<8x4xf32>, vector<8x8xf32> -> vector<8x8xf32>
    %cst_14 = arith.constant 5.000000e-01 : f32
    %35 = vector.broadcast %cst_14 : f32 to vector<8x8xf32>
    %36 = arith.mulf %34, %35 : vector<8x8xf32>
    %cst_15 = arith.constant dense<0xFF800000> : vector<8xf32>
    %37 = vector.multi_reduction <maximumf>, %36, %cst_15 [1] : vector<8x8xf32> to vector<8xf32>
    %38 = vector.shape_cast %37 : vector<8xf32> to vector<8x1xf32>
    %39 = vector.broadcast %38 : vector<8x1xf32> to vector<8x8xf32>
    %40 = arith.subf %36, %39 : vector<8x8xf32>
    %41 = math.exp %40 : vector<8x8xf32>
    %cst_16 = arith.constant dense<0.000000e+00> : vector<8xf32>
    %42 = vector.multi_reduction <add>, %41, %cst_16 [1] : vector<8x8xf32> to vector<8xf32>
    %43 = vector.shape_cast %42 : vector<8xf32> to vector<8x1xf32>
    %44 = tpu.reciprocal %43 : vector<8x1xf32> -> vector<8x1xf32>
    %45 = vector.broadcast %44 : vector<8x1xf32> to vector<8x8xf32>
    %46 = arith.mulf %41, %45 : vector<8x8xf32>
    %cst_17 = arith.constant dense<0.000000e+00> : vector<8x4xf32>
    %47 = tpu.matmul %46, %33, %cst_17 {dimension_numbers = #tpu.dot_dimension_numbers<[1], [0], [0], [1], [0, 0, 1, 1], [], []>} : vector<8x8xf32>, vector<8x4xf32>, vector<8x4xf32> -> vector<8x4xf32>
    %48 = vector.extract_strided_slice %11 {offsets = [0, 8], sizes = [8, 4], strides = [1, 1]} : vector<8x32xf32> to vector<8x4xf32>
    %49 = vector.extract_strided_slice %12 {offsets = [0, 8], sizes = [8, 4], strides = [1, 1]} : vector<8x32xf32> to vector<8x4xf32>
    %50 = vector.extract_strided_slice %13 {offsets = [0, 8], sizes = [8, 4], strides = [1, 1]} : vector<8x32xf32> to vector<8x4xf32>
    %cst_18 = arith.constant dense<0.000000e+00> : vector<8x8xf32>
    %51 = tpu.matmul %48, %49, %cst_18 {dimension_numbers = #tpu.dot_dimension_numbers<[1], [1], [0], [0], [0, 0, 1, 0], [], []>} : vector<8x4xf32>, vector<8x4xf32>, vector<8x8xf32> -> vector<8x8xf32>
    %cst_19 = arith.constant 5.000000e-01 : f32
    %52 = vector.broadcast %cst_19 : f32 to vector<8x8xf32>
    %53 = arith.mulf %51, %52 : vector<8x8xf32>
    %cst_20 = arith.constant dense<0xFF800000> : vector<8xf32>
    %54 = vector.multi_reduction <maximumf>, %53, %cst_20 [1] : vector<8x8xf32> to vector<8xf32>
    %55 = vector.shape_cast %54 : vector<8xf32> to vector<8x1xf32>
    %56 = vector.broadcast %55 : vector<8x1xf32> to vector<8x8xf32>
    %57 = arith.subf %53, %56 : vector<8x8xf32>
    %58 = math.exp %57 : vector<8x8xf32>
    %cst_21 = arith.constant dense<0.000000e+00> : vector<8xf32>
    %59 = vector.multi_reduction <add>, %58, %cst_21 [1] : vector<8x8xf32> to vector<8xf32>
    %60 = vector.shape_cast %59 : vector<8xf32> to vector<8x1xf32>
    %61 = tpu.reciprocal %60 : vector<8x1xf32> -> vector<8x1xf32>
    %62 = vector.broadcast %61 : vector<8x1xf32> to vector<8x8xf32>
    %63 = arith.mulf %58, %62 : vector<8x8xf32>
    %cst_22 = arith.constant dense<0.000000e+00> : vector<8x4xf32>
    %64 = tpu.matmul %63, %50, %cst_22 {dimension_numbers = #tpu.dot_dimension_numbers<[1], [0], [0], [1], [0, 0, 1, 1], [], []>} : vector<8x8xf32>, vector<8x4xf32>, vector<8x4xf32> -> vector<8x4xf32>
    %65 = vector.extract_strided_slice %11 {offsets = [0, 12], sizes = [8, 4], strides = [1, 1]} : vector<8x32xf32> to vector<8x4xf32>
    %66 = vector.extract_strided_slice %12 {offsets = [0, 12], sizes = [8, 4], strides = [1, 1]} : vector<8x32xf32> to vector<8x4xf32>
    %67 = vector.extract_strided_slice %13 {offsets = [0, 12], sizes = [8, 4], strides = [1, 1]} : vector<8x32xf32> to vector<8x4xf32>
    %cst_23 = arith.constant dense<0.000000e+00> : vector<8x8xf32>
    %68 = tpu.matmul %65, %66, %cst_23 {dimension_numbers = #tpu.dot_dimension_numbers<[1], [1], [0], [0], [0, 0, 1, 0], [], []>} : vector<8x4xf32>, vector<8x4xf32>, vector<8x8xf32> -> vector<8x8xf32>
    %cst_24 = arith.constant 5.000000e-01 : f32
    %69 = vector.broadcast %cst_24 : f32 to vector<8x8xf32>
    %70 = arith.mulf %68, %69 : vector<8x8xf32>
    %cst_25 = arith.constant dense<0xFF800000> : vector<8xf32>
    %71 = vector.multi_reduction <maximumf>, %70, %cst_25 [1] : vector<8x8xf32> to vector<8xf32>
    %72 = vector.shape_cast %71 : vector<8xf32> to vector<8x1xf32>
    %73 = vector.broadcast %72 : vector<8x1xf32> to vector<8x8xf32>
    %74 = arith.subf %70, %73 : vector<8x8xf32>
    %75 = math.exp %74 : vector<8x8xf32>
    %cst_26 = arith.constant dense<0.000000e+00> : vector<8xf32>
    %76 = vector.multi_reduction <add>, %75, %cst_26 [1] : vector<8x8xf32> to vector<8xf32>
    %77 = vector.shape_cast %76 : vector<8xf32> to vector<8x1xf32>
    %78 = tpu.reciprocal %77 : vector<8x1xf32> -> vector<8x1xf32>
    %79 = vector.broadcast %78 : vector<8x1xf32> to vector<8x8xf32>
    %80 = arith.mulf %75, %79 : vector<8x8xf32>
    %cst_27 = arith.constant dense<0.000000e+00> : vector<8x4xf32>
    %81 = tpu.matmul %80, %67, %cst_27 {dimension_numbers = #tpu.dot_dimension_numbers<[1], [0], [0], [1], [0, 0, 1, 1], [], []>} : vector<8x8xf32>, vector<8x4xf32>, vector<8x4xf32> -> vector<8x4xf32>
    %82 = vector.extract_strided_slice %11 {offsets = [0, 16], sizes = [8, 4], strides = [1, 1]} : vector<8x32xf32> to vector<8x4xf32>
    %83 = vector.extract_strided_slice %12 {offsets = [0, 16], sizes = [8, 4], strides = [1, 1]} : vector<8x32xf32> to vector<8x4xf32>
    %84 = vector.extract_strided_slice %13 {offsets = [0, 16], sizes = [8, 4], strides = [1, 1]} : vector<8x32xf32> to vector<8x4xf32>
    %cst_28 = arith.constant dense<0.000000e+00> : vector<8x8xf32>
    %85 = tpu.matmul %82, %83, %cst_28 {dimension_numbers = #tpu.dot_dimension_numbers<[1], [1], [0], [0], [0, 0, 1, 0], [], []>} : vector<8x4xf32>, vector<8x4xf32>, vector<8x8xf32> -> vector<8x8xf32>
    %cst_29 = arith.constant 5.000000e-01 : f32
    %86 = vector.broadcast %cst_29 : f32 to vector<8x8xf32>
    %87 = arith.mulf %85, %86 : vector<8x8xf32>
    %cst_30 = arith.constant dense<0xFF800000> : vector<8xf32>
    %88 = vector.multi_reduction <maximumf>, %87, %cst_30 [1] : vector<8x8xf32> to vector<8xf32>
    %89 = vector.shape_cast %88 : vector<8xf32> to vector<8x1xf32>
    %90 = vector.broadcast %89 : vector<8x1xf32> to vector<8x8xf32>
    %91 = arith.subf %87, %90 : vector<8x8xf32>
    %92 = math.exp %91 : vector<8x8xf32>
    %cst_31 = arith.constant dense<0.000000e+00> : vector<8xf32>
    %93 = vector.multi_reduction <add>, %92, %cst_31 [1] : vector<8x8xf32> to vector<8xf32>
    %94 = vector.shape_cast %93 : vector<8xf32> to vector<8x1xf32>
    %95 = tpu.reciprocal %94 : vector<8x1xf32> -> vector<8x1xf32>
    %96 = vector.broadcast %95 : vector<8x1xf32> to vector<8x8xf32>
    %97 = arith.mulf %92, %96 : vector<8x8xf32>
    %cst_32 = arith.constant dense<0.000000e+00> : vector<8x4xf32>
    %98 = tpu.matmul %97, %84, %cst_32 {dimension_numbers = #tpu.dot_dimension_numbers<[1], [0], [0], [1], [0, 0, 1, 1], [], []>} : vector<8x8xf32>, vector<8x4xf32>, vector<8x4xf32> -> vector<8x4xf32>
    %99 = vector.extract_strided_slice %11 {offsets = [0, 20], sizes = [8, 4], strides = [1, 1]} : vector<8x32xf32> to vector<8x4xf32>
    %100 = vector.extract_strided_slice %12 {offsets = [0, 20], sizes = [8, 4], strides = [1, 1]} : vector<8x32xf32> to vector<8x4xf32>
    %101 = vector.extract_strided_slice %13 {offsets = [0, 20], sizes = [8, 4], strides = [1, 1]} : vector<8x32xf32> to vector<8x4xf32>
    %cst_33 = arith.constant dense<0.000000e+00> : vector<8x8xf32>
    %102 = tpu.matmul %99, %100, %cst_33 {dimension_numbers = #tpu.dot_dimension_numbers<[1], [1], [0], [0], [0, 0, 1, 0], [], []>} : vector<8x4xf32>, vector<8x4xf32>, vector<8x8xf32> -> vector<8x8xf32>
    %cst_34 = arith.constant 5.000000e-01 : f32
    %103 = vector.broadcast %cst_34 : f32 to vector<8x8xf32>
    %104 = arith.mulf %102, %103 : vector<8x8xf32>
    %cst_35 = arith.constant dense<0xFF800000> : vector<8xf32>
    %105 = vector.multi_reduction <maximumf>, %104, %cst_35 [1] : vector<8x8xf32> to vector<8xf32>
    %106 = vector.shape_cast %105 : vector<8xf32> to vector<8x1xf32>
    %107 = vector.broadcast %106 : vector<8x1xf32> to vector<8x8xf32>
    %108 = arith.subf %104, %107 : vector<8x8xf32>
    %109 = math.exp %108 : vector<8x8xf32>
    %cst_36 = arith.constant dense<0.000000e+00> : vector<8xf32>
    %110 = vector.multi_reduction <add>, %109, %cst_36 [1] : vector<8x8xf32> to vector<8xf32>
    %111 = vector.shape_cast %110 : vector<8xf32> to vector<8x1xf32>
    %112 = tpu.reciprocal %111 : vector<8x1xf32> -> vector<8x1xf32>
    %113 = vector.broadcast %112 : vector<8x1xf32> to vector<8x8xf32>
    %114 = arith.mulf %109, %113 : vector<8x8xf32>
    %cst_37 = arith.constant dense<0.000000e+00> : vector<8x4xf32>
    %115 = tpu.matmul %114, %101, %cst_37 {dimension_numbers = #tpu.dot_dimension_numbers<[1], [0], [0], [1], [0, 0, 1, 1], [], []>} : vector<8x8xf32>, vector<8x4xf32>, vector<8x4xf32> -> vector<8x4xf32>
    %116 = vector.extract_strided_slice %11 {offsets = [0, 24], sizes = [8, 4], strides = [1, 1]} : vector<8x32xf32> to vector<8x4xf32>
    %117 = vector.extract_strided_slice %12 {offsets = [0, 24], sizes = [8, 4], strides = [1, 1]} : vector<8x32xf32> to vector<8x4xf32>
    %118 = vector.extract_strided_slice %13 {offsets = [0, 24], sizes = [8, 4], strides = [1, 1]} : vector<8x32xf32> to vector<8x4xf32>
    %cst_38 = arith.constant dense<0.000000e+00> : vector<8x8xf32>
    %119 = tpu.matmul %116, %117, %cst_38 {dimension_numbers = #tpu.dot_dimension_numbers<[1], [1], [0], [0], [0, 0, 1, 0], [], []>} : vector<8x4xf32>, vector<8x4xf32>, vector<8x8xf32> -> vector<8x8xf32>
    %cst_39 = arith.constant 5.000000e-01 : f32
    %120 = vector.broadcast %cst_39 : f32 to vector<8x8xf32>
    %121 = arith.mulf %119, %120 : vector<8x8xf32>
    %cst_40 = arith.constant dense<0xFF800000> : vector<8xf32>
    %122 = vector.multi_reduction <maximumf>, %121, %cst_40 [1] : vector<8x8xf32> to vector<8xf32>
    %123 = vector.shape_cast %122 : vector<8xf32> to vector<8x1xf32>
    %124 = vector.broadcast %123 : vector<8x1xf32> to vector<8x8xf32>
    %125 = arith.subf %121, %124 : vector<8x8xf32>
    %126 = math.exp %125 : vector<8x8xf32>
    %cst_41 = arith.constant dense<0.000000e+00> : vector<8xf32>
    %127 = vector.multi_reduction <add>, %126, %cst_41 [1] : vector<8x8xf32> to vector<8xf32>
    %128 = vector.shape_cast %127 : vector<8xf32> to vector<8x1xf32>
    %129 = tpu.reciprocal %128 : vector<8x1xf32> -> vector<8x1xf32>
    %130 = vector.broadcast %129 : vector<8x1xf32> to vector<8x8xf32>
    %131 = arith.mulf %126, %130 : vector<8x8xf32>
    %cst_42 = arith.constant dense<0.000000e+00> : vector<8x4xf32>
    %132 = tpu.matmul %131, %118, %cst_42 {dimension_numbers = #tpu.dot_dimension_numbers<[1], [0], [0], [1], [0, 0, 1, 1], [], []>} : vector<8x8xf32>, vector<8x4xf32>, vector<8x4xf32> -> vector<8x4xf32>
    %133 = vector.extract_strided_slice %11 {offsets = [0, 28], sizes = [8, 4], strides = [1, 1]} : vector<8x32xf32> to vector<8x4xf32>
    %134 = vector.extract_strided_slice %12 {offsets = [0, 28], sizes = [8, 4], strides = [1, 1]} : vector<8x32xf32> to vector<8x4xf32>
    %135 = vector.extract_strided_slice %13 {offsets = [0, 28], sizes = [8, 4], strides = [1, 1]} : vector<8x32xf32> to vector<8x4xf32>
    %cst_43 = arith.constant dense<0.000000e+00> : vector<8x8xf32>
    %136 = tpu.matmul %133, %134, %cst_43 {dimension_numbers = #tpu.dot_dimension_numbers<[1], [1], [0], [0], [0, 0, 1, 0], [], []>} : vector<8x4xf32>, vector<8x4xf32>, vector<8x8xf32> -> vector<8x8xf32>
    %cst_44 = arith.constant 5.000000e-01 : f32
    %137 = vector.broadcast %cst_44 : f32 to vector<8x8xf32>
    %138 = arith.mulf %136, %137 : vector<8x8xf32>
    %cst_45 = arith.constant dense<0xFF800000> : vector<8xf32>
    %139 = vector.multi_reduction <maximumf>, %138, %cst_45 [1] : vector<8x8xf32> to vector<8xf32>
    %140 = vector.shape_cast %139 : vector<8xf32> to vector<8x1xf32>
    %141 = vector.broadcast %140 : vector<8x1xf32> to vector<8x8xf32>
    %142 = arith.subf %138, %141 : vector<8x8xf32>
    %143 = math.exp %142 : vector<8x8xf32>
    %cst_46 = arith.constant dense<0.000000e+00> : vector<8xf32>
    %144 = vector.multi_reduction <add>, %143, %cst_46 [1] : vector<8x8xf32> to vector<8xf32>
    %145 = vector.shape_cast %144 : vector<8xf32> to vector<8x1xf32>
    %146 = tpu.reciprocal %145 : vector<8x1xf32> -> vector<8x1xf32>
    %147 = vector.broadcast %146 : vector<8x1xf32> to vector<8x8xf32>
    %148 = arith.mulf %143, %147 : vector<8x8xf32>
    %cst_47 = arith.constant dense<0.000000e+00> : vector<8x4xf32>
    %149 = tpu.matmul %148, %135, %cst_47 {dimension_numbers = #tpu.dot_dimension_numbers<[1], [0], [0], [1], [0, 0, 1, 1], [], []>} : vector<8x8xf32>, vector<8x4xf32>, vector<8x4xf32> -> vector<8x4xf32>
    %150 = tpu.concatenate %30, %47, %64, %81, %98, %115, %132, %149 in 1 : vector<8x4xf32>, vector<8x4xf32>, vector<8x4xf32>, vector<8x4xf32>, vector<8x4xf32>, vector<8x4xf32>, vector<8x4xf32>, vector<8x4xf32> -> vector<8x32xf32>
    %c0_48 = arith.constant 0 : index
    %c0_49 = arith.constant 0 : index
    %c0_50 = arith.constant 0 : index
    %151 = vector.load %arg8[%c0_48, %c0_49, %c0_50] : memref<1x32x32xf32, #tpu.memory_space<vmem>>, vector<1x32x32xf32>
    %152 = vector.shape_cast %151 : vector<1x32x32xf32> to vector<32x32xf32>
    %cst_51 = arith.constant dense<0.000000e+00> : vector<8x32xf32>
    %153 = tpu.matmul %150, %152, %cst_51 {dimension_numbers = #tpu.dot_dimension_numbers<[1], [0], [0], [1], [0, 0, 1, 1], [], []>} : vector<8x32xf32>, vector<32x32xf32>, vector<8x32xf32> -> vector<8x32xf32>
    %c0_52 = arith.constant 0 : index
    %c0_53 = arith.constant 0 : index
    %c0_54 = arith.constant 0 : index
    %154 = vector.load %arg9[%c0_52, %c0_53, %c0_54] : memref<1x1x32xf32, #tpu.memory_space<vmem>>, vector<1x1x32xf32>
    %155 = vector.shape_cast %154 : vector<1x1x32xf32> to vector<1x32xf32>
    %156 = vector.broadcast %155 : vector<1x32xf32> to vector<8x32xf32>
    %157 = arith.addf %153, %156 : vector<8x32xf32>
    %158 = arith.addf %157, %3 : vector<8x32xf32>
    %c0_55 = arith.constant 0 : index
    %c0_56 = arith.constant 0 : index
    %c0_57 = arith.constant 0 : index
    %159 = vector.load %arg10[%c0_55, %c0_56, %c0_57] : memref<1x1x32xf32, #tpu.memory_space<vmem>>, vector<1x1x32xf32>
    %160 = vector.shape_cast %159 : vector<1x1x32xf32> to vector<1x32xf32>
    %c0_58 = arith.constant 0 : index
    %c0_59 = arith.constant 0 : index
    %c0_60 = arith.constant 0 : index
    %161 = vector.load %arg11[%c0_58, %c0_59, %c0_60] : memref<1x1x32xf32, #tpu.memory_space<vmem>>, vector<1x1x32xf32>
    %162 = vector.shape_cast %161 : vector<1x1x32xf32> to vector<1x32xf32>
    %cst_61 = arith.constant dense<0.000000e+00> : vector<8xf32>
    %163 = vector.multi_reduction <add>, %158, %cst_61 [1] : vector<8x32xf32> to vector<8xf32>
    %164 = vector.shape_cast %163 : vector<8xf32> to vector<8x1xf32>
    %cst_62 = arith.constant 3.200000e+01 : f32
    %165 = vector.broadcast %cst_62 : f32 to vector<8x1xf32>
    %166 = arith.divf %164, %165 : vector<8x1xf32>
    %167 = vector.broadcast %166 : vector<8x1xf32> to vector<8x32xf32>
    %168 = arith.subf %158, %167 : vector<8x32xf32>
    %169 = arith.mulf %168, %168 : vector<8x32xf32>
    %cst_63 = arith.constant dense<0.000000e+00> : vector<8xf32>
    %170 = vector.multi_reduction <add>, %169, %cst_63 [1] : vector<8x32xf32> to vector<8xf32>
    %171 = vector.shape_cast %170 : vector<8xf32> to vector<8x1xf32>
    %cst_64 = arith.constant 3.200000e+01 : f32
    %172 = vector.broadcast %cst_64 : f32 to vector<8x1xf32>
    %173 = arith.divf %171, %172 : vector<8x1xf32>
    %174 = vector.broadcast %166 : vector<8x1xf32> to vector<8x32xf32>
    %175 = arith.subf %158, %174 : vector<8x32xf32>
    %cst_65 = arith.constant 9.99999974E-6 : f32
    %176 = vector.broadcast %cst_65 : f32 to vector<8x1xf32>
    %177 = arith.addf %173, %176 : vector<8x1xf32>
    %178 = math.rsqrt %177 : vector<8x1xf32>
    %179 = vector.broadcast %178 : vector<8x1xf32> to vector<8x32xf32>
    %180 = arith.mulf %175, %179 : vector<8x32xf32>
    %181 = vector.broadcast %160 : vector<1x32xf32> to vector<8x32xf32>
    %182 = arith.mulf %180, %181 : vector<8x32xf32>
    %183 = vector.broadcast %162 : vector<1x32xf32> to vector<8x32xf32>
    %184 = arith.addf %182, %183 : vector<8x32xf32>
    %c0_66 = arith.constant 0 : index
    %c0_67 = arith.constant 0 : index
    %c0_68 = arith.constant 0 : index
    %185 = vector.load %arg12[%c0_66, %c0_67, %c0_68] : memref<1x32x64xf32, #tpu.memory_space<vmem>>, vector<1x32x64xf32>
    %186 = vector.shape_cast %185 : vector<1x32x64xf32> to vector<32x64xf32>
    %cst_69 = arith.constant dense<0.000000e+00> : vector<8x64xf32>
    %187 = tpu.matmul %184, %186, %cst_69 {dimension_numbers = #tpu.dot_dimension_numbers<[1], [0], [0], [1], [0, 0, 1, 1], [], []>} : vector<8x32xf32>, vector<32x64xf32>, vector<8x64xf32> -> vector<8x64xf32>
    %c0_70 = arith.constant 0 : index
    %c0_71 = arith.constant 0 : index
    %c0_72 = arith.constant 0 : index
    %188 = vector.load %arg13[%c0_70, %c0_71, %c0_72] : memref<1x1x64xf32, #tpu.memory_space<vmem>>, vector<1x1x64xf32>
    %189 = vector.shape_cast %188 : vector<1x1x64xf32> to vector<1x64xf32>
    %190 = vector.broadcast %189 : vector<1x64xf32> to vector<8x64xf32>
    %191 = arith.addf %187, %190 : vector<8x64xf32>
    %cst_73 = arith.constant 0.000000e+00 : f32
    %192 = vector.broadcast %cst_73 : f32 to vector<8x64xf32>
    %193 = arith.maximumf %191, %192 : vector<8x64xf32>
    %c0_74 = arith.constant 0 : index
    %c0_75 = arith.constant 0 : index
    %c0_76 = arith.constant 0 : index
    %194 = vector.load %arg14[%c0_74, %c0_75, %c0_76] : memref<1x64x32xf32, #tpu.memory_space<vmem>>, vector<1x64x32xf32>
    %195 = vector.shape_cast %194 : vector<1x64x32xf32> to vector<64x32xf32>
    %cst_77 = arith.constant dense<0.000000e+00> : vector<8x32xf32>
    %196 = tpu.matmul %193, %195, %cst_77 {dimension_numbers = #tpu.dot_dimension_numbers<[1], [0], [0], [1], [0, 0, 1, 1], [], []>} : vector<8x64xf32>, vector<64x32xf32>, vector<8x32xf32> -> vector<8x32xf32>
    %c0_78 = arith.constant 0 : index
    %c0_79 = arith.constant 0 : index
    %c0_80 = arith.constant 0 : index
    %197 = vector.load %arg15[%c0_78, %c0_79, %c0_80] : memref<1x1x32xf32, #tpu.memory_space<vmem>>, vector<1x1x32xf32>
    %198 = vector.shape_cast %197 : vector<1x1x32xf32> to vector<1x32xf32>
    %199 = vector.broadcast %198 : vector<1x32xf32> to vector<8x32xf32>
    %200 = arith.addf %196, %199 : vector<8x32xf32>
    %201 = arith.addf %200, %184 : vector<8x32xf32>
    %c0_81 = arith.constant 0 : index
    %c0_82 = arith.constant 0 : index
    %c0_83 = arith.constant 0 : index
    %202 = vector.load %arg16[%c0_81, %c0_82, %c0_83] : memref<1x1x32xf32, #tpu.memory_space<vmem>>, vector<1x1x32xf32>
    %203 = vector.shape_cast %202 : vector<1x1x32xf32> to vector<1x32xf32>
    %c0_84 = arith.constant 0 : index
    %c0_85 = arith.constant 0 : index
    %c0_86 = arith.constant 0 : index
    %204 = vector.load %arg17[%c0_84, %c0_85, %c0_86] : memref<1x1x32xf32, #tpu.memory_space<vmem>>, vector<1x1x32xf32>
    %205 = vector.shape_cast %204 : vector<1x1x32xf32> to vector<1x32xf32>
    %cst_87 = arith.constant dense<0.000000e+00> : vector<8xf32>
    %206 = vector.multi_reduction <add>, %201, %cst_87 [1] : vector<8x32xf32> to vector<8xf32>
    %207 = vector.shape_cast %206 : vector<8xf32> to vector<8x1xf32>
    %cst_88 = arith.constant 3.200000e+01 : f32
    %208 = vector.broadcast %cst_88 : f32 to vector<8x1xf32>
    %209 = arith.divf %207, %208 : vector<8x1xf32>
    %210 = vector.broadcast %209 : vector<8x1xf32> to vector<8x32xf32>
    %211 = arith.subf %201, %210 : vector<8x32xf32>
    %212 = arith.mulf %211, %211 : vector<8x32xf32>
    %cst_89 = arith.constant dense<0.000000e+00> : vector<8xf32>
    %213 = vector.multi_reduction <add>, %212, %cst_89 [1] : vector<8x32xf32> to vector<8xf32>
    %214 = vector.shape_cast %213 : vector<8xf32> to vector<8x1xf32>
    %cst_90 = arith.constant 3.200000e+01 : f32
    %215 = vector.broadcast %cst_90 : f32 to vector<8x1xf32>
    %216 = arith.divf %214, %215 : vector<8x1xf32>
    %217 = vector.broadcast %209 : vector<8x1xf32> to vector<8x32xf32>
    %218 = arith.subf %201, %217 : vector<8x32xf32>
    %cst_91 = arith.constant 9.99999974E-6 : f32
    %219 = vector.broadcast %cst_91 : f32 to vector<8x1xf32>
    %220 = arith.addf %216, %219 : vector<8x1xf32>
    %221 = math.rsqrt %220 : vector<8x1xf32>
    %222 = vector.broadcast %221 : vector<8x1xf32> to vector<8x32xf32>
    %223 = arith.mulf %218, %222 : vector<8x32xf32>
    %224 = vector.broadcast %203 : vector<1x32xf32> to vector<8x32xf32>
    %225 = arith.mulf %223, %224 : vector<8x32xf32>
    %226 = vector.broadcast %205 : vector<1x32xf32> to vector<8x32xf32>
    %227 = arith.addf %225, %226 : vector<8x32xf32>
    %c0_92 = arith.constant 0 : index
    %c0_93 = arith.constant 0 : index
    %228 = vector.load %arg21[%c0_92, %c0_93] : memref<8x32xf32, #tpu.memory_space<vmem>>, vector<8x32xf32>
    tpu.vector_store %arg21[%c0_92, %c0_93], %227 {strides = array<i32>} : memref<8x32xf32, #tpu.memory_space<vmem>>, vector<8x32xf32>,
    %c1_i32 = arith.constant 1 : i32
    %229 = arith.cmpi eq, %arg1, %c1_i32 : i32
    %230 = arith.extui %229 : i1 to i32
    %c0_i32_94 = arith.constant 0 : i32
    %231 = arith.cmpi ne, %230, %c0_i32_94 : i32
    scf.if %231 {
      %c0_95 = arith.constant 0 : index
      %c0_96 = arith.constant 0 : index
      %232 = vector.load %arg18[%c0_95, %c0_96] : memref<32x128xf32, #tpu.memory_space<vmem>>, vector<32x128xf32>
      %cst_97 = arith.constant dense<0.000000e+00> : vector<8x128xf32>
      %233 = tpu.matmul %227, %232, %cst_97 {dimension_numbers = #tpu.dot_dimension_numbers<[1], [0], [0], [1], [0, 0, 1, 1], [], []>} : vector<8x32xf32>, vector<32x128xf32>, vector<8x128xf32> -> vector<8x128xf32>
      %c0_98 = arith.constant 0 : index
      %c0_99 = arith.constant 0 : index
      %234 = vector.load %arg19[%c0_98, %c0_99] : memref<1x128xf32, #tpu.memory_space<vmem>>, vector<1x128xf32>
      %235 = vector.broadcast %234 : vector<1x128xf32> to vector<8x128xf32>
      %236 = arith.addf %233, %235 : vector<8x128xf32>
      %c0_100 = arith.constant 0 : index
      %c0_101 = arith.constant 0 : index
      %c0_102 = arith.constant 0 : index
      %237 = vector.load %arg20[%c0_100, %c0_101, %c0_102] : memref<1x8x128xf32, #tpu.memory_space<vmem>>, vector<1x8x128xf32>
      %238 = vector.shape_cast %237 : vector<1x8x128xf32> to vector<8x128xf32>
      %239 = vector.shape_cast %236 : vector<8x128xf32> to vector<1x8x128xf32>
      tpu.vector_store %arg20[%c0_100, %c0_101, %c0_102], %239 {strides = array<i32>} : memref<1x8x128xf32, #tpu.memory_space<vmem>>, vector<1x8x128xf32>,
    } else {
    }
    return
  }
  func.func @transform_0(%arg0: i32, %arg1: i32) -> (i32, i32, i32) {
    %c0_i32 = arith.constant 0 : i32
    %c0_i32_0 = arith.constant 0 : i32
    %c0_i32_1 = arith.constant 0 : i32
    return %arg0, %c0_i32, %c0_i32_0 : i32, i32, i32
  }
  func.func @transform_1(%arg0: i32, %arg1: i32) -> (i32, i32) {
    %c0_i32 = arith.constant 0 : i32
    %c0_i32_0 = arith.constant 0 : i32
    %c0_i32_1 = arith.constant 0 : i32
    return %c0_i32, %c0_i32_0 : i32, i32
  }
  func.func @transform_2(%arg0: i32, %arg1: i32) -> (i32, i32) {
    %c0_i32 = arith.constant 0 : i32
    %c0_i32_0 = arith.constant 0 : i32
    %c0_i32_1 = arith.constant 0 : i32
    return %c0_i32, %c0_i32_0 : i32, i32
  }
  func.func @transform_3(%arg0: i32, %arg1: i32) -> (i32, i32) {
    %c0_i32 = arith.constant 0 : i32
    %c0_i32_0 = arith.constant 0 : i32
    %c0_i32_1 = arith.constant 0 : i32
    return %c0_i32, %c0_i32_0 : i32, i32
  }
  func.func @transform_4(%arg0: i32, %arg1: i32) -> (i32, i32, i32) {
    %c0_i32 = arith.constant 0 : i32
    %c0_i32_0 = arith.constant 0 : i32
    %c0_i32_1 = arith.constant 0 : i32
    return %arg1, %c0_i32, %c0_i32_0 : i32, i32, i32
  }
  func.func @transform_5(%arg0: i32, %arg1: i32) -> (i32, i32, i32) {
    %c0_i32 = arith.constant 0 : i32
    %c0_i32_0 = arith.constant 0 : i32
    %c0_i32_1 = arith.constant 0 : i32
    return %arg1, %c0_i32, %c0_i32_0 : i32, i32, i32
  }
  func.func @transform_6(%arg0: i32, %arg1: i32) -> (i32, i32, i32) {
    %c0_i32 = arith.constant 0 : i32
    %c0_i32_0 = arith.constant 0 : i32
    %c0_i32_1 = arith.constant 0 : i32
    return %arg1, %c0_i32, %c0_i32_0 : i32, i32, i32
  }
  func.func @transform_7(%arg0: i32, %arg1: i32) -> (i32, i32, i32) {
    %c0_i32 = arith.constant 0 : i32
    %c0_i32_0 = arith.constant 0 : i32
    %c0_i32_1 = arith.constant 0 : i32
    return %arg1, %c0_i32, %c0_i32_0 : i32, i32, i32
  }
  func.func @transform_8(%arg0: i32, %arg1: i32) -> (i32, i32, i32) {
    %c0_i32 = arith.constant 0 : i32
    %c0_i32_0 = arith.constant 0 : i32
    %c0_i32_1 = arith.constant 0 : i32
    return %arg1, %c0_i32, %c0_i32_0 : i32, i32, i32
  }
  func.func @transform_9(%arg0: i32, %arg1: i32) -> (i32, i32, i32) {
    %c0_i32 = arith.constant 0 : i32
    %c0_i32_0 = arith.constant 0 : i32
    %c0_i32_1 = arith.constant 0 : i32
    return %arg1, %c0_i32, %c0_i32_0 : i32, i32, i32
  }
  func.func @transform_10(%arg0: i32, %arg1: i32) -> (i32, i32, i32) {
    %c0_i32 = arith.constant 0 : i32
    %c0_i32_0 = arith.constant 0 : i32
    %c0_i32_1 = arith.constant 0 : i32
    return %arg1, %c0_i32, %c0_i32_0 : i32, i32, i32
  }
  func.func @transform_11(%arg0: i32, %arg1: i32) -> (i32, i32, i32) {
    %c0_i32 = arith.constant 0 : i32
    %c0_i32_0 = arith.constant 0 : i32
    %c0_i32_1 = arith.constant 0 : i32
    return %arg1, %c0_i32, %c0_i32_0 : i32, i32, i32
  }
  func.func @transform_12(%arg0: i32, %arg1: i32) -> (i32, i32, i32) {
    %c0_i32 = arith.constant 0 : i32
    %c0_i32_0 = arith.constant 0 : i32
    %c0_i32_1 = arith.constant 0 : i32
    return %arg1, %c0_i32, %c0_i32_0 : i32, i32, i32
  }
  func.func @transform_13(%arg0: i32, %arg1: i32) -> (i32, i32, i32) {
    %c0_i32 = arith.constant 0 : i32
    %c0_i32_0 = arith.constant 0 : i32
    %c0_i32_1 = arith.constant 0 : i32
    return %arg1, %c0_i32, %c0_i32_0 : i32, i32, i32
  }
  func.func @transform_14(%arg0: i32, %arg1: i32) -> (i32, i32, i32) {
    %c0_i32 = arith.constant 0 : i32
    %c0_i32_0 = arith.constant 0 : i32
    %c0_i32_1 = arith.constant 0 : i32
    return %arg1, %c0_i32, %c0_i32_0 : i32, i32, i32
  }
  func.func @transform_15(%arg0: i32, %arg1: i32) -> (i32, i32, i32) {
    %c0_i32 = arith.constant 0 : i32
    %c0_i32_0 = arith.constant 0 : i32
    %c0_i32_1 = arith.constant 0 : i32
    return %arg1, %c0_i32, %c0_i32_0 : i32, i32, i32
  }
  func.func @transform_16(%arg0: i32, %arg1: i32) -> (i32, i32) {
    %c0_i32 = arith.constant 0 : i32
    %c0_i32_0 = arith.constant 0 : i32
    %c0_i32_1 = arith.constant 0 : i32
    return %c0_i32, %c0_i32_0 : i32, i32
  }
  func.func @transform_17(%arg0: i32, %arg1: i32) -> (i32, i32) {
    %c0_i32 = arith.constant 0 : i32
    %c0_i32_0 = arith.constant 0 : i32
    %c0_i32_1 = arith.constant 0 : i32
    return %c0_i32, %c0_i32_0 : i32, i32
  }
  func.func @transform_18(%arg0: i32, %arg1: i32) -> (i32, i32, i32) {
    %c0_i32 = arith.constant 0 : i32
    %c0_i32_0 = arith.constant 0 : i32
    %c0_i32_1 = arith.constant 0 : i32
    return %arg0, %c0_i32, %c0_i32_0 : i32, i32, i32
  }
}

</mosaic_0001>

<llo_original>
// kernel: video_transformer_forward.3
$region0: #{video_transformer_forward.3}
  #allocation0 [shape = 'u32[]', space=smem, size = 0x4, offset = 0x4, fixed_abs, tag = 'smem constant byte address 0x4 - core index']
  #allocation1 [shape = 'u32[72,128]{1,0:T(1,128)}', space=vmem, size = 0x9000, scoped, tag = 'internal scratch']
  %s0 = inlined_call_operand.vmem [shape: f32[1024,27], index: 0, kind: input, shape index: {}]
  %s1 = inlined_call_operand.vmem [shape: f32[27,128], index: 1, kind: input, shape index: {}]
  %s2 = inlined_call_operand.vmem [shape: f32[1,128], index: 2, kind: input, shape index: {}]
  %s3 = inlined_call_operand.vmem [shape: f32[1024,128], index: 3, kind: output, shape index: {}]
  %s4 = sld [smem:[#allocation0]]
  $region45: #{video_transformer_forward.3} parent=0
    _
  %s6 = ssub.s32 1, %s4
  %s7 = scalar_select 0, %s6, %s4
  loop: start=0, step=1, limit=4
  $region2: #{video_transformer_forward.3} parent=0 // loop_pre_header
    _
  $region3: #{video_transformer_forward.3} parent=0 // loop_header
    %s9 = sphi 0, %s13
    %p10 = scmp.ge.s32.totalorder %s9, 4
    %s19 = sphi 0, %s21
    %s22 = sphi 0, %s19
    %s23 = sphi 0, %s22
    %s39 = sphi 0, %s23
    %s43 = sphi 0, %s43
    %s45 = sphi 0, %s43
    %s46 = sphi 0, %s45
    %s60 = sphi 0, %s46
    %s64 = sphi 0, %s64
    %s66 = sphi 0, %s64
    %s67 = sphi 0, %s66
    %s81 = sphi 0, %s67
    %s87 = sphi 0, %s89
    %s90 = sphi 0, %s87
    %s91 = sphi 0, %s90
    %s107 = sphi 0, %s91
  $region4: #{video_transformer_forward.3} parent=0 // loop_header_branch
    %12 = sbr.rel (%p10) target = $region8
  $region5: #{video_transformer_forward.3} parent=0 // loop_body
    %s14 = ssub.s32 %s9, 1
    %s15 = ssub.s32 %s9, 2
    %s16 = sadd.s32 %s9, 1
    %s17 = ssub.s32 %s9, %s16
    %p18 = scmp.eq.s32.totalorder %s17, 0
    %s20 = sadd.s32 %s19, 1
    %s21 = scalar_select %p18, %s19, %s20
    %p24 = pneg %p18
    %p25 = scmp.eq.s32.totalorder %s9, 1
    %p26 = por %p24, %p25
    %p27 = scmp.ne.s32.totalorder %s19, %s22
    %p28 = scmp.eq.s32.totalorder %s9, 0
    %p29 = por %p27, %p28
    %p30 = scmp.ne.s32.totalorder %s19, %s22
    %p31 = scmp.eq.s32.totalorder %s14, 1
    %p32 = por %p30, %p31
    %p33 = scmp.ne.s32.totalorder %s22, %s23
    %p34 = scmp.eq.s32.totalorder %s14, 0
    %p35 = por %p33, %p34
    %p36 = scmp.ne.s32.totalorder %s22, %s23
    %p37 = scmp.eq.s32.totalorder %s15, 1
    %p38 = por %p36, %p37
    %p40 = scmp.ne.s32.totalorder %s23, %s39
    %p41 = scmp.eq.s32.totalorder %s15, 0
    %p42 = por %p40, %p41
    %s44 = sadd.s32 %s43, 1
    %p47 = scmp.eq.s32.totalorder %s9, 1
    %p48 = scmp.ne.s32.totalorder %s43, %s45
    %p49 = scmp.eq.s32.totalorder %s9, 0
    %p50 = por %p48, %p49
    %p51 = scmp.ne.s32.totalorder %s43, %s45
    %p52 = scmp.eq.s32.totalorder %s14, 1
    %p53 = por %p51, %p52
    %p54 = scmp.ne.s32.totalorder %s45, %s46
    %p55 = scmp.eq.s32.totalorder %s14, 0
    %p56 = por %p54, %p55
    %p57 = scmp.ne.s32.totalorder %s45, %s46
    %p58 = scmp.eq.s32.totalorder %s15, 1
    %p59 = por %p57, %p58
    %p61 = scmp.ne.s32.totalorder %s46, %s60
    %p62 = scmp.eq.s32.totalorder %s15, 0
    %p63 = por %p61, %p62
    %s65 = sadd.s32 %s64, 1
    %p68 = scmp.eq.s32.totalorder %s9, 1
    %p69 = scmp.ne.s32.totalorder %s64, %s66
    %p70 = scmp.eq.s32.totalorder %s9, 0
    %p71 = por %p69, %p70
    %p72 = scmp.ne.s32.totalorder %s64, %s66
    %p73 = scmp.eq.s32.totalorder %s14, 1
    %p74 = por %p72, %p73
    %p75 = scmp.ne.s32.totalorder %s66, %s67
    %p76 = scmp.eq.s32.totalorder %s14, 0
    %p77 = por %p75, %p76
    %p78 = scmp.ne.s32.totalorder %s66, %s67
    %p79 = scmp.eq.s32.totalorder %s15, 1
    %p80 = por %p78, %p79
    %p82 = scmp.ne.s32.totalorder %s67, %s81
    %p83 = scmp.eq.s32.totalorder %s15, 0
    %p84 = por %p82, %p83
    %s85 = ssub.s32 %s9, %s16
    %p86 = scmp.eq.s32.totalorder %s85, 0
    %s88 = sadd.s32 %s87, 1
    %s89 = scalar_select %p86, %s87, %s88
    %p92 = pneg %p86
    %p93 = scmp.eq.s32.totalorder %s9, 1
    %p94 = por %p92, %p93
    %p95 = scmp.ne.s32.totalorder %s87, %s90
    %p96 = scmp.eq.s32.totalorder %s9, 0
    %p97 = por %p95, %p96
    %p98 = scmp.ne.s32.totalorder %s87, %s90
    %p99 = scmp.eq.s32.totalorder %s14, 1
    %p100 = por %p98, %p99
    %p101 = scmp.ne.s32.totalorder %s90, %s91
    %p102 = scmp.eq.s32.totalorder %s14, 0
    %p103 = por %p101, %p102
    %p104 = scmp.ne.s32.totalorder %s90, %s91
    %p105 = scmp.eq.s32.totalorder %s15, 1
    %p106 = por %p104, %p105
    %p108 = scmp.ne.s32.totalorder %s91, %s107
    %p109 = scmp.eq.s32.totalorder %s15, 0
    %p110 = por %p108, %p109
    %p111 = scmp.le.s32.totalorder 1, %s9
    %p112 = scmp.lt.s32.totalorder %s9, 3
    %p113 = pnand %p111, %p112
    %p114 = pneg %p113
    // Predicated region
    $region9: #{video_transformer_forward.3} parent=5 // pred_check
      _
    $region10: #{video_transformer_forward.3} parent=5 // pred_check_branch
      %116 = sbr.rel (%p113) target = $region12
    $region11: #{video_transformer_forward.3} parent=5 // pred_region
      %s117 = ssub.s32 %s9, 1
      // Predicated region
      $region13: #{video_transformer_forward.3} parent=11 // pred_check
        %p118 = pneg %p56
      $region14: #{video_transformer_forward.3} parent=11 // pred_check_branch
        %120 = sbr.rel (%p118) target = $region16
      $region15: #{video_transformer_forward.3} parent=11 // pred_region
        _
      $region16: #{video_transformer_forward.3} parent=11 // pred_fallthru
        _
      // Predicated region
      $region17: #{video_transformer_forward.3} parent=11 // pred_check
        %p121 = pneg %p77
      $region18: #{video_transformer_forward.3} parent=11 // pred_check_branch
        %123 = sbr.rel (%p121) target = $region20
      $region19: #{video_transformer_forward.3} parent=11 // pred_region
        _
      $region20: #{video_transformer_forward.3} parent=11 // pred_fallthru
        _
    $region12: #{video_transformer_forward.3} parent=5 // pred_fallthru
      _
    %p124 = scmp.lt.s32.totalorder %s9, 2
    // Predicated region
    $region21: #{video_transformer_forward.3} parent=5 // pred_check
      %p125 = pneg %p124
    $region22: #{video_transformer_forward.3} parent=5 // pred_check_branch
      %127 = sbr.rel (%p125) target = $region24
    $region23: #{video_transformer_forward.3} parent=5 // pred_region
      // Predicated region
      $region25: #{video_transformer_forward.3} parent=23 // pred_check
        %p128 = pneg %p29
      $region26: #{video_transformer_forward.3} parent=23 // pred_check_branch
        %130 = sbr.rel (%p128) target = $region28
      $region27: #{video_transformer_forward.3} parent=23 // pred_region
        %s131 = smul.u32 64, %s9
        %p132 = scmp.lt.s32.totalorder %s131, 127
        %s133 = scalar_select %p132, %s131, 127
        %s134 = smul.addr %s133, 8
        %s135 = scalar_lea.vmem %s0, %s134
        %s136 = smul.u32 64, %s9
      $region28: #{video_transformer_forward.3} parent=23 // pred_fallthru
        _
    $region24: #{video_transformer_forward.3} parent=5 // pred_fallthru
      _
    %p137 = scmp.le.s32.totalorder 1, %s9
    %p138 = scmp.lt.s32.totalorder %s9, 3
    %p139 = pnand %p137, %p138
    %p140 = pneg %p139
    // Predicated region
    $region29: #{video_transformer_forward.3} parent=5 // pred_check
      _
    $region30: #{video_transformer_forward.3} parent=5 // pred_check_branch
      %142 = sbr.rel (%p139) target = $region32
    $region31: #{video_transformer_forward.3} parent=5 // pred_region
      %s143 = ssub.s32 %s9, 1
      %s144 = smul.u32 64, %s14
      %p145 = scmp.lt.s32.totalorder %s144, 127
      %s146 = scalar_select %p145, %s144, 127
      %s147 = smul.addr %s146, 8
      %s148 = scalar_lea.vmem %s0, %s147
      %p149 = pneg %p35
      %p150 = pneg %p32
      %p151 = pneg %p56
      %p152 = pneg %p53
      %p153 = pneg %p77
      %p154 = pneg %p74
      %p155 = pneg %p103
      %p156 = pneg %p100
      %s157 = smul.u32 64, %s14
      %p158 = scmp.lt.s32.totalorder %s157, 127
      %s159 = scalar_select %p158, %s157, 127
      %s160 = smul.addr %s159, 8
      %s161 = scalar_lea.vmem %s3, %s160
      %s162 = smul.u32 64, %s14
      %p163 = scmp.lt.s32.totalorder %s162, 127
      %s164 = scalar_select %p163, %s162, 127
      %s165 = smul.addr %s164, 8
      %s166 = scalar_lea.vmem %s0, %s165
      %s167 = smul.u32 64, %s14
      %s168 = smul.u32 64, %s14
      %p169 = scmp.lt.s32.totalorder %s168, 127
      %s170 = scalar_select %p169, %s168, 127
      %s171 = smul.addr %s170, 8
      %s172 = scalar_lea.vmem %s3, %s171
      %s173 = smul.u32 64, %s14
      %v175 = vld [vmem:[%s166] sm:$0xff]
      %v176 = vld [vmem:[%s166 + $0x8] sm:$0xff]
      %v177 = vld [vmem:[%s166 + $0x10] sm:$0xff]
      %v178 = vld [vmem:[%s166 + $0x18] sm:$0xff]
      %v179 = vld [vmem:[%s166 + $0x20] sm:$0xff]
      %v180 = vld [vmem:[%s166 + $0x28] sm:$0xff]
      %v181 = vld [vmem:[%s166 + $0x30] sm:$0xff]
      %v182 = vld [vmem:[%s166 + $0x38] sm:$0xff]
      %v183 = vld [vmem:[%s166 + $0x40] sm:$0xff]
      %v184 = vld [vmem:[%s166 + $0x48] sm:$0xff]
      %v185 = vld [vmem:[%s166 + $0x50] sm:$0xff]
      %v186 = vld [vmem:[%s166 + $0x58] sm:$0xff]
      %v187 = vld [vmem:[%s166 + $0x60] sm:$0xff]
      %v188 = vld [vmem:[%s166 + $0x68] sm:$0xff]
      %v189 = vld [vmem:[%s166 + $0x70] sm:$0xff]
      %v190 = vld [vmem:[%s166 + $0x78] sm:$0xff]
      %v191 = vld [vmem:[%s166 + $0x80] sm:$0xff]
      %v192 = vld [vmem:[%s166 + $0x88] sm:$0xff]
      %v193 = vld [vmem:[%s166 + $0x90] sm:$0xff]
      %v194 = vld [vmem:[%s166 + $0x98] sm:$0xff]
      %v195 = vld [vmem:[%s166 + $0xa0] sm:$0xff]
      %v196 = vld [vmem:[%s166 + $0xa8] sm:$0xff]
      %v197 = vld [vmem:[%s166 + $0xb0] sm:$0xff]
      %v198 = vld [vmem:[%s166 + $0xb8] sm:$0xff]
      %v199 = vld [vmem:[%s166 + $0xc0] sm:$0xff]
      %v200 = vld [vmem:[%s166 + $0xc8] sm:$0xff]
      %v201 = vld [vmem:[%s166 + $0xd0] sm:$0xff]
      %v202 = vld [vmem:[%s166 + $0xd8] sm:$0xff]
      %v203 = vld [vmem:[%s166 + $0xe0] sm:$0xff]
      %v204 = vld [vmem:[%s166 + $0xe8] sm:$0xff]
      %v205 = vld [vmem:[%s166 + $0xf0] sm:$0xff]
      %v206 = vld [vmem:[%s166 + $0xf8] sm:$0xff]
      %v207 = vld [vmem:[%s166 + $0x100] sm:$0xff]
      %v208 = vld [vmem:[%s166 + $0x108] sm:$0xff]
      %v209 = vld [vmem:[%s166 + $0x110] sm:$0xff]
      %v210 = vld [vmem:[%s166 + $0x118] sm:$0xff]
      %v211 = vld [vmem:[%s166 + $0x120] sm:$0xff]
      %v212 = vld [vmem:[%s166 + $0x128] sm:$0xff]
      %v213 = vld [vmem:[%s166 + $0x130] sm:$0xff]
      %v214 = vld [vmem:[%s166 + $0x138] sm:$0xff]
      %v215 = vld [vmem:[%s166 + $0x140] sm:$0xff]
      %v216 = vld [vmem:[%s166 + $0x148] sm:$0xff]
      %v217 = vld [vmem:[%s166 + $0x150] sm:$0xff]
      %v218 = vld [vmem:[%s166 + $0x158] sm:$0xff]
      %v219 = vld [vmem:[%s166 + $0x160] sm:$0xff]
      %v220 = vld [vmem:[%s166 + $0x168] sm:$0xff]
      %v221 = vld [vmem:[%s166 + $0x170] sm:$0xff]
      %v222 = vld [vmem:[%s166 + $0x178] sm:$0xff]
      %v223 = vld [vmem:[%s166 + $0x180] sm:$0xff]
      %v224 = vld [vmem:[%s166 + $0x188] sm:$0xff]
      %v225 = vld [vmem:[%s166 + $0x190] sm:$0xff]
      %v226 = vld [vmem:[%s166 + $0x198] sm:$0xff]
      %v227 = vld [vmem:[%s166 + $0x1a0] sm:$0xff]
      %v228 = vld [vmem:[%s166 + $0x1a8] sm:$0xff]
      %v229 = vld [vmem:[%s166 + $0x1b0] sm:$0xff]
      %v230 = vld [vmem:[%s166 + $0x1b8] sm:$0xff]
      %v231 = vld [vmem:[%s166 + $0x1c0] sm:$0xff]
      %v232 = vld [vmem:[%s166 + $0x1c8] sm:$0xff]
      %v233 = vld [vmem:[%s166 + $0x1d0] sm:$0xff]
      %v234 = vld [vmem:[%s166 + $0x1d8] sm:$0xff]
      %v235 = vld [vmem:[%s166 + $0x1e0] sm:$0xff]
      %v236 = vld [vmem:[%s166 + $0x1e8] sm:$0xff]
      %v237 = vld [vmem:[%s166 + $0x1f0] sm:$0xff]
      %v238 = vld [vmem:[%s166 + $0x1f8] sm:$0xff]
      %v239 = vld [vmem:[%s1] sm:$0xff]
      %v240 = vld [vmem:[%s1 + $0x8] sm:$0xff]
      %v241 = vld [vmem:[%s1 + $0x10] sm:$0xff]
      %v242 = vld [vmem:[%s1 + $0x18] sm:$0x7]
      %v243 = vpack.c.bf16 %v176, %v175
      %v244 = vpack.c.bf16 %v178, %v177
      %v245 = vpack.c.bf16 %v180, %v179
      %v246 = vpack.c.bf16 %v182, %v181
      %v247 = vpack.c.bf16 %v184, %v183
      %v248 = vpack.c.bf16 %v186, %v185
      %v249 = vpack.c.bf16 %v188, %v187
      %v250 = vpack.c.bf16 %v190, %v189
      %v251 = vpack.c.bf16 %v192, %v191
      %v252 = vpack.c.bf16 %v194, %v193
      %v253 = vpack.c.bf16 %v196, %v195
      %v254 = vpack.c.bf16 %v198, %v197
      %v255 = vpack.c.bf16 %v200, %v199
      %v256 = vpack.c.bf16 %v202, %v201
      %v257 = vpack.c.bf16 %v204, %v203
      %v258 = vpack.c.bf16 %v206, %v205
      %v259 = vpack.c.bf16 %v208, %v207
      %v260 = vpack.c.bf16 %v210, %v209
      %v261 = vpack.c.bf16 %v212, %v211
      %v262 = vpack.c.bf16 %v214, %v213
      %v263 = vpack.c.bf16 %v216, %v215
      %v264 = vpack.c.bf16 %v218, %v217
      %v265 = vpack.c.bf16 %v220, %v219
      %v266 = vpack.c.bf16 %v222, %v221
      %v267 = vpack.c.bf16 %v224, %v223
      %v268 = vpack.c.bf16 %v226, %v225
      %v269 = vpack.c.bf16 %v228, %v227
      %v270 = vpack.c.bf16 %v230, %v229
      %v271 = vpack.c.bf16 %v232, %v231
      %v272 = vpack.c.bf16 %v234, %v233
      %v273 = vpack.c.bf16 %v236, %v235
      %v274 = vpack.c.bf16 %v238, %v237
      %v275 = vpack.c.bf16 %v240, %v239
      %v276 = vpack.c.bf16 %v242, %v241
      %v277 = vld [vmem:[%s2] sm:$0x1]
      %v279 = vperm.slane %v277, 0
      %vm281 = vcmask 220160
      %v283 = vsel %vm281, %v243, 0
      %v286 = vsel %vm281, %v244, 0
      %v289 = vsel %vm281, %v245, 0
      %v292 = vsel %vm281, %v246, 0
      %v295 = vsel %vm281, %v247, 0
      %v298 = vsel %vm281, %v248, 0
      %v301 = vsel %vm281, %v249, 0
      %v304 = vsel %vm281, %v250, 0
      %v307 = vsel %vm281, %v251, 0
      %v310 = vsel %vm281, %v252, 0
      %v313 = vsel %vm281, %v253, 0
      %v316 = vsel %vm281, %v254, 0
      %v319 = vsel %vm281, %v255, 0
      %v322 = vsel %vm281, %v256, 0
      %v325 = vsel %vm281, %v257, 0
      %v328 = vsel %vm281, %v258, 0
      %v331 = vsel %vm281, %v259, 0
      %v334 = vsel %vm281, %v260, 0
      %v337 = vsel %vm281, %v261, 0
      %v340 = vsel %vm281, %v262, 0
      %v343 = vsel %vm281, %v263, 0
      %v346 = vsel %vm281, %v264, 0
      %v349 = vsel %vm281, %v265, 0
      %v352 = vsel %vm281, %v266, 0
      %v355 = vsel %vm281, %v267, 0
      %v358 = vsel %vm281, %v268, 0
      %v361 = vsel %vm281, %v269, 0
      %v364 = vsel %vm281, %v270, 0
      %v367 = vsel %vm281, %v271, 0
      %v370 = vsel %vm281, %v272, 0
      %v373 = vsel %vm281, %v273, 0
      %v376 = vsel %vm281, %v274, 0
      %vm378 = vcmask 1044480
      %vm379 = vcmask 1045504
      %v380 = vsel %vm378, 4294967295, 65535
      %v381 = vsel %vm379, %v380, 0
      %v383 = vand.u32 %v276, %v381
      %385 = vmatpush.bf16.msra.mxu0 0
      %386 = vmatpush.bf16.msra.mxu0 0
      %387 = vmatpush.bf16.msra.mxu0 0
      %388 = vmatpush.bf16.msra.mxu0 0
      %389 = vmatpush.bf16.msra.mxu0 0
      %390 = vmatpush.bf16.msra.mxu0 0
      %391 = vmatpush.bf16.msra.mxu0 %v383
      %392 = vmatpush.bf16.msra.mxu0 %v275
      %393 = vmatmul.bf16.gmra.mxu0 %v283
      %v394 = vpop.f32.mrf.mxu0
      %v395 = vadd.f32 %v279, %v394
      %v396 = vpop.f32.mrf.mxu0
      %v397 = vadd.f32 %v279, %v396
      %398 = vmatmul.bf16.gmra.mxu0 %v286
      %v399 = vpop.f32.mrf.mxu0
      %v400 = vadd.f32 %v279, %v399
      %v401 = vpop.f32.mrf.mxu0
      %v402 = vadd.f32 %v279, %v401
      %403 = vmatmul.bf16.gmra.mxu0 %v289
      %v404 = vpop.f32.mrf.mxu0
      %v405 = vadd.f32 %v279, %v404
      %v406 = vpop.f32.mrf.mxu0
      %v407 = vadd.f32 %v279, %v406
      %408 = vmatmul.bf16.gmra.mxu0 %v292
      %v409 = vpop.f32.mrf.mxu0
      %v410 = vadd.f32 %v279, %v409
      %v411 = vpop.f32.mrf.mxu0
      %v412 = vadd.f32 %v279, %v411
      %413 = vmatmul.bf16.gmra.mxu0 %v295
      %v414 = vpop.f32.mrf.mxu0
      %v415 = vadd.f32 %v279, %v414
      %v416 = vpop.f32.mrf.mxu0
      %v417 = vadd.f32 %v279, %v416
      %418 = vmatmul.bf16.gmra.mxu0 %v298
      %v419 = vpop.f32.mrf.mxu0
      %v420 = vadd.f32 %v279, %v419
      %v421 = vpop.f32.mrf.mxu0
      %v422 = vadd.f32 %v279, %v421
      %423 = vmatmul.bf16.gmra.mxu0 %v301
      %v424 = vpop.f32.mrf.mxu0
      %v425 = vadd.f32 %v279, %v424
      %v426 = vpop.f32.mrf.mxu0
      %v427 = vadd.f32 %v279, %v426
      %428 = vmatmul.bf16.gmra.mxu0 %v304
      %v429 = vpop.f32.mrf.mxu0
      %v430 = vadd.f32 %v279, %v429
      %v431 = vpop.f32.mrf.mxu0
      %v432 = vadd.f32 %v279, %v431
      %433 = vmatmul.bf16.gmra.mxu0 %v307
      %v434 = vpop.f32.mrf.mxu0
      %v435 = vadd.f32 %v279, %v434
      %v436 = vpop.f32.mrf.mxu0
      %v437 = vadd.f32 %v279, %v436
      %438 = vmatmul.bf16.gmra.mxu0 %v310
      %v439 = vpop.f32.mrf.mxu0
      %v440 = vadd.f32 %v279, %v439
      %v441 = vpop.f32.mrf.mxu0
      %v442 = vadd.f32 %v279, %v441
      %443 = vmatmul.bf16.gmra.mxu0 %v313
      %v444 = vpop.f32.mrf.mxu0
      %v445 = vadd.f32 %v279, %v444
      %v446 = vpop.f32.mrf.mxu0
      %v447 = vadd.f32 %v279, %v446
      %448 = vmatmul.bf16.gmra.mxu0 %v316
      %v449 = vpop.f32.mrf.mxu0
      %v450 = vadd.f32 %v279, %v449
      %v451 = vpop.f32.mrf.mxu0
      %v452 = vadd.f32 %v279, %v451
      %453 = vmatmul.bf16.gmra.mxu0 %v319
      %v454 = vpop.f32.mrf.mxu0
      %v455 = vadd.f32 %v279, %v454
      %v456 = vpop.f32.mrf.mxu0
      %v457 = vadd.f32 %v279, %v456
      %458 = vmatmul.bf16.gmra.mxu0 %v322
      %v459 = vpop.f32.mrf.mxu0
      %v460 = vadd.f32 %v279, %v459
      %v461 = vpop.f32.mrf.mxu0
      %v462 = vadd.f32 %v279, %v461
      %463 = vmatmul.bf16.gmra.mxu0 %v325
      %v464 = vpop.f32.mrf.mxu0
      %v465 = vadd.f32 %v279, %v464
      %v466 = vpop.f32.mrf.mxu0
      %v467 = vadd.f32 %v279, %v466
      %468 = vmatmul.bf16.gmra.mxu0 %v328
      %v469 = vpop.f32.mrf.mxu0
      %v470 = vadd.f32 %v279, %v469
      %v471 = vpop.f32.mrf.mxu0
      %v472 = vadd.f32 %v279, %v471
      %473 = vmatmul.bf16.gmra.mxu0 %v331
      %v474 = vpop.f32.mrf.mxu0
      %v475 = vadd.f32 %v279, %v474
      %v476 = vpop.f32.mrf.mxu0
      %v477 = vadd.f32 %v279, %v476
      %478 = vmatmul.bf16.gmra.mxu0 %v334
      %v479 = vpop.f32.mrf.mxu0
      %v480 = vadd.f32 %v279, %v479
      %v481 = vpop.f32.mrf.mxu0
      %v482 = vadd.f32 %v279, %v481
      %483 = vmatmul.bf16.gmra.mxu0 %v337
      %v484 = vpop.f32.mrf.mxu0
      %v485 = vadd.f32 %v279, %v484
      %v486 = vpop.f32.mrf.mxu0
      %v487 = vadd.f32 %v279, %v486
      %488 = vmatmul.bf16.gmra.mxu0 %v340
      %v489 = vpop.f32.mrf.mxu0
      %v490 = vadd.f32 %v279, %v489
      %v491 = vpop.f32.mrf.mxu0
      %v492 = vadd.f32 %v279, %v491
      %493 = vmatmul.bf16.gmra.mxu0 %v343
      %v494 = vpop.f32.mrf.mxu0
      %v495 = vadd.f32 %v279, %v494
      %v496 = vpop.f32.mrf.mxu0
      %v497 = vadd.f32 %v279, %v496
      %498 = vmatmul.bf16.gmra.mxu0 %v346
      %v499 = vpop.f32.mrf.mxu0
      %v500 = vadd.f32 %v279, %v499
      %v501 = vpop.f32.mrf.mxu0
      %v502 = vadd.f32 %v279, %v501
      %503 = vmatmul.bf16.gmra.mxu0 %v349
      %v504 = vpop.f32.mrf.mxu0
      %v505 = vadd.f32 %v279, %v504
      %v506 = vpop.f32.mrf.mxu0
      %v507 = vadd.f32 %v279, %v506
      %508 = vmatmul.bf16.gmra.mxu0 %v352
      %v509 = vpop.f32.mrf.mxu0
      %v510 = vadd.f32 %v279, %v509
      %v511 = vpop.f32.mrf.mxu0
      %v512 = vadd.f32 %v279, %v511
      %513 = vmatmul.bf16.gmra.mxu0 %v355
      %v514 = vpop.f32.mrf.mxu0
      %v515 = vadd.f32 %v279, %v514
      %v516 = vpop.f32.mrf.mxu0
      %v517 = vadd.f32 %v279, %v516
      %518 = vmatmul.bf16.gmra.mxu0 %v358
      %v519 = vpop.f32.mrf.mxu0
      %v520 = vadd.f32 %v279, %v519
      %v521 = vpop.f32.mrf.mxu0
      %v522 = vadd.f32 %v279, %v521
      %523 = vmatmul.bf16.gmra.mxu0 %v361
      %v524 = vpop.f32.mrf.mxu0
      %v525 = vadd.f32 %v279, %v524
      %v526 = vpop.f32.mrf.mxu0
      %v527 = vadd.f32 %v279, %v526
      %528 = vmatmul.bf16.gmra.mxu0 %v364
      %v529 = vpop.f32.mrf.mxu0
      %v530 = vadd.f32 %v279, %v529
      %v531 = vpop.f32.mrf.mxu0
      %v532 = vadd.f32 %v279, %v531
      %533 = vmatmul.bf16.gmra.mxu0 %v367
      %v534 = vpop.f32.mrf.mxu0
      %v535 = vadd.f32 %v279, %v534
      %v536 = vpop.f32.mrf.mxu0
      %v537 = vadd.f32 %v279, %v536
      %538 = vmatmul.bf16.gmra.mxu0 %v370
      %v539 = vpop.f32.mrf.mxu0
      %v540 = vadd.f32 %v279, %v539
      %v541 = vpop.f32.mrf.mxu0
      %v542 = vadd.f32 %v279, %v541
      %543 = vmatmul.bf16.gmra.mxu0 %v373
      %v544 = vpop.f32.mrf.mxu0
      %v545 = vadd.f32 %v279, %v544
      %v546 = vpop.f32.mrf.mxu0
      %v547 = vadd.f32 %v279, %v546
      %548 = vmatmul.bf16.gmra.mxu0 %v376
      %v549 = vpop.f32.mrf.mxu0
      %v550 = vadd.f32 %v279, %v549
      %v551 = vpop.f32.mrf.mxu0
      %v552 = vadd.f32 %v279, %v551
      %553 = vdwg.mxu0
      %v554 = vmax.f32 %v395, 0.0
      %v555 = vmax.f32 %v397, 0.0
      %v556 = vmax.f32 %v400, 0.0
      %v557 = vmax.f32 %v402, 0.0
      %v558 = vmax.f32 %v405, 0.0
      %v559 = vmax.f32 %v407, 0.0
      %v560 = vmax.f32 %v410, 0.0
      %v561 = vmax.f32 %v412, 0.0
      %v562 = vmax.f32 %v415, 0.0
      %v563 = vmax.f32 %v417, 0.0
      %v564 = vmax.f32 %v420, 0.0
      %v565 = vmax.f32 %v422, 0.0
      %v566 = vmax.f32 %v425, 0.0
      %v567 = vmax.f32 %v427, 0.0
      %v568 = vmax.f32 %v430, 0.0
      %v569 = vmax.f32 %v432, 0.0
      %v570 = vmax.f32 %v435, 0.0
      %v571 = vmax.f32 %v437, 0.0
      %v572 = vmax.f32 %v440, 0.0
      %v573 = vmax.f32 %v442, 0.0
      %v574 = vmax.f32 %v445, 0.0
      %v575 = vmax.f32 %v447, 0.0
      %v576 = vmax.f32 %v450, 0.0
      %v577 = vmax.f32 %v452, 0.0
      %v578 = vmax.f32 %v455, 0.0
      %v579 = vmax.f32 %v457, 0.0
      %v580 = vmax.f32 %v460, 0.0
      %v581 = vmax.f32 %v462, 0.0
      %v582 = vmax.f32 %v465, 0.0
      %v583 = vmax.f32 %v467, 0.0
      %v584 = vmax.f32 %v470, 0.0
      %v585 = vmax.f32 %v472, 0.0
      %v586 = vmax.f32 %v475, 0.0
      %v587 = vmax.f32 %v477, 0.0
      %v588 = vmax.f32 %v480, 0.0
      %v589 = vmax.f32 %v482, 0.0
      %v590 = vmax.f32 %v485, 0.0
      %v591 = vmax.f32 %v487, 0.0
      %v592 = vmax.f32 %v490, 0.0
      %v593 = vmax.f32 %v492, 0.0
      %v594 = vmax.f32 %v495, 0.0
      %v595 = vmax.f32 %v497, 0.0
      %v596 = vmax.f32 %v500, 0.0
      %v597 = vmax.f32 %v502, 0.0
      %v598 = vmax.f32 %v505, 0.0
      %v599 = vmax.f32 %v507, 0.0
      %v600 = vmax.f32 %v510, 0.0
      %v601 = vmax.f32 %v512, 0.0
      %v602 = vmax.f32 %v515, 0.0
      %v603 = vmax.f32 %v517, 0.0
      %v604 = vmax.f32 %v520, 0.0
      %v605 = vmax.f32 %v522, 0.0
      %v606 = vmax.f32 %v525, 0.0
      %v607 = vmax.f32 %v527, 0.0
      %v608 = vmax.f32 %v530, 0.0
      %v609 = vmax.f32 %v532, 0.0
      %v610 = vmax.f32 %v535, 0.0
      %v611 = vmax.f32 %v537, 0.0
      %v612 = vmax.f32 %v540, 0.0
      %v613 = vmax.f32 %v542, 0.0
      %v614 = vmax.f32 %v545, 0.0
      %v615 = vmax.f32 %v547, 0.0
      %v616 = vmax.f32 %v550, 0.0
      %v617 = vmax.f32 %v552, 0.0
      %618 = vst [vmem:[%s172] sm:$0xff] %v554
      %619 = vst [vmem:[%s172 + $0x8] sm:$0xff] %v555
      %620 = vst [vmem:[%s172 + $0x10] sm:$0xff] %v556
      %621 = vst [vmem:[%s172 + $0x18] sm:$0xff] %v557
      %622 = vst [vmem:[%s172 + $0x20] sm:$0xff] %v558
      %623 = vst [vmem:[%s172 + $0x28] sm:$0xff] %v559
      %624 = vst [vmem:[%s172 + $0x30] sm:$0xff] %v560
      %625 = vst [vmem:[%s172 + $0x38] sm:$0xff] %v561
      %626 = vst [vmem:[%s172 + $0x40] sm:$0xff] %v562
      %627 = vst [vmem:[%s172 + $0x48] sm:$0xff] %v563
      %628 = vst [vmem:[%s172 + $0x50] sm:$0xff] %v564
      %629 = vst [vmem:[%s172 + $0x58] sm:$0xff] %v565
      %630 = vst [vmem:[%s172 + $0x60] sm:$0xff] %v566
      %631 = vst [vmem:[%s172 + $0x68] sm:$0xff] %v567
      %632 = vst [vmem:[%s172 + $0x70] sm:$0xff] %v568
      %633 = vst [vmem:[%s172 + $0x78] sm:$0xff] %v569
      %634 = vst [vmem:[%s172 + $0x80] sm:$0xff] %v570
      %635 = vst [vmem:[%s172 + $0x88] sm:$0xff] %v571
      %636 = vst [vmem:[%s172 + $0x90] sm:$0xff] %v572
      %637 = vst [vmem:[%s172 + $0x98] sm:$0xff] %v573
      %638 = vst [vmem:[%s172 + $0xa0] sm:$0xff] %v574
      %639 = vst [vmem:[%s172 + $0xa8] sm:$0xff] %v575
      %640 = vst [vmem:[%s172 + $0xb0] sm:$0xff] %v576
      %641 = vst [vmem:[%s172 + $0xb8] sm:$0xff] %v577
      %642 = vst [vmem:[%s172 + $0xc0] sm:$0xff] %v578
      %643 = vst [vmem:[%s172 + $0xc8] sm:$0xff] %v579
      %644 = vst [vmem:[%s172 + $0xd0] sm:$0xff] %v580
      %645 = vst [vmem:[%s172 + $0xd8] sm:$0xff] %v581
      %646 = vst [vmem:[%s172 + $0xe0] sm:$0xff] %v582
      %647 = vst [vmem:[%s172 + $0xe8] sm:$0xff] %v583
      %648 = vst [vmem:[%s172 + $0xf0] sm:$0xff] %v584
      %649 = vst [vmem:[%s172 + $0xf8] sm:$0xff] %v585
      %650 = vst [vmem:[%s172 + $0x100] sm:$0xff] %v586
      %651 = vst [vmem:[%s172 + $0x108] sm:$0xff] %v587
      %652 = vst [vmem:[%s172 + $0x110] sm:$0xff] %v588
      %653 = vst [vmem:[%s172 + $0x118] sm:$0xff] %v589
      %654 = vst [vmem:[%s172 + $0x120] sm:$0xff] %v590
      %655 = vst [vmem:[%s172 + $0x128] sm:$0xff] %v591
      %656 = vst [vmem:[%s172 + $0x130] sm:$0xff] %v592
      %657 = vst [vmem:[%s172 + $0x138] sm:$0xff] %v593
      %658 = vst [vmem:[%s172 + $0x140] sm:$0xff] %v594
      %659 = vst [vmem:[%s172 + $0x148] sm:$0xff] %v595
      %660 = vst [vmem:[%s172 + $0x150] sm:$0xff] %v596
      %661 = vst [vmem:[%s172 + $0x158] sm:$0xff] %v597
      %662 = vst [vmem:[%s172 + $0x160] sm:$0xff] %v598
      %663 = vst [vmem:[%s172 + $0x168] sm:$0xff] %v599
      %664 = vst [vmem:[%s172 + $0x170] sm:$0xff] %v600
      %665 = vst [vmem:[%s172 + $0x178] sm:$0xff] %v601
      %666 = vst [vmem:[%s172 + $0x180] sm:$0xff] %v602
      %667 = vst [vmem:[%s172 + $0x188] sm:$0xff] %v603
      %668 = vst [vmem:[%s172 + $0x190] sm:$0xff] %v604
      %669 = vst [vmem:[%s172 + $0x198] sm:$0xff] %v605
      %670 = vst [vmem:[%s172 + $0x1a0] sm:$0xff] %v606
      %671 = vst [vmem:[%s172 + $0x1a8] sm:$0xff] %v607
      %672 = vst [vmem:[%s172 + $0x1b0] sm:$0xff] %v608
      %673 = vst [vmem:[%s172 + $0x1b8] sm:$0xff] %v609
      %674 = vst [vmem:[%s172 + $0x1c0] sm:$0xff] %v610
      %675 = vst [vmem:[%s172 + $0x1c8] sm:$0xff] %v611
      %676 = vst [vmem:[%s172 + $0x1d0] sm:$0xff] %v612
      %677 = vst [vmem:[%s172 + $0x1d8] sm:$0xff] %v613
      %678 = vst [vmem:[%s172 + $0x1e0] sm:$0xff] %v614
      %679 = vst [vmem:[%s172 + $0x1e8] sm:$0xff] %v615
      %680 = vst [vmem:[%s172 + $0x1f0] sm:$0xff] %v616
      %681 = vst [vmem:[%s172 + $0x1f8] sm:$0xff] %v617
      %s682 = smul.u32 64, %s14
      %p683 = scmp.lt.s32.totalorder %s682, 127
      %s684 = scalar_select %p683, %s682, 127
      %s685 = smul.addr %s684, 8
      %s686 = scalar_lea.vmem %s3, %s685
      // Predicated region
      $region33: #{video_transformer_forward.3} parent=31 // pred_check
        %p687 = pneg %p100
      $region34: #{video_transformer_forward.3} parent=31 // pred_check_branch
        %689 = sbr.rel (%p687) target = $region36
      $region35: #{video_transformer_forward.3} parent=31 // pred_region
        %s690 = smul.u32 64, %s14
      $region36: #{video_transformer_forward.3} parent=31 // pred_fallthru
        _
    $region32: #{video_transformer_forward.3} parent=5 // pred_fallthru
      _
    %p691 = scmp.le.s32.totalorder 2, %s9
    // Predicated region
    $region37: #{video_transformer_forward.3} parent=5 // pred_check
      %p692 = pneg %p691
    $region38: #{video_transformer_forward.3} parent=5 // pred_check_branch
      %694 = sbr.rel (%p692) target = $region40
    $region39: #{video_transformer_forward.3} parent=5 // pred_region
      %s695 = ssub.s32 %s9, 2
      // Predicated region
      $region41: #{video_transformer_forward.3} parent=39 // pred_check
        %p696 = pneg %p106
      $region42: #{video_transformer_forward.3} parent=39 // pred_check_branch
        %698 = sbr.rel (%p696) target = $region44
      $region43: #{video_transformer_forward.3} parent=39 // pred_region
        %s699 = smul.u32 64, %s15
        %p700 = scmp.lt.s32.totalorder %s699, 127
        %s701 = scalar_select %p700, %s699, 127
        %s702 = smul.addr %s701, 8
        %s703 = scalar_lea.vmem %s3, %s702
      $region44: #{video_transformer_forward.3} parent=39 // pred_fallthru
        _
    $region40: #{video_transformer_forward.3} parent=5 // pred_fallthru
      _
  $region6: #{video_transformer_forward.3} parent=0 // loop_footer
    %s13 = sadd.s32 1, %s9
  $region7: #{video_transformer_forward.3} parent=0 // loop_footer_branch
    %8 = sbr.rel target = $region3
  $region8: #{video_transformer_forward.3} parent=0 // loop_exit
    _

// kernel: video_transformer_forward.4
$region0: #{video_transformer_forward.4}
  #allocation0 [shape = 'u32[]', space=smem, size = 0x4, offset = 0x4, fixed_abs, tag = 'smem constant byte address 0x4 - core index']
  #allocation1 [shape = 'u32[72,128]{1,0:T(1,128)}', space=vmem, size = 0x9000, scoped, tag = 'internal scratch']
  %s0 = inlined_call_operand.vmem [shape: f32[256,1152], index: 0, kind: input, shape index: {}]
  %s1 = inlined_call_operand.vmem [shape: f32[1152,128], index: 1, kind: input, shape index: {}]
  %s2 = inlined_call_operand.vmem [shape: f32[1,128], index: 2, kind: input, shape index: {}]
  %s3 = inlined_call_operand.vmem [shape: f32[256,128], index: 3, kind: output, shape index: {}]
  %s4 = sld [smem:[#allocation0]]
  $region22: #{video_transformer_forward.4} parent=0
    _
  %s6 = ssub.s32 1, %s4
  %s7 = scalar_select 0, %s6, %s4
  // Predicated region
  $region2: #{video_transformer_forward.4} parent=0 // pred_check
    _
  $region3: #{video_transformer_forward.4} parent=0 // pred_check_branch
    %9 = sbr.rel (0) target = $region5
  $region4: #{video_transformer_forward.4} parent=0 // pred_region
    _
  $region5: #{video_transformer_forward.4} parent=0 // pred_fallthru
    _
  // Predicated region
  $region6: #{video_transformer_forward.4} parent=0 // pred_check
    _
  $region7: #{video_transformer_forward.4} parent=0 // pred_check_branch
    %11 = sbr.rel (0) target = $region9
  $region8: #{video_transformer_forward.4} parent=0 // pred_region
    _
  $region9: #{video_transformer_forward.4} parent=0 // pred_fallthru
    _
  // Predicated region
  $region10: #{video_transformer_forward.4} parent=0 // pred_check
    _
  $region11: #{video_transformer_forward.4} parent=0 // pred_check_branch
    %13 = sbr.rel (0) target = $region13
  $region12: #{video_transformer_forward.4} parent=0 // pred_region
    _
  $region13: #{video_transformer_forward.4} parent=0 // pred_fallthru
    _
  %v14 = vld [vmem:[%s0] sm:$0xff]
  %v15 = vld [vmem:[%s0 + $0x8] sm:$0xff]
  %v16 = vld [vmem:[%s0 + $0x10] sm:$0xff]
  %v17 = vld [vmem:[%s0 + $0x18] sm:$0xff]
  %v18 = vld [vmem:[%s0 + $0x20] sm:$0xff]
  %v19 = vld [vmem:[%s0 + $0x28] sm:$0xff]
  %v20 = vld [vmem:[%s0 + $0x30] sm:$0xff]
  %v21 = vld [vmem:[%s0 + $0x38] sm:$0xff]
  %v22 = vld [vmem:[%s0 + $0x40] sm:$0xff]
  %v23 = vld [vmem:[%s0 + $0x48] sm:$0xff]
  %v24 = vld [vmem:[%s0 + $0x50] sm:$0xff]
  %v25 = vld [vmem:[%s0 + $0x58] sm:$0xff]
  %v26 = vld [vmem:[%s0 + $0x60] sm:$0xff]
  %v27 = vld [vmem:[%s0 + $0x68] sm:$0xff]
  %v28 = vld [vmem:[%s0 + $0x70] sm:$0xff]
  %v29 = vld [vmem:[%s0 + $0x78] sm:$0xff]
  %v30 = vld [vmem:[%s0 + $0x80] sm:$0xff]
  %v31 = vld [vmem:[%s0 + $0x88] sm:$0xff]
  %v32 = vld [vmem:[%s0 + $0x90] sm:$0xff]
  %v33 = vld [vmem:[%s0 + $0x98] sm:$0xff]
  %v34 = vld [vmem:[%s0 + $0xa0] sm:$0xff]
  %v35 = vld [vmem:[%s0 + $0xa8] sm:$0xff]
  %v36 = vld [vmem:[%s0 + $0xb0] sm:$0xff]
  %v37 = vld [vmem:[%s0 + $0xb8] sm:$0xff]
  %v38 = vld [vmem:[%s0 + $0xc0] sm:$0xff]
  %v39 = vld [vmem:[%s0 + $0xc8] sm:$0xff]
  %v40 = vld [vmem:[%s0 + $0xd0] sm:$0xff]
  %v41 = vld [vmem:[%s0 + $0xd8] sm:$0xff]
  %v42 = vld [vmem:[%s0 + $0xe0] sm:$0xff]
  %v43 = vld [vmem:[%s0 + $0xe8] sm:$0xff]
  %v44 = vld [vmem:[%s0 + $0xf0] sm:$0xff]
  %v45 = vld [vmem:[%s0 + $0xf8] sm:$0xff]
  %v46 = vld [vmem:[%s0 + $0x100] sm:$0xff]
  %v47 = vld [vmem:[%s0 + $0x108] sm:$0xff]
  %v48 = vld [vmem:[%s0 + $0x110] sm:$0xff]
  %v49 = vld [vmem:[%s0 + $0x118] sm:$0xff]
  %v50 = vld [vmem:[%s0 + $0x120] sm:$0xff]
  %v51 = vld [vmem:[%s0 + $0x128] sm:$0xff]
  %v52 = vld [vmem:[%s0 + $0x130] sm:$0xff]
  %v53 = vld [vmem:[%s0 + $0x138] sm:$0xff]
  %v54 = vld [vmem:[%s0 + $0x140] sm:$0xff]
  %v55 = vld [vmem:[%s0 + $0x148] sm:$0xff]
  %v56 = vld [vmem:[%s0 + $0x150] sm:$0xff]
  %v57 = vld [vmem:[%s0 + $0x158] sm:$0xff]
  %v58 = vld [vmem:[%s0 + $0x160] sm:$0xff]
  %v59 = vld [vmem:[%s0 + $0x168] sm:$0xff]
  %v60 = vld [vmem:[%s0 + $0x170] sm:$0xff]
  %v61 = vld [vmem:[%s0 + $0x178] sm:$0xff]
  %v62 = vld [vmem:[%s0 + $0x180] sm:$0xff]
  %v63 = vld [vmem:[%s0 + $0x188] sm:$0xff]
  %v64 = vld [vmem:[%s0 + $0x190] sm:$0xff]
  %v65 = vld [vmem:[%s0 + $0x198] sm:$0xff]
  %v66 = vld [vmem:[%s0 + $0x1a0] sm:$0xff]
  %v67 = vld [vmem:[%s0 + $0x1a8] sm:$0xff]
  %v68 = vld [vmem:[%s0 + $0x1b0] sm:$0xff]
  %v69 = vld [vmem:[%s0 + $0x1b8] sm:$0xff]
  %v70 = vld [vmem:[%s0 + $0x1c0] sm:$0xff]
  %v71 = vld [vmem:[%s0 + $0x1c8] sm:$0xff]
  %v72 = vld [vmem:[%s0 + $0x1d0] sm:$0xff]
  %v73 = vld [vmem:[%s0 + $0x1d8] sm:$0xff]
  %v74 = vld [vmem:[%s0 + $0x1e0] sm:$0xff]
  %v75 = vld [vmem:[%s0 + $0x1e8] sm:$0xff]
  %v76 = vld [vmem:[%s0 + $0x1f0] sm:$0xff]
  %v77 = vld [vmem:[%s0 + $0x1f8] sm:$0xff]
  %v78 = vld [vmem:[%s0 + $0x200] sm:$0xff]
  %v79 = vld [vmem:[%s0 + $0x208] sm:$0xff]
  %v80 = vld [vmem:[%s0 + $0x210] sm:$0xff]
  %v81 = vld [vmem:[%s0 + $0x218] sm:$0xff]
  %v82 = vld [vmem:[%s0 + $0x220] sm:$0xff]
  %v83 = vld [vmem:[%s0 + $0x228] sm:$0xff]
  %v84 = vld [vmem:[%s0 + $0x230] sm:$0xff]
  %v85 = vld [vmem:[%s0 + $0x238] sm:$0xff]
  %v86 = vld [vmem:[%s0 + $0x240] sm:$0xff]
  %v87 = vld [vmem:[%s0 + $0x248] sm:$0xff]
  %v88 = vld [vmem:[%s0 + $0x250] sm:$0xff]
  %v89 = vld [vmem:[%s0 + $0x258] sm:$0xff]
  %v90 = vld [vmem:[%s0 + $0x260] sm:$0xff]
  %v91 = vld [vmem:[%s0 + $0x268] sm:$0xff]
  %v92 = vld [vmem:[%s0 + $0x270] sm:$0xff]
  %v93 = vld [vmem:[%s0 + $0x278] sm:$0xff]
  %v94 = vld [vmem:[%s0 + $0x280] sm:$0xff]
  %v95 = vld [vmem:[%s0 + $0x288] sm:$0xff]
  %v96 = vld [vmem:[%s0 + $0x290] sm:$0xff]
  %v97 = vld [vmem:[%s0 + $0x298] sm:$0xff]
  %v98 = vld [vmem:[%s0 + $0x2a0] sm:$0xff]
  %v99 = vld [vmem:[%s0 + $0x2a8] sm:$0xff]
  %v100 = vld [vmem:[%s0 + $0x2b0] sm:$0xff]
  %v101 = vld [vmem:[%s0 + $0x2b8] sm:$0xff]
  %v102 = vld [vmem:[%s0 + $0x2c0] sm:$0xff]
  %v103 = vld [vmem:[%s0 + $0x2c8] sm:$0xff]
  %v104 = vld [vmem:[%s0 + $0x2d0] sm:$0xff]
  %v105 = vld [vmem:[%s0 + $0x2d8] sm:$0xff]
  %v106 = vld [vmem:[%s0 + $0x2e0] sm:$0xff]
  %v107 = vld [vmem:[%s0 + $0x2e8] sm:$0xff]
  %v108 = vld [vmem:[%s0 + $0x2f0] sm:$0xff]
  %v109 = vld [vmem:[%s0 + $0x2f8] sm:$0xff]
  %v110 = vld [vmem:[%s0 + $0x300] sm:$0xff]
  %v111 = vld [vmem:[%s0 + $0x308] sm:$0xff]
  %v112 = vld [vmem:[%s0 + $0x310] sm:$0xff]
  %v113 = vld [vmem:[%s0 + $0x318] sm:$0xff]
  %v114 = vld [vmem:[%s0 + $0x320] sm:$0xff]
  %v115 = vld [vmem:[%s0 + $0x328] sm:$0xff]
  %v116 = vld [vmem:[%s0 + $0x330] sm:$0xff]
  %v117 = vld [vmem:[%s0 + $0x338] sm:$0xff]
  %v118 = vld [vmem:[%s0 + $0x340] sm:$0xff]
  %v119 = vld [vmem:[%s0 + $0x348] sm:$0xff]
  %v120 = vld [vmem:[%s0 + $0x350] sm:$0xff]
  %v121 = vld [vmem:[%s0 + $0x358] sm:$0xff]
  %v122 = vld [vmem:[%s0 + $0x360] sm:$0xff]
  %v123 = vld [vmem:[%s0 + $0x368] sm:$0xff]
  %v124 = vld [vmem:[%s0 + $0x370] sm:$0xff]
  %v125 = vld [vmem:[%s0 + $0x378] sm:$0xff]
  %v126 = vld [vmem:[%s0 + $0x380] sm:$0xff]
  %v127 = vld [vmem:[%s0 + $0x388] sm:$0xff]
  %v128 = vld [vmem:[%s0 + $0x390] sm:$0xff]
  %v129 = vld [vmem:[%s0 + $0x398] sm:$0xff]
  %v130 = vld [vmem:[%s0 + $0x3a0] sm:$0xff]
  %v131 = vld [vmem:[%s0 + $0x3a8] sm:$0xff]
  %v132 = vld [vmem:[%s0 + $0x3b0] sm:$0xff]
  %v133 = vld [vmem:[%s0 + $0x3b8] sm:$0xff]
  %v134 = vld [vmem:[%s0 + $0x3c0] sm:$0xff]
  %v135 = vld [vmem:[%s0 + $0x3c8] sm:$0xff]
  %v136 = vld [vmem:[%s0 + $0x3d0] sm:$0xff]
  %v137 = vld [vmem:[%s0 + $0x3d8] sm:$0xff]
  %v138 = vld [vmem:[%s0 + $0x3e0] sm:$0xff]
  %v139 = vld [vmem:[%s0 + $0x3e8] sm:$0xff]
  %v140 = vld [vmem:[%s0 + $0x3f0] sm:$0xff]
  %v141 = vld [vmem:[%s0 + $0x3f8] sm:$0xff]
  %v142 = vld [vmem:[%s0 + $0x400] sm:$0xff]
  %v143 = vld [vmem:[%s0 + $0x408] sm:$0xff]
  %v144 = vld [vmem:[%s0 + $0x410] sm:$0xff]
  %v145 = vld [vmem:[%s0 + $0x418] sm:$0xff]
  %v146 = vld [vmem:[%s0 + $0x420] sm:$0xff]
  %v147 = vld [vmem:[%s0 + $0x428] sm:$0xff]
  %v148 = vld [vmem:[%s0 + $0x430] sm:$0xff]
  %v149 = vld [vmem:[%s0 + $0x438] sm:$0xff]
  %v150 = vld [vmem:[%s0 + $0x440] sm:$0xff]
  %v151 = vld [vmem:[%s0 + $0x448] sm:$0xff]
  %v152 = vld [vmem:[%s0 + $0x450] sm:$0xff]
  %v153 = vld [vmem:[%s0 + $0x458] sm:$0xff]
  %v154 = vld [vmem:[%s0 + $0x460] sm:$0xff]
  %v155 = vld [vmem:[%s0 + $0x468] sm:$0xff]
  %v156 = vld [vmem:[%s0 + $0x470] sm:$0xff]
  %v157 = vld [vmem:[%s0 + $0x478] sm:$0xff]
  %v158 = vld [vmem:[%s0 + $0x480] sm:$0xff]
  %v159 = vld [vmem:[%s0 + $0x488] sm:$0xff]
  %v160 = vld [vmem:[%s0 + $0x490] sm:$0xff]
  %v161 = vld [vmem:[%s0 + $0x498] sm:$0xff]
  %v162 = vld [vmem:[%s0 + $0x4a0] sm:$0xff]
  %v163 = vld [vmem:[%s0 + $0x4a8] sm:$0xff]
  %v164 = vld [vmem:[%s0 + $0x4b0] sm:$0xff]
  %v165 = vld [vmem:[%s0 + $0x4b8] sm:$0xff]
  %v166 = vld [vmem:[%s0 + $0x4c0] sm:$0xff]
  %v167 = vld [vmem:[%s0 + $0x4c8] sm:$0xff]
  %v168 = vld [vmem:[%s0 + $0x4d0] sm:$0xff]
  %v169 = vld [vmem:[%s0 + $0x4d8] sm:$0xff]
  %v170 = vld [vmem:[%s0 + $0x4e0] sm:$0xff]
  %v171 = vld [vmem:[%s0 + $0x4e8] sm:$0xff]
  %v172 = vld [vmem:[%s0 + $0x4f0] sm:$0xff]
  %v173 = vld [vmem:[%s0 + $0x4f8] sm:$0xff]
  %v174 = vld [vmem:[%s0 + $0x500] sm:$0xff]
  %v175 = vld [vmem:[%s0 + $0x508] sm:$0xff]
  %v176 = vld [vmem:[%s0 + $0x510] sm:$0xff]
  %v177 = vld [vmem:[%s0 + $0x518] sm:$0xff]
  %v178 = vld [vmem:[%s0 + $0x520] sm:$0xff]
  %v179 = vld [vmem:[%s0 + $0x528] sm:$0xff]
  %v180 = vld [vmem:[%s0 + $0x530] sm:$0xff]
  %v181 = vld [vmem:[%s0 + $0x538] sm:$0xff]
  %v182 = vld [vmem:[%s0 + $0x540] sm:$0xff]
  %v183 = vld [vmem:[%s0 + $0x548] sm:$0xff]
  %v184 = vld [vmem:[%s0 + $0x550] sm:$0xff]
  %v185 = vld [vmem:[%s0 + $0x558] sm:$0xff]
  %v186 = vld [vmem:[%s0 + $0x560] sm:$0xff]
  %v187 = vld [vmem:[%s0 + $0x568] sm:$0xff]
  %v188 = vld [vmem:[%s0 + $0x570] sm:$0xff]
  %v189 = vld [vmem:[%s0 + $0x578] sm:$0xff]
  %v190 = vld [vmem:[%s0 + $0x580] sm:$0xff]
  %v191 = vld [vmem:[%s0 + $0x588] sm:$0xff]
  %v192 = vld [vmem:[%s0 + $0x590] sm:$0xff]
  %v193 = vld [vmem:[%s0 + $0x598] sm:$0xff]
  %v194 = vld [vmem:[%s0 + $0x5a0] sm:$0xff]
  %v195 = vld [vmem:[%s0 + $0x5a8] sm:$0xff]
  %v196 = vld [vmem:[%s0 + $0x5b0] sm:$0xff]
  %v197 = vld [vmem:[%s0 + $0x5b8] sm:$0xff]
  %v198 = vld [vmem:[%s0 + $0x5c0] sm:$0xff]
  %v199 = vld [vmem:[%s0 + $0x5c8] sm:$0xff]
  %v200 = vld [vmem:[%s0 + $0x5d0] sm:$0xff]
  %v201 = vld [vmem:[%s0 + $0x5d8] sm:$0xff]
  %v202 = vld [vmem:[%s0 + $0x5e0] sm:$0xff]
  %v203 = vld [vmem:[%s0 + $0x5e8] sm:$0xff]
  %v204 = vld [vmem:[%s0 + $0x5f0] sm:$0xff]
  %v205 = vld [vmem:[%s0 + $0x5f8] sm:$0xff]
  %v206 = vld [vmem:[%s0 + $0x600] sm:$0xff]
  %v207 = vld [vmem:[%s0 + $0x608] sm:$0xff]
  %v208 = vld [vmem:[%s0 + $0x610] sm:$0xff]
  %v209 = vld [vmem:[%s0 + $0x618] sm:$0xff]
  %v210 = vld [vmem:[%s0 + $0x620] sm:$0xff]
  %v211 = vld [vmem:[%s0 + $0x628] sm:$0xff]
  %v212 = vld [vmem:[%s0 + $0x630] sm:$0xff]
  %v213 = vld [vmem:[%s0 + $0x638] sm:$0xff]
  %v214 = vld [vmem:[%s0 + $0x640] sm:$0xff]
  %v215 = vld [vmem:[%s0 + $0x648] sm:$0xff]
  %v216 = vld [vmem:[%s0 + $0x650] sm:$0xff]
  %v217 = vld [vmem:[%s0 + $0x658] sm:$0xff]
  %v218 = vld [vmem:[%s0 + $0x660] sm:$0xff]
  %v219 = vld [vmem:[%s0 + $0x668] sm:$0xff]
  %v220 = vld [vmem:[%s0 + $0x670] sm:$0xff]
  %v221 = vld [vmem:[%s0 + $0x678] sm:$0xff]
  %v222 = vld [vmem:[%s0 + $0x680] sm:$0xff]
  %v223 = vld [vmem:[%s0 + $0x688] sm:$0xff]
  %v224 = vld [vmem:[%s0 + $0x690] sm:$0xff]
  %v225 = vld [vmem:[%s0 + $0x698] sm:$0xff]
  %v226 = vld [vmem:[%s0 + $0x6a0] sm:$0xff]
  %v227 = vld [vmem:[%s0 + $0x6a8] sm:$0xff]
  %v228 = vld [vmem:[%s0 + $0x6b0] sm:$0xff]
  %v229 = vld [vmem:[%s0 + $0x6b8] sm:$0xff]
  %v230 = vld [vmem:[%s0 + $0x6c0] sm:$0xff]
  %v231 = vld [vmem:[%s0 + $0x6c8] sm:$0xff]
  %v232 = vld [vmem:[%s0 + $0x6d0] sm:$0xff]
  %v233 = vld [vmem:[%s0 + $0x6d8] sm:$0xff]
  %v234 = vld [vmem:[%s0 + $0x6e0] sm:$0xff]
  %v235 = vld [vmem:[%s0 + $0x6e8] sm:$0xff]
  %v236 = vld [vmem:[%s0 + $0x6f0] sm:$0xff]
  %v237 = vld [vmem:[%s0 + $0x6f8] sm:$0xff]
  %v238 = vld [vmem:[%s0 + $0x700] sm:$0xff]
  %v239 = vld [vmem:[%s0 + $0x708] sm:$0xff]
  %v240 = vld [vmem:[%s0 + $0x710] sm:$0xff]
  %v241 = vld [vmem:[%s0 + $0x718] sm:$0xff]
  %v242 = vld [vmem:[%s0 + $0x720] sm:$0xff]
  %v243 = vld [vmem:[%s0 + $0x728] sm:$0xff]
  %v244 = vld [vmem:[%s0 + $0x730] sm:$0xff]
  %v245 = vld [vmem:[%s0 + $0x738] sm:$0xff]
  %v246 = vld [vmem:[%s0 + $0x740] sm:$0xff]
  %v247 = vld [vmem:[%s0 + $0x748] sm:$0xff]
  %v248 = vld [vmem:[%s0 + $0x750] sm:$0xff]
  %v249 = vld [vmem:[%s0 + $0x758] sm:$0xff]
  %v250 = vld [vmem:[%s0 + $0x760] sm:$0xff]
  %v251 = vld [vmem:[%s0 + $0x768] sm:$0xff]
  %v252 = vld [vmem:[%s0 + $0x770] sm:$0xff]
  %v253 = vld [vmem:[%s0 + $0x778] sm:$0xff]
  %v254 = vld [vmem:[%s0 + $0x780] sm:$0xff]
  %v255 = vld [vmem:[%s0 + $0x788] sm:$0xff]
  %v256 = vld [vmem:[%s0 + $0x790] sm:$0xff]
  %v257 = vld [vmem:[%s0 + $0x798] sm:$0xff]
  %v258 = vld [vmem:[%s0 + $0x7a0] sm:$0xff]
  %v259 = vld [vmem:[%s0 + $0x7a8] sm:$0xff]
  %v260 = vld [vmem:[%s0 + $0x7b0] sm:$0xff]
  %v261 = vld [vmem:[%s0 + $0x7b8] sm:$0xff]
  %v262 = vld [vmem:[%s0 + $0x7c0] sm:$0xff]
  %v263 = vld [vmem:[%s0 + $0x7c8] sm:$0xff]
  %v264 = vld [vmem:[%s0 + $0x7d0] sm:$0xff]
  %v265 = vld [vmem:[%s0 + $0x7d8] sm:$0xff]
  %v266 = vld [vmem:[%s0 + $0x7e0] sm:$0xff]
  %v267 = vld [vmem:[%s0 + $0x7e8] sm:$0xff]
  %v268 = vld [vmem:[%s0 + $0x7f0] sm:$0xff]
  %v269 = vld [vmem:[%s0 + $0x7f8] sm:$0xff]
  %v270 = vld [vmem:[%s0 + $0x800] sm:$0xff]
  %v271 = vld [vmem:[%s0 + $0x808] sm:$0xff]
  %v272 = vld [vmem:[%s0 + $0x810] sm:$0xff]
  %v273 = vld [vmem:[%s0 + $0x818] sm:$0xff]
  %v274 = vld [vmem:[%s0 + $0x820] sm:$0xff]
  %v275 = vld [vmem:[%s0 + $0x828] sm:$0xff]
  %v276 = vld [vmem:[%s0 + $0x830] sm:$0xff]
  %v277 = vld [vmem:[%s0 + $0x838] sm:$0xff]
  %v278 = vld [vmem:[%s0 + $0x840] sm:$0xff]
  %v279 = vld [vmem:[%s0 + $0x848] sm:$0xff]
  %v280 = vld [vmem:[%s0 + $0x850] sm:$0xff]
  %v281 = vld [vmem:[%s0 + $0x858] sm:$0xff]
  %v282 = vld [vmem:[%s0 + $0x860] sm:$0xff]
  %v283 = vld [vmem:[%s0 + $0x868] sm:$0xff]
  %v284 = vld [vmem:[%s0 + $0x870] sm:$0xff]
  %v285 = vld [vmem:[%s0 + $0x878] sm:$0xff]
  %v286 = vld [vmem:[%s0 + $0x880] sm:$0xff]
  %v287 = vld [vmem:[%s0 + $0x888] sm:$0xff]
  %v288 = vld [vmem:[%s0 + $0x890] sm:$0xff]
  %v289 = vld [vmem:[%s0 + $0x898] sm:$0xff]
  %v290 = vld [vmem:[%s0 + $0x8a0] sm:$0xff]
  %v291 = vld [vmem:[%s0 + $0x8a8] sm:$0xff]
  %v292 = vld [vmem:[%s0 + $0x8b0] sm:$0xff]
  %v293 = vld [vmem:[%s0 + $0x8b8] sm:$0xff]
  %v294 = vld [vmem:[%s0 + $0x8c0] sm:$0xff]
  %v295 = vld [vmem:[%s0 + $0x8c8] sm:$0xff]
  %v296 = vld [vmem:[%s0 + $0x8d0] sm:$0xff]
  %v297 = vld [vmem:[%s0 + $0x8d8] sm:$0xff]
  %v298 = vld [vmem:[%s0 + $0x8e0] sm:$0xff]
  %v299 = vld [vmem:[%s0 + $0x8e8] sm:$0xff]
  %v300 = vld [vmem:[%s0 + $0x8f0] sm:$0xff]
  %v301 = vld [vmem:[%s0 + $0x8f8] sm:$0xff]
  %v302 = vld [vmem:[%s1] sm:$0xff]
  %v303 = vld [vmem:[%s1 + $0x8] sm:$0xff]
  %v304 = vld [vmem:[%s1 + $0x10] sm:$0xff]
  %v305 = vld [vmem:[%s1 + $0x18] sm:$0xff]
  %v306 = vld [vmem:[%s1 + $0x20] sm:$0xff]
  %v307 = vld [vmem:[%s1 + $0x28] sm:$0xff]
  %v308 = vld [vmem:[%s1 + $0x30] sm:$0xff]
  %v309 = vld [vmem:[%s1 + $0x38] sm:$0xff]
  %v310 = vld [vmem:[%s1 + $0x40] sm:$0xff]
  %v311 = vld [vmem:[%s1 + $0x48] sm:$0xff]
  %v312 = vld [vmem:[%s1 + $0x50] sm:$0xff]
  %v313 = vld [vmem:[%s1 + $0x58] sm:$0xff]
  %v314 = vld [vmem:[%s1 + $0x60] sm:$0xff]
  %v315 = vld [vmem:[%s1 + $0x68] sm:$0xff]
  %v316 = vld [vmem:[%s1 + $0x70] sm:$0xff]
  %v317 = vld [vmem:[%s1 + $0x78] sm:$0xff]
  %v318 = vld [vmem:[%s1 + $0x80] sm:$0xff]
  %v319 = vld [vmem:[%s1 + $0x88] sm:$0xff]
  %v320 = vld [vmem:[%s1 + $0x90] sm:$0xff]
  %v321 = vld [vmem:[%s1 + $0x98] sm:$0xff]
  %v322 = vld [vmem:[%s1 + $0xa0] sm:$0xff]
  %v323 = vld [vmem:[%s1 + $0xa8] sm:$0xff]
  %v324 = vld [vmem:[%s1 + $0xb0] sm:$0xff]
  %v325 = vld [vmem:[%s1 + $0xb8] sm:$0xff]
  %v326 = vld [vmem:[%s1 + $0xc0] sm:$0xff]
  %v327 = vld [vmem:[%s1 + $0xc8] sm:$0xff]
  %v328 = vld [vmem:[%s1 + $0xd0] sm:$0xff]
  %v329 = vld [vmem:[%s1 + $0xd8] sm:$0xff]
  %v330 = vld [vmem:[%s1 + $0xe0] sm:$0xff]
  %v331 = vld [vmem:[%s1 + $0xe8] sm:$0xff]
  %v332 = vld [vmem:[%s1 + $0xf0] sm:$0xff]
  %v333 = vld [vmem:[%s1 + $0xf8] sm:$0xff]
  %v334 = vld [vmem:[%s1 + $0x100] sm:$0xff]
  %v335 = vld [vmem:[%s1 + $0x108] sm:$0xff]
  %v336 = vld [vmem:[%s1 + $0x110] sm:$0xff]
  %v337 = vld [vmem:[%s1 + $0x118] sm:$0xff]
  %v338 = vld [vmem:[%s1 + $0x120] sm:$0xff]
  %v339 = vld [vmem:[%s1 + $0x128] sm:$0xff]
  %v340 = vld [vmem:[%s1 + $0x130] sm:$0xff]
  %v341 = vld [vmem:[%s1 + $0x138] sm:$0xff]
  %v342 = vld [vmem:[%s1 + $0x140] sm:$0xff]
  %v343 = vld [vmem:[%s1 + $0x148] sm:$0xff]
  %v344 = vld [vmem:[%s1 + $0x150] sm:$0xff]
  %v345 = vld [vmem:[%s1 + $0x158] sm:$0xff]
  %v346 = vld [vmem:[%s1 + $0x160] sm:$0xff]
  %v347 = vld [vmem:[%s1 + $0x168] sm:$0xff]
  %v348 = vld [vmem:[%s1 + $0x170] sm:$0xff]
  %v349 = vld [vmem:[%s1 + $0x178] sm:$0xff]
  %v350 = vld [vmem:[%s1 + $0x180] sm:$0xff]
  %v351 = vld [vmem:[%s1 + $0x188] sm:$0xff]
  %v352 = vld [vmem:[%s1 + $0x190] sm:$0xff]
  %v353 = vld [vmem:[%s1 + $0x198] sm:$0xff]
  %v354 = vld [vmem:[%s1 + $0x1a0] sm:$0xff]
  %v355 = vld [vmem:[%s1 + $0x1a8] sm:$0xff]
  %v356 = vld [vmem:[%s1 + $0x1b0] sm:$0xff]
  %v357 = vld [vmem:[%s1 + $0x1b8] sm:$0xff]
  %v358 = vld [vmem:[%s1 + $0x1c0] sm:$0xff]
  %v359 = vld [vmem:[%s1 + $0x1c8] sm:$0xff]
  %v360 = vld [vmem:[%s1 + $0x1d0] sm:$0xff]
  %v361 = vld [vmem:[%s1 + $0x1d8] sm:$0xff]
  %v362 = vld [vmem:[%s1 + $0x1e0] sm:$0xff]
  %v363 = vld [vmem:[%s1 + $0x1e8] sm:$0xff]
  %v364 = vld [vmem:[%s1 + $0x1f0] sm:$0xff]
  %v365 = vld [vmem:[%s1 + $0x1f8] sm:$0xff]
  %v366 = vld [vmem:[%s1 + $0x200] sm:$0xff]
  %v367 = vld [vmem:[%s1 + $0x208] sm:$0xff]
  %v368 = vld [vmem:[%s1 + $0x210] sm:$0xff]
  %v369 = vld [vmem:[%s1 + $0x218] sm:$0xff]
  %v370 = vld [vmem:[%s1 + $0x220] sm:$0xff]
  %v371 = vld [vmem:[%s1 + $0x228] sm:$0xff]
  %v372 = vld [vmem:[%s1 + $0x230] sm:$0xff]
  %v373 = vld [vmem:[%s1 + $0x238] sm:$0xff]
  %v374 = vld [vmem:[%s1 + $0x240] sm:$0xff]
  %v375 = vld [vmem:[%s1 + $0x248] sm:$0xff]
  %v376 = vld [vmem:[%s1 + $0x250] sm:$0xff]
  %v377 = vld [vmem:[%s1 + $0x258] sm:$0xff]
  %v378 = vld [vmem:[%s1 + $0x260] sm:$0xff]
  %v379 = vld [vmem:[%s1 + $0x268] sm:$0xff]
  %v380 = vld [vmem:[%s1 + $0x270] sm:$0xff]
  %v381 = vld [vmem:[%s1 + $0x278] sm:$0xff]
  %v382 = vld [vmem:[%s1 + $0x280] sm:$0xff]
  %v383 = vld [vmem:[%s1 + $0x288] sm:$0xff]
  %v384 = vld [vmem:[%s1 + $0x290] sm:$0xff]
  %v385 = vld [vmem:[%s1 + $0x298] sm:$0xff]
  %v386 = vld [vmem:[%s1 + $0x2a0] sm:$0xff]
  %v387 = vld [vmem:[%s1 + $0x2a8] sm:$0xff]
  %v388 = vld [vmem:[%s1 + $0x2b0] sm:$0xff]
  %v389 = vld [vmem:[%s1 + $0x2b8] sm:$0xff]
  %v390 = vld [vmem:[%s1 + $0x2c0] sm:$0xff]
  %v391 = vld [vmem:[%s1 + $0x2c8] sm:$0xff]
  %v392 = vld [vmem:[%s1 + $0x2d0] sm:$0xff]
  %v393 = vld [vmem:[%s1 + $0x2d8] sm:$0xff]
  %v394 = vld [vmem:[%s1 + $0x2e0] sm:$0xff]
  %v395 = vld [vmem:[%s1 + $0x2e8] sm:$0xff]
  %v396 = vld [vmem:[%s1 + $0x2f0] sm:$0xff]
  %v397 = vld [vmem:[%s1 + $0x2f8] sm:$0xff]
  %v398 = vld [vmem:[%s1 + $0x300] sm:$0xff]
  %v399 = vld [vmem:[%s1 + $0x308] sm:$0xff]
  %v400 = vld [vmem:[%s1 + $0x310] sm:$0xff]
  %v401 = vld [vmem:[%s1 + $0x318] sm:$0xff]
  %v402 = vld [vmem:[%s1 + $0x320] sm:$0xff]
  %v403 = vld [vmem:[%s1 + $0x328] sm:$0xff]
  %v404 = vld [vmem:[%s1 + $0x330] sm:$0xff]
  %v405 = vld [vmem:[%s1 + $0x338] sm:$0xff]
  %v406 = vld [vmem:[%s1 + $0x340] sm:$0xff]
  %v407 = vld [vmem:[%s1 + $0x348] sm:$0xff]
  %v408 = vld [vmem:[%s1 + $0x350] sm:$0xff]
  %v409 = vld [vmem:[%s1 + $0x358] sm:$0xff]
  %v410 = vld [vmem:[%s1 + $0x360] sm:$0xff]
  %v411 = vld [vmem:[%s1 + $0x368] sm:$0xff]
  %v412 = vld [vmem:[%s1 + $0x370] sm:$0xff]
  %v413 = vld [vmem:[%s1 + $0x378] sm:$0xff]
  %v414 = vld [vmem:[%s1 + $0x380] sm:$0xff]
  %v415 = vld [vmem:[%s1 + $0x388] sm:$0xff]
  %v416 = vld [vmem:[%s1 + $0x390] sm:$0xff]
  %v417 = vld [vmem:[%s1 + $0x398] sm:$0xff]
  %v418 = vld [vmem:[%s1 + $0x3a0] sm:$0xff]
  %v419 = vld [vmem:[%s1 + $0x3a8] sm:$0xff]
  %v420 = vld [vmem:[%s1 + $0x3b0] sm:$0xff]
  %v421 = vld [vmem:[%s1 + $0x3b8] sm:$0xff]
  %v422 = vld [vmem:[%s1 + $0x3c0] sm:$0xff]
  %v423 = vld [vmem:[%s1 + $0x3c8] sm:$0xff]
  %v424 = vld [vmem:[%s1 + $0x3d0] sm:$0xff]
  %v425 = vld [vmem:[%s1 + $0x3d8] sm:$0xff]
  %v426 = vld [vmem:[%s1 + $0x3e0] sm:$0xff]
  %v427 = vld [vmem:[%s1 + $0x3e8] sm:$0xff]
  %v428 = vld [vmem:[%s1 + $0x3f0] sm:$0xff]
  %v429 = vld [vmem:[%s1 + $0x3f8] sm:$0xff]
  %v430 = vld [vmem:[%s1 + $0x400] sm:$0xff]
  %v431 = vld [vmem:[%s1 + $0x408] sm:$0xff]
  %v432 = vld [vmem:[%s1 + $0x410] sm:$0xff]
  %v433 = vld [vmem:[%s1 + $0x418] sm:$0xff]
  %v434 = vld [vmem:[%s1 + $0x420] sm:$0xff]
  %v435 = vld [vmem:[%s1 + $0x428] sm:$0xff]
  %v436 = vld [vmem:[%s1 + $0x430] sm:$0xff]
  %v437 = vld [vmem:[%s1 + $0x438] sm:$0xff]
  %v438 = vld [vmem:[%s1 + $0x440] sm:$0xff]
  %v439 = vld [vmem:[%s1 + $0x448] sm:$0xff]
  %v440 = vld [vmem:[%s1 + $0x450] sm:$0xff]
  %v441 = vld [vmem:[%s1 + $0x458] sm:$0xff]
  %v442 = vld [vmem:[%s1 + $0x460] sm:$0xff]
  %v443 = vld [vmem:[%s1 + $0x468] sm:$0xff]
  %v444 = vld [vmem:[%s1 + $0x470] sm:$0xff]
  %v445 = vld [vmem:[%s1 + $0x478] sm:$0xff]
  %v446 = vpack.c.bf16 %v23, %v14
  %v447 = vpack.c.bf16 %v24, %v15
  %v448 = vpack.c.bf16 %v25, %v16
  %v449 = vpack.c.bf16 %v26, %v17
  %v450 = vpack.c.bf16 %v27, %v18
  %v451 = vpack.c.bf16 %v28, %v19
  %v452 = vpack.c.bf16 %v29, %v20
  %v453 = vpack.c.bf16 %v30, %v21
  %v454 = vpack.c.bf16 %v31, %v22
  %v455 = vpack.c.bf16 %v41, %v32
  %v456 = vpack.c.bf16 %v42, %v33
  %v457 = vpack.c.bf16 %v43, %v34
  %v458 = vpack.c.bf16 %v44, %v35
  %v459 = vpack.c.bf16 %v45, %v36
  %v460 = vpack.c.bf16 %v46, %v37
  %v461 = vpack.c.bf16 %v47, %v38
  %v462 = vpack.c.bf16 %v48, %v39
  %v463 = vpack.c.bf16 %v49, %v40
  %v464 = vpack.c.bf16 %v59, %v50
  %v465 = vpack.c.bf16 %v60, %v51
  %v466 = vpack.c.bf16 %v61, %v52
  %v467 = vpack.c.bf16 %v62, %v53
  %v468 = vpack.c.bf16 %v63, %v54
  %v469 = vpack.c.bf16 %v64, %v55
  %v470 = vpack.c.bf16 %v65, %v56
  %v471 = vpack.c.bf16 %v66, %v57
  %v472 = vpack.c.bf16 %v67, %v58
  %v473 = vpack.c.bf16 %v77, %v68
  %v474 = vpack.c.bf16 %v78, %v69
  %v475 = vpack.c.bf16 %v79, %v70
  %v476 = vpack.c.bf16 %v80, %v71
  %v477 = vpack.c.bf16 %v81, %v72
  %v478 = vpack.c.bf16 %v82, %v73
  %v479 = vpack.c.bf16 %v83, %v74
  %v480 = vpack.c.bf16 %v84, %v75
  %v481 = vpack.c.bf16 %v85, %v76
  %v482 = vpack.c.bf16 %v95, %v86
  %v483 = vpack.c.bf16 %v96, %v87
  %v484 = vpack.c.bf16 %v97, %v88
  %v485 = vpack.c.bf16 %v98, %v89
  %v486 = vpack.c.bf16 %v99, %v90
  %v487 = vpack.c.bf16 %v100, %v91
  %v488 = vpack.c.bf16 %v101, %v92
  %v489 = vpack.c.bf16 %v102, %v93
  %v490 = vpack.c.bf16 %v103, %v94
  %v491 = vpack.c.bf16 %v113, %v104
  %v492 = vpack.c.bf16 %v114, %v105
  %v493 = vpack.c.bf16 %v115, %v106
  %v494 = vpack.c.bf16 %v116, %v107
  %v495 = vpack.c.bf16 %v117, %v108
  %v496 = vpack.c.bf16 %v118, %v109
  %v497 = vpack.c.bf16 %v119, %v110
  %v498 = vpack.c.bf16 %v120, %v111
  %v499 = vpack.c.bf16 %v121, %v112
  %v500 = vpack.c.bf16 %v131, %v122
  %v501 = vpack.c.bf16 %v132, %v123
  %v502 = vpack.c.bf16 %v133, %v124
  %v503 = vpack.c.bf16 %v134, %v125
  %v504 = vpack.c.bf16 %v135, %v126
  %v505 = vpack.c.bf16 %v136, %v127
  %v506 = vpack.c.bf16 %v137, %v128
  %v507 = vpack.c.bf16 %v138, %v129
  %v508 = vpack.c.bf16 %v139, %v130
  %v509 = vpack.c.bf16 %v149, %v140
  %v510 = vpack.c.bf16 %v150, %v141
  %v511 = vpack.c.bf16 %v151, %v142
  %v512 = vpack.c.bf16 %v152, %v143
  %v513 = vpack.c.bf16 %v153, %v144
  %v514 = vpack.c.bf16 %v154, %v145
  %v515 = vpack.c.bf16 %v155, %v146
  %v516 = vpack.c.bf16 %v156, %v147
  %v517 = vpack.c.bf16 %v157, %v148
  %v518 = vpack.c.bf16 %v167, %v158
  %v519 = vpack.c.bf16 %v168, %v159
  %v520 = vpack.c.bf16 %v169, %v160
  %v521 = vpack.c.bf16 %v170, %v161
  %v522 = vpack.c.bf16 %v171, %v162
  %v523 = vpack.c.bf16 %v172, %v163
  %v524 = vpack.c.bf16 %v173, %v164
  %v525 = vpack.c.bf16 %v174, %v165
  %v526 = vpack.c.bf16 %v175, %v166
  %v527 = vpack.c.bf16 %v185, %v176
  %v528 = vpack.c.bf16 %v186, %v177
  %v529 = vpack.c.bf16 %v187, %v178
  %v530 = vpack.c.bf16 %v188, %v179
  %v531 = vpack.c.bf16 %v189, %v180
  %v532 = vpack.c.bf16 %v190, %v181
  %v533 = vpack.c.bf16 %v191, %v182
  %v534 = vpack.c.bf16 %v192, %v183
  %v535 = vpack.c.bf16 %v193, %v184
  %v536 = vpack.c.bf16 %v203, %v194
  %v537 = vpack.c.bf16 %v204, %v195
  %v538 = vpack.c.bf16 %v205, %v196
  %v539 = vpack.c.bf16 %v206, %v197
  %v540 = vpack.c.bf16 %v207, %v198
  %v541 = vpack.c.bf16 %v208, %v199
  %v542 = vpack.c.bf16 %v209, %v200
  %v543 = vpack.c.bf16 %v210, %v201
  %v544 = vpack.c.bf16 %v211, %v202
  %v545 = vpack.c.bf16 %v221, %v212
  %v546 = vpack.c.bf16 %v222, %v213
  %v547 = vpack.c.bf16 %v223, %v214
  %v548 = vpack.c.bf16 %v224, %v215
  %v549 = vpack.c.bf16 %v225, %v216
  %v550 = vpack.c.bf16 %v226, %v217
  %v551 = vpack.c.bf16 %v227, %v218
  %v552 = vpack.c.bf16 %v228, %v219
  %v553 = vpack.c.bf16 %v229, %v220
  %v554 = vpack.c.bf16 %v239, %v230
  %v555 = vpack.c.bf16 %v240, %v231
  %v556 = vpack.c.bf16 %v241, %v232
  %v557 = vpack.c.bf16 %v242, %v233
  %v558 = vpack.c.bf16 %v243, %v234
  %v559 = vpack.c.bf16 %v244, %v235
  %v560 = vpack.c.bf16 %v245, %v236
  %v561 = vpack.c.bf16 %v246, %v237
  %v562 = vpack.c.bf16 %v247, %v238
  %v563 = vpack.c.bf16 %v257, %v248
  %v564 = vpack.c.bf16 %v258, %v249
  %v565 = vpack.c.bf16 %v259, %v250
  %v566 = vpack.c.bf16 %v260, %v251
  %v567 = vpack.c.bf16 %v261, %v252
  %v568 = vpack.c.bf16 %v262, %v253
  %v569 = vpack.c.bf16 %v263, %v254
  %v570 = vpack.c.bf16 %v264, %v255
  %v571 = vpack.c.bf16 %v265, %v256
  %v572 = vpack.c.bf16 %v275, %v266
  %v573 = vpack.c.bf16 %v276, %v267
  %v574 = vpack.c.bf16 %v277, %v268
  %v575 = vpack.c.bf16 %v278, %v269
  %v576 = vpack.c.bf16 %v279, %v270
  %v577 = vpack.c.bf16 %v280, %v271
  %v578 = vpack.c.bf16 %v281, %v272
  %v579 = vpack.c.bf16 %v282, %v273
  %v580 = vpack.c.bf16 %v283, %v274
  %v581 = vpack.c.bf16 %v293, %v284
  %v582 = vpack.c.bf16 %v294, %v285
  %v583 = vpack.c.bf16 %v295, %v286
  %v584 = vpack.c.bf16 %v296, %v287
  %v585 = vpack.c.bf16 %v297, %v288
  %v586 = vpack.c.bf16 %v298, %v289
  %v587 = vpack.c.bf16 %v299, %v290
  %v588 = vpack.c.bf16 %v300, %v291
  %v589 = vpack.c.bf16 %v301, %v292
  %v590 = vpack.c.bf16 %v303, %v302
  %v591 = vpack.c.bf16 %v305, %v304
  %v592 = vpack.c.bf16 %v307, %v306
  %v593 = vpack.c.bf16 %v309, %v308
  %v594 = vpack.c.bf16 %v311, %v310
  %v595 = vpack.c.bf16 %v313, %v312
  %v596 = vpack.c.bf16 %v315, %v314
  %v597 = vpack.c.bf16 %v317, %v316
  %v598 = vpack.c.bf16 %v319, %v318
  %v599 = vpack.c.bf16 %v321, %v320
  %v600 = vpack.c.bf16 %v323, %v322
  %v601 = vpack.c.bf16 %v325, %v324
  %v602 = vpack.c.bf16 %v327, %v326
  %v603 = vpack.c.bf16 %v329, %v328
  %v604 = vpack.c.bf16 %v331, %v330
  %v605 = vpack.c.bf16 %v333, %v332
  %v606 = vpack.c.bf16 %v335, %v334
  %v607 = vpack.c.bf16 %v337, %v336
  %v608 = vpack.c.bf16 %v339, %v338
  %v609 = vpack.c.bf16 %v341, %v340
  %v610 = vpack.c.bf16 %v343, %v342
  %v611 = vpack.c.bf16 %v345, %v344
  %v612 = vpack.c.bf16 %v347, %v346
  %v613 = vpack.c.bf16 %v349, %v348
  %v614 = vpack.c.bf16 %v351, %v350
  %v615 = vpack.c.bf16 %v353, %v352
  %v616 = vpack.c.bf16 %v355, %v354
  %v617 = vpack.c.bf16 %v357, %v356
  %v618 = vpack.c.bf16 %v359, %v358
  %v619 = vpack.c.bf16 %v361, %v360
  %v620 = vpack.c.bf16 %v363, %v362
  %v621 = vpack.c.bf16 %v365, %v364
  %v622 = vpack.c.bf16 %v367, %v366
  %v623 = vpack.c.bf16 %v369, %v368
  %v624 = vpack.c.bf16 %v371, %v370
  %v625 = vpack.c.bf16 %v373, %v372
  %v626 = vpack.c.bf16 %v375, %v374
  %v627 = vpack.c.bf16 %v377, %v376
  %v628 = vpack.c.bf16 %v379, %v378
  %v629 = vpack.c.bf16 %v381, %v380
  %v630 = vpack.c.bf16 %v383, %v382
  %v631 = vpack.c.bf16 %v385, %v384
  %v632 = vpack.c.bf16 %v387, %v386
  %v633 = vpack.c.bf16 %v389, %v388
  %v634 = vpack.c.bf16 %v391, %v390
  %v635 = vpack.c.bf16 %v393, %v392
  %v636 = vpack.c.bf16 %v395, %v394
  %v637 = vpack.c.bf16 %v397, %v396
  %v638 = vpack.c.bf16 %v399, %v398
  %v639 = vpack.c.bf16 %v401, %v400
  %v640 = vpack.c.bf16 %v403, %v402
  %v641 = vpack.c.bf16 %v405, %v404
  %v642 = vpack.c.bf16 %v407, %v406
  %v643 = vpack.c.bf16 %v409, %v408
  %v644 = vpack.c.bf16 %v411, %v410
  %v645 = vpack.c.bf16 %v413, %v412
  %v646 = vpack.c.bf16 %v415, %v414
  %v647 = vpack.c.bf16 %v417, %v416
  %v648 = vpack.c.bf16 %v419, %v418
  %v649 = vpack.c.bf16 %v421, %v420
  %v650 = vpack.c.bf16 %v423, %v422
  %v651 = vpack.c.bf16 %v425, %v424
  %v652 = vpack.c.bf16 %v427, %v426
  %v653 = vpack.c.bf16 %v429, %v428
  %v654 = vpack.c.bf16 %v431, %v430
  %v655 = vpack.c.bf16 %v433, %v432
  %v656 = vpack.c.bf16 %v435, %v434
  %v657 = vpack.c.bf16 %v437, %v436
  %v658 = vpack.c.bf16 %v439, %v438
  %v659 = vpack.c.bf16 %v441, %v440
  %v660 = vpack.c.bf16 %v443, %v442
  %v661 = vpack.c.bf16 %v445, %v444
  %v662 = vld [vmem:[%s2] sm:$0x1]
  %v664 = vperm.slane %v662, 0
  %666 = vmatpush.bf16.msra.mxu0 %v597
  %667 = vmatpush.bf16.msra.mxu0 %v596
  %668 = vmatpush.bf16.msra.mxu0 %v595
  %669 = vmatpush.bf16.msra.mxu0 %v594
  %670 = vmatpush.bf16.msra.mxu0 %v593
  %671 = vmatpush.bf16.msra.mxu0 %v592
  %672 = vmatpush.bf16.msra.mxu0 %v591
  %673 = vmatpush.bf16.msra.mxu0 %v590
  %674 = vmatmul.bf16.gmra.mxu0 %v446
  %v675 = vpop.f32.mrf.mxu0
  %v676 = vadd.f32 %v664, %v675
  %v677 = vpop.f32.mrf.mxu0
  %v678 = vadd.f32 %v664, %v677
  %679 = vmatmul.bf16.gmra.mxu0 %v455
  %v680 = vpop.f32.mrf.mxu0
  %v681 = vadd.f32 %v664, %v680
  %v682 = vpop.f32.mrf.mxu0
  %v683 = vadd.f32 %v664, %v682
  %684 = vmatmul.bf16.gmra.mxu0 %v464
  %v685 = vpop.f32.mrf.mxu0
  %v686 = vadd.f32 %v664, %v685
  %v687 = vpop.f32.mrf.mxu0
  %v688 = vadd.f32 %v664, %v687
  %689 = vmatmul.bf16.gmra.mxu0 %v473
  %v690 = vpop.f32.mrf.mxu0
  %v691 = vadd.f32 %v664, %v690
  %v692 = vpop.f32.mrf.mxu0
  %v693 = vadd.f32 %v664, %v692
  %694 = vmatmul.bf16.gmra.mxu0 %v482
  %v695 = vpop.f32.mrf.mxu0
  %v696 = vadd.f32 %v664, %v695
  %v697 = vpop.f32.mrf.mxu0
  %v698 = vadd.f32 %v664, %v697
  %699 = vmatmul.bf16.gmra.mxu0 %v491
  %v700 = vpop.f32.mrf.mxu0
  %v701 = vadd.f32 %v664, %v700
  %v702 = vpop.f32.mrf.mxu0
  %v703 = vadd.f32 %v664, %v702
  %704 = vmatmul.bf16.gmra.mxu0 %v500
  %v705 = vpop.f32.mrf.mxu0
  %v706 = vadd.f32 %v664, %v705
  %v707 = vpop.f32.mrf.mxu0
  %v708 = vadd.f32 %v664, %v707
  %709 = vmatmul.bf16.gmra.mxu0 %v509
  %v710 = vpop.f32.mrf.mxu0
  %v711 = vadd.f32 %v664, %v710
  %v712 = vpop.f32.mrf.mxu0
  %v713 = vadd.f32 %v664, %v712
  %714 = vmatmul.bf16.gmra.mxu0 %v518
  %v715 = vpop.f32.mrf.mxu0
  %v716 = vadd.f32 %v664, %v715
  %v717 = vpop.f32.mrf.mxu0
  %v718 = vadd.f32 %v664, %v717
  %719 = vmatmul.bf16.gmra.mxu0 %v527
  %v720 = vpop.f32.mrf.mxu0
  %v721 = vadd.f32 %v664, %v720
  %v722 = vpop.f32.mrf.mxu0
  %v723 = vadd.f32 %v664, %v722
  %724 = vmatmul.bf16.gmra.mxu0 %v536
  %v725 = vpop.f32.mrf.mxu0
  %v726 = vadd.f32 %v664, %v725
  %v727 = vpop.f32.mrf.mxu0
  %v728 = vadd.f32 %v664, %v727
  %729 = vmatmul.bf16.gmra.mxu0 %v545
  %v730 = vpop.f32.mrf.mxu0
  %v731 = vadd.f32 %v664, %v730
  %v732 = vpop.f32.mrf.mxu0
  %v733 = vadd.f32 %v664, %v732
  %734 = vmatmul.bf16.gmra.mxu0 %v554
  %v735 = vpop.f32.mrf.mxu0
  %v736 = vadd.f32 %v664, %v735
  %v737 = vpop.f32.mrf.mxu0
  %v738 = vadd.f32 %v664, %v737
  %739 = vmatmul.bf16.gmra.mxu0 %v563
  %v740 = vpop.f32.mrf.mxu0
  %v741 = vadd.f32 %v664, %v740
  %v742 = vpop.f32.mrf.mxu0
  %v743 = vadd.f32 %v664, %v742
  %744 = vmatmul.bf16.gmra.mxu0 %v572
  %v745 = vpop.f32.mrf.mxu0
  %v746 = vadd.f32 %v664, %v745
  %v747 = vpop.f32.mrf.mxu0
  %v748 = vadd.f32 %v664, %v747
  %749 = vmatmul.bf16.gmra.mxu0 %v581
  %v750 = vpop.f32.mrf.mxu0
  %v751 = vadd.f32 %v664, %v750
  %v752 = vpop.f32.mrf.mxu0
  %v753 = vadd.f32 %v664, %v752
  %754 = vdwg.mxu0
  %755 = vmatpush.bf16.msra.mxu0 %v605
  %756 = vmatpush.bf16.msra.mxu0 %v604
  %757 = vmatpush.bf16.msra.mxu0 %v603
  %758 = vmatpush.bf16.msra.mxu0 %v602
  %759 = vmatpush.bf16.msra.mxu0 %v601
  %760 = vmatpush.bf16.msra.mxu0 %v600
  %761 = vmatpush.bf16.msra.mxu0 %v599
  %762 = vmatpush.bf16.msra.mxu0 %v598
  %763 = vmatmul.bf16.gmra.mxu0 %v447
  %v764 = vpop.f32.mrf.mxu0
  %v765 = vadd.f32 %v676, %v764
  %v766 = vpop.f32.mrf.mxu0
  %v767 = vadd.f32 %v678, %v766
  %768 = vmatmul.bf16.gmra.mxu0 %v456
  %v769 = vpop.f32.mrf.mxu0
  %v770 = vadd.f32 %v681, %v769
  %v771 = vpop.f32.mrf.mxu0
  %v772 = vadd.f32 %v683, %v771
  %773 = vmatmul.bf16.gmra.mxu0 %v465
  %v774 = vpop.f32.mrf.mxu0
  %v775 = vadd.f32 %v686, %v774
  %v776 = vpop.f32.mrf.mxu0
  %v777 = vadd.f32 %v688, %v776
  %778 = vmatmul.bf16.gmra.mxu0 %v474
  %v779 = vpop.f32.mrf.mxu0
  %v780 = vadd.f32 %v691, %v779
  %v781 = vpop.f32.mrf.mxu0
  %v782 = vadd.f32 %v693, %v781
  %783 = vmatmul.bf16.gmra.mxu0 %v483
  %v784 = vpop.f32.mrf.mxu0
  %v785 = vadd.f32 %v696, %v784
  %v786 = vpop.f32.mrf.mxu0
  %v787 = vadd.f32 %v698, %v786
  %788 = vmatmul.bf16.gmra.mxu0 %v492
  %v789 = vpop.f32.mrf.mxu0
  %v790 = vadd.f32 %v701, %v789
  %v791 = vpop.f32.mrf.mxu0
  %v792 = vadd.f32 %v703, %v791
  %793 = vmatmul.bf16.gmra.mxu0 %v501
  %v794 = vpop.f32.mrf.mxu0
  %v795 = vadd.f32 %v706, %v794
  %v796 = vpop.f32.mrf.mxu0
  %v797 = vadd.f32 %v708, %v796
  %798 = vmatmul.bf16.gmra.mxu0 %v510
  %v799 = vpop.f32.mrf.mxu0
  %v800 = vadd.f32 %v711, %v799
  %v801 = vpop.f32.mrf.mxu0
  %v802 = vadd.f32 %v713, %v801
  %803 = vmatmul.bf16.gmra.mxu0 %v519
  %v804 = vpop.f32.mrf.mxu0
  %v805 = vadd.f32 %v716, %v804
  %v806 = vpop.f32.mrf.mxu0
  %v807 = vadd.f32 %v718, %v806
  %808 = vmatmul.bf16.gmra.mxu0 %v528
  %v809 = vpop.f32.mrf.mxu0
  %v810 = vadd.f32 %v721, %v809
  %v811 = vpop.f32.mrf.mxu0
  %v812 = vadd.f32 %v723, %v811
  %813 = vmatmul.bf16.gmra.mxu0 %v537
  %v814 = vpop.f32.mrf.mxu0
  %v815 = vadd.f32 %v726, %v814
  %v816 = vpop.f32.mrf.mxu0
  %v817 = vadd.f32 %v728, %v816
  %818 = vmatmul.bf16.gmra.mxu0 %v546
  %v819 = vpop.f32.mrf.mxu0
  %v820 = vadd.f32 %v731, %v819
  %v821 = vpop.f32.mrf.mxu0
  %v822 = vadd.f32 %v733, %v821
  %823 = vmatmul.bf16.gmra.mxu0 %v555
  %v824 = vpop.f32.mrf.mxu0
  %v825 = vadd.f32 %v736, %v824
  %v826 = vpop.f32.mrf.mxu0
  %v827 = vadd.f32 %v738, %v826
  %828 = vmatmul.bf16.gmra.mxu0 %v564
  %v829 = vpop.f32.mrf.mxu0
  %v830 = vadd.f32 %v741, %v829
  %v831 = vpop.f32.mrf.mxu0
  %v832 = vadd.f32 %v743, %v831
  %833 = vmatmul.bf16.gmra.mxu0 %v573
  %v834 = vpop.f32.mrf.mxu0
  %v835 = vadd.f32 %v746, %v834
  %v836 = vpop.f32.mrf.mxu0
  %v837 = vadd.f32 %v748, %v836
  %838 = vmatmul.bf16.gmra.mxu0 %v582
  %v839 = vpop.f32.mrf.mxu0
  %v840 = vadd.f32 %v751, %v839
  %v841 = vpop.f32.mrf.mxu0
  %v842 = vadd.f32 %v753, %v841
  %843 = vdwg.mxu0
  %844 = vmatpush.bf16.msra.mxu0 %v613
  %845 = vmatpush.bf16.msra.mxu0 %v612
  %846 = vmatpush.bf16.msra.mxu0 %v611
  %847 = vmatpush.bf16.msra.mxu0 %v610
  %848 = vmatpush.bf16.msra.mxu0 %v609
  %849 = vmatpush.bf16.msra.mxu0 %v608
  %850 = vmatpush.bf16.msra.mxu0 %v607
  %851 = vmatpush.bf16.msra.mxu0 %v606
  %852 = vmatmul.bf16.gmra.mxu0 %v448
  %v853 = vpop.f32.mrf.mxu0
  %v854 = vadd.f32 %v765, %v853
  %v855 = vpop.f32.mrf.mxu0
  %v856 = vadd.f32 %v767, %v855
  %857 = vmatmul.bf16.gmra.mxu0 %v457
  %v858 = vpop.f32.mrf.mxu0
  %v859 = vadd.f32 %v770, %v858
  %v860 = vpop.f32.mrf.mxu0
  %v861 = vadd.f32 %v772, %v860
  %862 = vmatmul.bf16.gmra.mxu0 %v466
  %v863 = vpop.f32.mrf.mxu0
  %v864 = vadd.f32 %v775, %v863
  %v865 = vpop.f32.mrf.mxu0
  %v866 = vadd.f32 %v777, %v865
  %867 = vmatmul.bf16.gmra.mxu0 %v475
  %v868 = vpop.f32.mrf.mxu0
  %v869 = vadd.f32 %v780, %v868
  %v870 = vpop.f32.mrf.mxu0
  %v871 = vadd.f32 %v782, %v870
  %872 = vmatmul.bf16.gmra.mxu0 %v484
  %v873 = vpop.f32.mrf.mxu0
  %v874 = vadd.f32 %v785, %v873
  %v875 = vpop.f32.mrf.mxu0
  %v876 = vadd.f32 %v787, %v875
  %877 = vmatmul.bf16.gmra.mxu0 %v493
  %v878 = vpop.f32.mrf.mxu0
  %v879 = vadd.f32 %v790, %v878
  %v880 = vpop.f32.mrf.mxu0
  %v881 = vadd.f32 %v792, %v880
  %882 = vmatmul.bf16.gmra.mxu0 %v502
  %v883 = vpop.f32.mrf.mxu0
  %v884 = vadd.f32 %v795, %v883
  %v885 = vpop.f32.mrf.mxu0
  %v886 = vadd.f32 %v797, %v885
  %887 = vmatmul.bf16.gmra.mxu0 %v511
  %v888 = vpop.f32.mrf.mxu0
  %v889 = vadd.f32 %v800, %v888
  %v890 = vpop.f32.mrf.mxu0
  %v891 = vadd.f32 %v802, %v890
  %892 = vmatmul.bf16.gmra.mxu0 %v520
  %v893 = vpop.f32.mrf.mxu0
  %v894 = vadd.f32 %v805, %v893
  %v895 = vpop.f32.mrf.mxu0
  %v896 = vadd.f32 %v807, %v895
  %897 = vmatmul.bf16.gmra.mxu0 %v529
  %v898 = vpop.f32.mrf.mxu0
  %v899 = vadd.f32 %v810, %v898
  %v900 = vpop.f32.mrf.mxu0
  %v901 = vadd.f32 %v812, %v900
  %902 = vmatmul.bf16.gmra.mxu0 %v538
  %v903 = vpop.f32.mrf.mxu0
  %v904 = vadd.f32 %v815, %v903
  %v905 = vpop.f32.mrf.mxu0
  %v906 = vadd.f32 %v817, %v905
  %907 = vmatmul.bf16.gmra.mxu0 %v547
  %v908 = vpop.f32.mrf.mxu0
  %v909 = vadd.f32 %v820, %v908
  %v910 = vpop.f32.mrf.mxu0
  %v911 = vadd.f32 %v822, %v910
  %912 = vmatmul.bf16.gmra.mxu0 %v556
  %v913 = vpop.f32.mrf.mxu0
  %v914 = vadd.f32 %v825, %v913
  %v915 = vpop.f32.mrf.mxu0
  %v916 = vadd.f32 %v827, %v915
  %917 = vmatmul.bf16.gmra.mxu0 %v565
  %v918 = vpop.f32.mrf.mxu0
  %v919 = vadd.f32 %v830, %v918
  %v920 = vpop.f32.mrf.mxu0
  %v921 = vadd.f32 %v832, %v920
  %922 = vmatmul.bf16.gmra.mxu0 %v574
  %v923 = vpop.f32.mrf.mxu0
  %v924 = vadd.f32 %v835, %v923
  %v925 = vpop.f32.mrf.mxu0
  %v926 = vadd.f32 %v837, %v925
  %927 = vmatmul.bf16.gmra.mxu0 %v583
  %v928 = vpop.f32.mrf.mxu0
  %v929 = vadd.f32 %v840, %v928
  %v930 = vpop.f32.mrf.mxu0
  %v931 = vadd.f32 %v842, %v930
  %932 = vdwg.mxu0
  %933 = vmatpush.bf16.msra.mxu0 %v621
  %934 = vmatpush.bf16.msra.mxu0 %v620
  %935 = vmatpush.bf16.msra.mxu0 %v619
  %936 = vmatpush.bf16.msra.mxu0 %v618
  %937 = vmatpush.bf16.msra.mxu0 %v617
  %938 = vmatpush.bf16.msra.mxu0 %v616
  %939 = vmatpush.bf16.msra.mxu0 %v615
  %940 = vmatpush.bf16.msra.mxu0 %v614
  %941 = vmatmul.bf16.gmra.mxu0 %v449
  %v942 = vpop.f32.mrf.mxu0
  %v943 = vadd.f32 %v854, %v942
  %v944 = vpop.f32.mrf.mxu0
  %v945 = vadd.f32 %v856, %v944
  %946 = vmatmul.bf16.gmra.mxu0 %v458
  %v947 = vpop.f32.mrf.mxu0
  %v948 = vadd.f32 %v859, %v947
  %v949 = vpop.f32.mrf.mxu0
  %v950 = vadd.f32 %v861, %v949
  %951 = vmatmul.bf16.gmra.mxu0 %v467
  %v952 = vpop.f32.mrf.mxu0
  %v953 = vadd.f32 %v864, %v952
  %v954 = vpop.f32.mrf.mxu0
  %v955 = vadd.f32 %v866, %v954
  %956 = vmatmul.bf16.gmra.mxu0 %v476
  %v957 = vpop.f32.mrf.mxu0
  %v958 = vadd.f32 %v869, %v957
  %v959 = vpop.f32.mrf.mxu0
  %v960 = vadd.f32 %v871, %v959
  %961 = vmatmul.bf16.gmra.mxu0 %v485
  %v962 = vpop.f32.mrf.mxu0
  %v963 = vadd.f32 %v874, %v962
  %v964 = vpop.f32.mrf.mxu0
  %v965 = vadd.f32 %v876, %v964
  %966 = vmatmul.bf16.gmra.mxu0 %v494
  %v967 = vpop.f32.mrf.mxu0
  %v968 = vadd.f32 %v879, %v967
  %v969 = vpop.f32.mrf.mxu0
  %v970 = vadd.f32 %v881, %v969
  %971 = vmatmul.bf16.gmra.mxu0 %v503
  %v972 = vpop.f32.mrf.mxu0
  %v973 = vadd.f32 %v884, %v972
  %v974 = vpop.f32.mrf.mxu0
  %v975 = vadd.f32 %v886, %v974
  %976 = vmatmul.bf16.gmra.mxu0 %v512
  %v977 = vpop.f32.mrf.mxu0
  %v978 = vadd.f32 %v889, %v977
  %v979 = vpop.f32.mrf.mxu0
  %v980 = vadd.f32 %v891, %v979
  %981 = vmatmul.bf16.gmra.mxu0 %v521
  %v982 = vpop.f32.mrf.mxu0
  %v983 = vadd.f32 %v894, %v982
  %v984 = vpop.f32.mrf.mxu0
  %v985 = vadd.f32 %v896, %v984
  %986 = vmatmul.bf16.gmra.mxu0 %v530
  %v987 = vpop.f32.mrf.mxu0
  %v988 = vadd.f32 %v899, %v987
  %v989 = vpop.f32.mrf.mxu0
  %v990 = vadd.f32 %v901, %v989
  %991 = vmatmul.bf16.gmra.mxu0 %v539
  %v992 = vpop.f32.mrf.mxu0
  %v993 = vadd.f32 %v904, %v992
  %v994 = vpop.f32.mrf.mxu0
  %v995 = vadd.f32 %v906, %v994
  %996 = vmatmul.bf16.gmra.mxu0 %v548
  %v997 = vpop.f32.mrf.mxu0
  %v998 = vadd.f32 %v909, %v997
  %v999 = vpop.f32.mrf.mxu0
  %v1000 = vadd.f32 %v911, %v999
  %1001 = vmatmul.bf16.gmra.mxu0 %v557
  %v1002 = vpop.f32.mrf.mxu0
  %v1003 = vadd.f32 %v914, %v1002
  %v1004 = vpop.f32.mrf.mxu0
  %v1005 = vadd.f32 %v916, %v1004
  %1006 = vmatmul.bf16.gmra.mxu0 %v566
  %v1007 = vpop.f32.mrf.mxu0
  %v1008 = vadd.f32 %v919, %v1007
  %v1009 = vpop.f32.mrf.mxu0
  %v1010 = vadd.f32 %v921, %v1009
  %1011 = vmatmul.bf16.gmra.mxu0 %v575
  %v1012 = vpop.f32.mrf.mxu0
  %v1013 = vadd.f32 %v924, %v1012
  %v1014 = vpop.f32.mrf.mxu0
  %v1015 = vadd.f32 %v926, %v1014
  %1016 = vmatmul.bf16.gmra.mxu0 %v584
  %v1017 = vpop.f32.mrf.mxu0
  %v1018 = vadd.f32 %v929, %v1017
  %v1019 = vpop.f32.mrf.mxu0
  %v1020 = vadd.f32 %v931, %v1019
  %1021 = vdwg.mxu0
  %1022 = vmatpush.bf16.msra.mxu0 %v629
  %1023 = vmatpush.bf16.msra.mxu0 %v628
  %1024 = vmatpush.bf16.msra.mxu0 %v627
  %1025 = vmatpush.bf16.msra.mxu0 %v626
  %1026 = vmatpush.bf16.msra.mxu0 %v625
  %1027 = vmatpush.bf16.msra.mxu0 %v624
  %1028 = vmatpush.bf16.msra.mxu0 %v623
  %1029 = vmatpush.bf16.msra.mxu0 %v622
  %1030 = vmatmul.bf16.gmra.mxu0 %v450
  %v1031 = vpop.f32.mrf.mxu0
  %v1032 = vadd.f32 %v943, %v1031
  %v1033 = vpop.f32.mrf.mxu0
  %v1034 = vadd.f32 %v945, %v1033
  %1035 = vmatmul.bf16.gmra.mxu0 %v459
  %v1036 = vpop.f32.mrf.mxu0
  %v1037 = vadd.f32 %v948, %v1036
  %v1038 = vpop.f32.mrf.mxu0
  %v1039 = vadd.f32 %v950, %v1038
  %1040 = vmatmul.bf16.gmra.mxu0 %v468
  %v1041 = vpop.f32.mrf.mxu0
  %v1042 = vadd.f32 %v953, %v1041
  %v1043 = vpop.f32.mrf.mxu0
  %v1044 = vadd.f32 %v955, %v1043
  %1045 = vmatmul.bf16.gmra.mxu0 %v477
  %v1046 = vpop.f32.mrf.mxu0
  %v1047 = vadd.f32 %v958, %v1046
  %v1048 = vpop.f32.mrf.mxu0
  %v1049 = vadd.f32 %v960, %v1048
  %1050 = vmatmul.bf16.gmra.mxu0 %v486
  %v1051 = vpop.f32.mrf.mxu0
  %v1052 = vadd.f32 %v963, %v1051
  %v1053 = vpop.f32.mrf.mxu0
  %v1054 = vadd.f32 %v965, %v1053
  %1055 = vmatmul.bf16.gmra.mxu0 %v495
  %v1056 = vpop.f32.mrf.mxu0
  %v1057 = vadd.f32 %v968, %v1056
  %v1058 = vpop.f32.mrf.mxu0
  %v1059 = vadd.f32 %v970, %v1058
  %1060 = vmatmul.bf16.gmra.mxu0 %v504
  %v1061 = vpop.f32.mrf.mxu0
  %v1062 = vadd.f32 %v973, %v1061
  %v1063 = vpop.f32.mrf.mxu0
  %v1064 = vadd.f32 %v975, %v1063
  %1065 = vmatmul.bf16.gmra.mxu0 %v513
  %v1066 = vpop.f32.mrf.mxu0
  %v1067 = vadd.f32 %v978, %v1066
  %v1068 = vpop.f32.mrf.mxu0
  %v1069 = vadd.f32 %v980, %v1068
  %1070 = vmatmul.bf16.gmra.mxu0 %v522
  %v1071 = vpop.f32.mrf.mxu0
  %v1072 = vadd.f32 %v983, %v1071
  %v1073 = vpop.f32.mrf.mxu0
  %v1074 = vadd.f32 %v985, %v1073
  %1075 = vmatmul.bf16.gmra.mxu0 %v531
  %v1076 = vpop.f32.mrf.mxu0
  %v1077 = vadd.f32 %v988, %v1076
  %v1078 = vpop.f32.mrf.mxu0
  %v1079 = vadd.f32 %v990, %v1078
  %1080 = vmatmul.bf16.gmra.mxu0 %v540
  %v1081 = vpop.f32.mrf.mxu0
  %v1082 = vadd.f32 %v993, %v1081
  %v1083 = vpop.f32.mrf.mxu0
  %v1084 = vadd.f32 %v995, %v1083
  %1085 = vmatmul.bf16.gmra.mxu0 %v549
  %v1086 = vpop.f32.mrf.mxu0
  %v1087 = vadd.f32 %v998, %v1086
  %v1088 = vpop.f32.mrf.mxu0
  %v1089 = vadd.f32 %v1000, %v1088
  %1090 = vmatmul.bf16.gmra.mxu0 %v558
  %v1091 = vpop.f32.mrf.mxu0
  %v1092 = vadd.f32 %v1003, %v1091
  %v1093 = vpop.f32.mrf.mxu0
  %v1094 = vadd.f32 %v1005, %v1093
  %1095 = vmatmul.bf16.gmra.mxu0 %v567
  %v1096 = vpop.f32.mrf.mxu0
  %v1097 = vadd.f32 %v1008, %v1096
  %v1098 = vpop.f32.mrf.mxu0
  %v1099 = vadd.f32 %v1010, %v1098
  %1100 = vmatmul.bf16.gmra.mxu0 %v576
  %v1101 = vpop.f32.mrf.mxu0
  %v1102 = vadd.f32 %v1013, %v1101
  %v1103 = vpop.f32.mrf.mxu0
  %v1104 = vadd.f32 %v1015, %v1103
  %1105 = vmatmul.bf16.gmra.mxu0 %v585
  %v1106 = vpop.f32.mrf.mxu0
  %v1107 = vadd.f32 %v1018, %v1106
  %v1108 = vpop.f32.mrf.mxu0
  %v1109 = vadd.f32 %v1020, %v1108
  %1110 = vdwg.mxu0
  %1111 = vmatpush.bf16.msra.mxu0 %v637
  %1112 = vmatpush.bf16.msra.mxu0 %v636
  %1113 = vmatpush.bf16.msra.mxu0 %v635
  %1114 = vmatpush.bf16.msra.mxu0 %v634
  %1115 = vmatpush.bf16.msra.mxu0 %v633
  %1116 = vmatpush.bf16.msra.mxu0 %v632
  %1117 = vmatpush.bf16.msra.mxu0 %v631
  %1118 = vmatpush.bf16.msra.mxu0 %v630
  %1119 = vmatmul.bf16.gmra.mxu0 %v451
  %v1120 = vpop.f32.mrf.mxu0
  %v1121 = vadd.f32 %v1032, %v1120
  %v1122 = vpop.f32.mrf.mxu0
  %v1123 = vadd.f32 %v1034, %v1122
  %1124 = vmatmul.bf16.gmra.mxu0 %v460
  %v1125 = vpop.f32.mrf.mxu0
  %v1126 = vadd.f32 %v1037, %v1125
  %v1127 = vpop.f32.mrf.mxu0
  %v1128 = vadd.f32 %v1039, %v1127
  %1129 = vmatmul.bf16.gmra.mxu0 %v469
  %v1130 = vpop.f32.mrf.mxu0
  %v1131 = vadd.f32 %v1042, %v1130
  %v1132 = vpop.f32.mrf.mxu0
  %v1133 = vadd.f32 %v1044, %v1132
  %1134 = vmatmul.bf16.gmra.mxu0 %v478
  %v1135 = vpop.f32.mrf.mxu0
  %v1136 = vadd.f32 %v1047, %v1135
  %v1137 = vpop.f32.mrf.mxu0
  %v1138 = vadd.f32 %v1049, %v1137
  %1139 = vmatmul.bf16.gmra.mxu0 %v487
  %v1140 = vpop.f32.mrf.mxu0
  %v1141 = vadd.f32 %v1052, %v1140
  %v1142 = vpop.f32.mrf.mxu0
  %v1143 = vadd.f32 %v1054, %v1142
  %1144 = vmatmul.bf16.gmra.mxu0 %v496
  %v1145 = vpop.f32.mrf.mxu0
  %v1146 = vadd.f32 %v1057, %v1145
  %v1147 = vpop.f32.mrf.mxu0
  %v1148 = vadd.f32 %v1059, %v1147
  %1149 = vmatmul.bf16.gmra.mxu0 %v505
  %v1150 = vpop.f32.mrf.mxu0
  %v1151 = vadd.f32 %v1062, %v1150
  %v1152 = vpop.f32.mrf.mxu0
  %v1153 = vadd.f32 %v1064, %v1152
  %1154 = vmatmul.bf16.gmra.mxu0 %v514
  %v1155 = vpop.f32.mrf.mxu0
  %v1156 = vadd.f32 %v1067, %v1155
  %v1157 = vpop.f32.mrf.mxu0
  %v1158 = vadd.f32 %v1069, %v1157
  %1159 = vmatmul.bf16.gmra.mxu0 %v523
  %v1160 = vpop.f32.mrf.mxu0
  %v1161 = vadd.f32 %v1072, %v1160
  %v1162 = vpop.f32.mrf.mxu0
  %v1163 = vadd.f32 %v1074, %v1162
  %1164 = vmatmul.bf16.gmra.mxu0 %v532
  %v1165 = vpop.f32.mrf.mxu0
  %v1166 = vadd.f32 %v1077, %v1165
  %v1167 = vpop.f32.mrf.mxu0
  %v1168 = vadd.f32 %v1079, %v1167
  %1169 = vmatmul.bf16.gmra.mxu0 %v541
  %v1170 = vpop.f32.mrf.mxu0
  %v1171 = vadd.f32 %v1082, %v1170
  %v1172 = vpop.f32.mrf.mxu0
  %v1173 = vadd.f32 %v1084, %v1172
  %1174 = vmatmul.bf16.gmra.mxu0 %v550
  %v1175 = vpop.f32.mrf.mxu0
  %v1176 = vadd.f32 %v1087, %v1175
  %v1177 = vpop.f32.mrf.mxu0
  %v1178 = vadd.f32 %v1089, %v1177
  %1179 = vmatmul.bf16.gmra.mxu0 %v559
  %v1180 = vpop.f32.mrf.mxu0
  %v1181 = vadd.f32 %v1092, %v1180
  %v1182 = vpop.f32.mrf.mxu0
  %v1183 = vadd.f32 %v1094, %v1182
  %1184 = vmatmul.bf16.gmra.mxu0 %v568
  %v1185 = vpop.f32.mrf.mxu0
  %v1186 = vadd.f32 %v1097, %v1185
  %v1187 = vpop.f32.mrf.mxu0
  %v1188 = vadd.f32 %v1099, %v1187
  %1189 = vmatmul.bf16.gmra.mxu0 %v577
  %v1190 = vpop.f32.mrf.mxu0
  %v1191 = vadd.f32 %v1102, %v1190
  %v1192 = vpop.f32.mrf.mxu0
  %v1193 = vadd.f32 %v1104, %v1192
  %1194 = vmatmul.bf16.gmra.mxu0 %v586
  %v1195 = vpop.f32.mrf.mxu0
  %v1196 = vadd.f32 %v1107, %v1195
  %v1197 = vpop.f32.mrf.mxu0
  %v1198 = vadd.f32 %v1109, %v1197
  %1199 = vdwg.mxu0
  %1200 = vmatpush.bf16.msra.mxu0 %v645
  %1201 = vmatpush.bf16.msra.mxu0 %v644
  %1202 = vmatpush.bf16.msra.mxu0 %v643
  %1203 = vmatpush.bf16.msra.mxu0 %v642
  %1204 = vmatpush.bf16.msra.mxu0 %v641
  %1205 = vmatpush.bf16.msra.mxu0 %v640
  %1206 = vmatpush.bf16.msra.mxu0 %v639
  %1207 = vmatpush.bf16.msra.mxu0 %v638
  %1208 = vmatmul.bf16.gmra.mxu0 %v452
  %v1209 = vpop.f32.mrf.mxu0
  %v1210 = vadd.f32 %v1121, %v1209
  %v1211 = vpop.f32.mrf.mxu0
  %v1212 = vadd.f32 %v1123, %v1211
  %1213 = vmatmul.bf16.gmra.mxu0 %v461
  %v1214 = vpop.f32.mrf.mxu0
  %v1215 = vadd.f32 %v1126, %v1214
  %v1216 = vpop.f32.mrf.mxu0
  %v1217 = vadd.f32 %v1128, %v1216
  %1218 = vmatmul.bf16.gmra.mxu0 %v470
  %v1219 = vpop.f32.mrf.mxu0
  %v1220 = vadd.f32 %v1131, %v1219
  %v1221 = vpop.f32.mrf.mxu0
  %v1222 = vadd.f32 %v1133, %v1221
  %1223 = vmatmul.bf16.gmra.mxu0 %v479
  %v1224 = vpop.f32.mrf.mxu0
  %v1225 = vadd.f32 %v1136, %v1224
  %v1226 = vpop.f32.mrf.mxu0
  %v1227 = vadd.f32 %v1138, %v1226
  %1228 = vmatmul.bf16.gmra.mxu0 %v488
  %v1229 = vpop.f32.mrf.mxu0
  %v1230 = vadd.f32 %v1141, %v1229
  %v1231 = vpop.f32.mrf.mxu0
  %v1232 = vadd.f32 %v1143, %v1231
  %1233 = vmatmul.bf16.gmra.mxu0 %v497
  %v1234 = vpop.f32.mrf.mxu0
  %v1235 = vadd.f32 %v1146, %v1234
  %v1236 = vpop.f32.mrf.mxu0
  %v1237 = vadd.f32 %v1148, %v1236
  %1238 = vmatmul.bf16.gmra.mxu0 %v506
  %v1239 = vpop.f32.mrf.mxu0
  %v1240 = vadd.f32 %v1151, %v1239
  %v1241 = vpop.f32.mrf.mxu0
  %v1242 = vadd.f32 %v1153, %v1241
  %1243 = vmatmul.bf16.gmra.mxu0 %v515
  %v1244 = vpop.f32.mrf.mxu0
  %v1245 = vadd.f32 %v1156, %v1244
  %v1246 = vpop.f32.mrf.mxu0
  %v1247 = vadd.f32 %v1158, %v1246
  %1248 = vmatmul.bf16.gmra.mxu0 %v524
  %v1249 = vpop.f32.mrf.mxu0
  %v1250 = vadd.f32 %v1161, %v1249
  %v1251 = vpop.f32.mrf.mxu0
  %v1252 = vadd.f32 %v1163, %v1251
  %1253 = vmatmul.bf16.gmra.mxu0 %v533
  %v1254 = vpop.f32.mrf.mxu0
  %v1255 = vadd.f32 %v1166, %v1254
  %v1256 = vpop.f32.mrf.mxu0
  %v1257 = vadd.f32 %v1168, %v1256
  %1258 = vmatmul.bf16.gmra.mxu0 %v542
  %v1259 = vpop.f32.mrf.mxu0
  %v1260 = vadd.f32 %v1171, %v1259
  %v1261 = vpop.f32.mrf.mxu0
  %v1262 = vadd.f32 %v1173, %v1261
  %1263 = vmatmul.bf16.gmra.mxu0 %v551
  %v1264 = vpop.f32.mrf.mxu0
  %v1265 = vadd.f32 %v1176, %v1264
  %v1266 = vpop.f32.mrf.mxu0
  %v1267 = vadd.f32 %v1178, %v1266
  %1268 = vmatmul.bf16.gmra.mxu0 %v560
  %v1269 = vpop.f32.mrf.mxu0
  %v1270 = vadd.f32 %v1181, %v1269
  %v1271 = vpop.f32.mrf.mxu0
  %v1272 = vadd.f32 %v1183, %v1271
  %1273 = vmatmul.bf16.gmra.mxu0 %v569
  %v1274 = vpop.f32.mrf.mxu0
  %v1275 = vadd.f32 %v1186, %v1274
  %v1276 = vpop.f32.mrf.mxu0
  %v1277 = vadd.f32 %v1188, %v1276
  %1278 = vmatmul.bf16.gmra.mxu0 %v578
  %v1279 = vpop.f32.mrf.mxu0
  %v1280 = vadd.f32 %v1191, %v1279
  %v1281 = vpop.f32.mrf.mxu0
  %v1282 = vadd.f32 %v1193, %v1281
  %1283 = vmatmul.bf16.gmra.mxu0 %v587
  %v1284 = vpop.f32.mrf.mxu0
  %v1285 = vadd.f32 %v1196, %v1284
  %v1286 = vpop.f32.mrf.mxu0
  %v1287 = vadd.f32 %v1198, %v1286
  %1288 = vdwg.mxu0
  %1289 = vmatpush.bf16.msra.mxu0 %v653
  %1290 = vmatpush.bf16.msra.mxu0 %v652
  %1291 = vmatpush.bf16.msra.mxu0 %v651
  %1292 = vmatpush.bf16.msra.mxu0 %v650
  %1293 = vmatpush.bf16.msra.mxu0 %v649
  %1294 = vmatpush.bf16.msra.mxu0 %v648
  %1295 = vmatpush.bf16.msra.mxu0 %v647
  %1296 = vmatpush.bf16.msra.mxu0 %v646
  %1297 = vmatmul.bf16.gmra.mxu0 %v453
  %v1298 = vpop.f32.mrf.mxu0
  %v1299 = vadd.f32 %v1210, %v1298
  %v1300 = vpop.f32.mrf.mxu0
  %v1301 = vadd.f32 %v1212, %v1300
  %1302 = vmatmul.bf16.gmra.mxu0 %v462
  %v1303 = vpop.f32.mrf.mxu0
  %v1304 = vadd.f32 %v1215, %v1303
  %v1305 = vpop.f32.mrf.mxu0
  %v1306 = vadd.f32 %v1217, %v1305
  %1307 = vmatmul.bf16.gmra.mxu0 %v471
  %v1308 = vpop.f32.mrf.mxu0
  %v1309 = vadd.f32 %v1220, %v1308
  %v1310 = vpop.f32.mrf.mxu0
  %v1311 = vadd.f32 %v1222, %v1310
  %1312 = vmatmul.bf16.gmra.mxu0 %v480
  %v1313 = vpop.f32.mrf.mxu0
  %v1314 = vadd.f32 %v1225, %v1313
  %v1315 = vpop.f32.mrf.mxu0
  %v1316 = vadd.f32 %v1227, %v1315
  %1317 = vmatmul.bf16.gmra.mxu0 %v489
  %v1318 = vpop.f32.mrf.mxu0
  %v1319 = vadd.f32 %v1230, %v1318
  %v1320 = vpop.f32.mrf.mxu0
  %v1321 = vadd.f32 %v1232, %v1320
  %1322 = vmatmul.bf16.gmra.mxu0 %v498
  %v1323 = vpop.f32.mrf.mxu0
  %v1324 = vadd.f32 %v1235, %v1323
  %v1325 = vpop.f32.mrf.mxu0
  %v1326 = vadd.f32 %v1237, %v1325
  %1327 = vmatmul.bf16.gmra.mxu0 %v507
  %v1328 = vpop.f32.mrf.mxu0
  %v1329 = vadd.f32 %v1240, %v1328
  %v1330 = vpop.f32.mrf.mxu0
  %v1331 = vadd.f32 %v1242, %v1330
  %1332 = vmatmul.bf16.gmra.mxu0 %v516
  %v1333 = vpop.f32.mrf.mxu0
  %v1334 = vadd.f32 %v1245, %v1333
  %v1335 = vpop.f32.mrf.mxu0
  %v1336 = vadd.f32 %v1247, %v1335
  %1337 = vmatmul.bf16.gmra.mxu0 %v525
  %v1338 = vpop.f32.mrf.mxu0
  %v1339 = vadd.f32 %v1250, %v1338
  %v1340 = vpop.f32.mrf.mxu0
  %v1341 = vadd.f32 %v1252, %v1340
  %1342 = vmatmul.bf16.gmra.mxu0 %v534
  %v1343 = vpop.f32.mrf.mxu0
  %v1344 = vadd.f32 %v1255, %v1343
  %v1345 = vpop.f32.mrf.mxu0
  %v1346 = vadd.f32 %v1257, %v1345
  %1347 = vmatmul.bf16.gmra.mxu0 %v543
  %v1348 = vpop.f32.mrf.mxu0
  %v1349 = vadd.f32 %v1260, %v1348
  %v1350 = vpop.f32.mrf.mxu0
  %v1351 = vadd.f32 %v1262, %v1350
  %1352 = vmatmul.bf16.gmra.mxu0 %v552
  %v1353 = vpop.f32.mrf.mxu0
  %v1354 = vadd.f32 %v1265, %v1353
  %v1355 = vpop.f32.mrf.mxu0
  %v1356 = vadd.f32 %v1267, %v1355
  %1357 = vmatmul.bf16.gmra.mxu0 %v561
  %v1358 = vpop.f32.mrf.mxu0
  %v1359 = vadd.f32 %v1270, %v1358
  %v1360 = vpop.f32.mrf.mxu0
  %v1361 = vadd.f32 %v1272, %v1360
  %1362 = vmatmul.bf16.gmra.mxu0 %v570
  %v1363 = vpop.f32.mrf.mxu0
  %v1364 = vadd.f32 %v1275, %v1363
  %v1365 = vpop.f32.mrf.mxu0
  %v1366 = vadd.f32 %v1277, %v1365
  %1367 = vmatmul.bf16.gmra.mxu0 %v579
  %v1368 = vpop.f32.mrf.mxu0
  %v1369 = vadd.f32 %v1280, %v1368
  %v1370 = vpop.f32.mrf.mxu0
  %v1371 = vadd.f32 %v1282, %v1370
  %1372 = vmatmul.bf16.gmra.mxu0 %v588
  %v1373 = vpop.f32.mrf.mxu0
  %v1374 = vadd.f32 %v1285, %v1373
  %v1375 = vpop.f32.mrf.mxu0
  %v1376 = vadd.f32 %v1287, %v1375
  %1377 = vdwg.mxu0
  %1378 = vmatpush.bf16.msra.mxu0 %v661
  %1379 = vmatpush.bf16.msra.mxu0 %v660
  %1380 = vmatpush.bf16.msra.mxu0 %v659
  %1381 = vmatpush.bf16.msra.mxu0 %v658
  %1382 = vmatpush.bf16.msra.mxu0 %v657
  %1383 = vmatpush.bf16.msra.mxu0 %v656
  %1384 = vmatpush.bf16.msra.mxu0 %v655
  %1385 = vmatpush.bf16.msra.mxu0 %v654
  %1386 = vmatmul.bf16.gmra.mxu0 %v454
  %v1387 = vpop.f32.mrf.mxu0
  %v1388 = vadd.f32 %v1299, %v1387
  %v1389 = vpop.f32.mrf.mxu0
  %v1390 = vadd.f32 %v1301, %v1389
  %1391 = vmatmul.bf16.gmra.mxu0 %v463
  %v1392 = vpop.f32.mrf.mxu0
  %v1393 = vadd.f32 %v1304, %v1392
  %v1394 = vpop.f32.mrf.mxu0
  %v1395 = vadd.f32 %v1306, %v1394
  %1396 = vmatmul.bf16.gmra.mxu0 %v472
  %v1397 = vpop.f32.mrf.mxu0
  %v1398 = vadd.f32 %v1309, %v1397
  %v1399 = vpop.f32.mrf.mxu0
  %v1400 = vadd.f32 %v1311, %v1399
  %1401 = vmatmul.bf16.gmra.mxu0 %v481
  %v1402 = vpop.f32.mrf.mxu0
  %v1403 = vadd.f32 %v1314, %v1402
  %v1404 = vpop.f32.mrf.mxu0
  %v1405 = vadd.f32 %v1316, %v1404
  %1406 = vmatmul.bf16.gmra.mxu0 %v490
  %v1407 = vpop.f32.mrf.mxu0
  %v1408 = vadd.f32 %v1319, %v1407
  %v1409 = vpop.f32.mrf.mxu0
  %v1410 = vadd.f32 %v1321, %v1409
  %1411 = vmatmul.bf16.gmra.mxu0 %v499
  %v1412 = vpop.f32.mrf.mxu0
  %v1413 = vadd.f32 %v1324, %v1412
  %v1414 = vpop.f32.mrf.mxu0
  %v1415 = vadd.f32 %v1326, %v1414
  %1416 = vmatmul.bf16.gmra.mxu0 %v508
  %v1417 = vpop.f32.mrf.mxu0
  %v1418 = vadd.f32 %v1329, %v1417
  %v1419 = vpop.f32.mrf.mxu0
  %v1420 = vadd.f32 %v1331, %v1419
  %1421 = vmatmul.bf16.gmra.mxu0 %v517
  %v1422 = vpop.f32.mrf.mxu0
  %v1423 = vadd.f32 %v1334, %v1422
  %v1424 = vpop.f32.mrf.mxu0
  %v1425 = vadd.f32 %v1336, %v1424
  %1426 = vmatmul.bf16.gmra.mxu0 %v526
  %v1427 = vpop.f32.mrf.mxu0
  %v1428 = vadd.f32 %v1339, %v1427
  %v1429 = vpop.f32.mrf.mxu0
  %v1430 = vadd.f32 %v1341, %v1429
  %1431 = vmatmul.bf16.gmra.mxu0 %v535
  %v1432 = vpop.f32.mrf.mxu0
  %v1433 = vadd.f32 %v1344, %v1432
  %v1434 = vpop.f32.mrf.mxu0
  %v1435 = vadd.f32 %v1346, %v1434
  %1436 = vmatmul.bf16.gmra.mxu0 %v544
  %v1437 = vpop.f32.mrf.mxu0
  %v1438 = vadd.f32 %v1349, %v1437
  %v1439 = vpop.f32.mrf.mxu0
  %v1440 = vadd.f32 %v1351, %v1439
  %1441 = vmatmul.bf16.gmra.mxu0 %v553
  %v1442 = vpop.f32.mrf.mxu0
  %v1443 = vadd.f32 %v1354, %v1442
  %v1444 = vpop.f32.mrf.mxu0
  %v1445 = vadd.f32 %v1356, %v1444
  %1446 = vmatmul.bf16.gmra.mxu0 %v562
  %v1447 = vpop.f32.mrf.mxu0
  %v1448 = vadd.f32 %v1359, %v1447
  %v1449 = vpop.f32.mrf.mxu0
  %v1450 = vadd.f32 %v1361, %v1449
  %1451 = vmatmul.bf16.gmra.mxu0 %v571
  %v1452 = vpop.f32.mrf.mxu0
  %v1453 = vadd.f32 %v1364, %v1452
  %v1454 = vpop.f32.mrf.mxu0
  %v1455 = vadd.f32 %v1366, %v1454
  %1456 = vmatmul.bf16.gmra.mxu0 %v580
  %v1457 = vpop.f32.mrf.mxu0
  %v1458 = vadd.f32 %v1369, %v1457
  %v1459 = vpop.f32.mrf.mxu0
  %v1460 = vadd.f32 %v1371, %v1459
  %1461 = vmatmul.bf16.gmra.mxu0 %v589
  %v1462 = vpop.f32.mrf.mxu0
  %v1463 = vadd.f32 %v1374, %v1462
  %v1464 = vpop.f32.mrf.mxu0
  %v1465 = vadd.f32 %v1376, %v1464
  %1466 = vdwg.mxu0
  %v1467 = vmax.f32 %v1388, 0.0
  %v1468 = vmax.f32 %v1390, 0.0
  %v1469 = vmax.f32 %v1393, 0.0
  %v1470 = vmax.f32 %v1395, 0.0
  %v1471 = vmax.f32 %v1398, 0.0
  %v1472 = vmax.f32 %v1400, 0.0
  %v1473 = vmax.f32 %v1403, 0.0
  %v1474 = vmax.f32 %v1405, 0.0
  %v1475 = vmax.f32 %v1408, 0.0
  %v1476 = vmax.f32 %v1410, 0.0
  %v1477 = vmax.f32 %v1413, 0.0
  %v1478 = vmax.f32 %v1415, 0.0
  %v1479 = vmax.f32 %v1418, 0.0
  %v1480 = vmax.f32 %v1420, 0.0
  %v1481 = vmax.f32 %v1423, 0.0
  %v1482 = vmax.f32 %v1425, 0.0
  %v1483 = vmax.f32 %v1428, 0.0
  %v1484 = vmax.f32 %v1430, 0.0
  %v1485 = vmax.f32 %v1433, 0.0
  %v1486 = vmax.f32 %v1435, 0.0
  %v1487 = vmax.f32 %v1438, 0.0
  %v1488 = vmax.f32 %v1440, 0.0
  %v1489 = vmax.f32 %v1443, 0.0
  %v1490 = vmax.f32 %v1445, 0.0
  %v1491 = vmax.f32 %v1448, 0.0
  %v1492 = vmax.f32 %v1450, 0.0
  %v1493 = vmax.f32 %v1453, 0.0
  %v1494 = vmax.f32 %v1455, 0.0
  %v1495 = vmax.f32 %v1458, 0.0
  %v1496 = vmax.f32 %v1460, 0.0
  %v1497 = vmax.f32 %v1463, 0.0
  %v1498 = vmax.f32 %v1465, 0.0
  %1499 = vst [vmem:[%s3] sm:$0xff] %v1467
  %1500 = vst [vmem:[%s3 + $0x8] sm:$0xff] %v1468
  %1501 = vst [vmem:[%s3 + $0x10] sm:$0xff] %v1469
  %1502 = vst [vmem:[%s3 + $0x18] sm:$0xff] %v1470
  %1503 = vst [vmem:[%s3 + $0x20] sm:$0xff] %v1471
  %1504 = vst [vmem:[%s3 + $0x28] sm:$0xff] %v1472
  %1505 = vst [vmem:[%s3 + $0x30] sm:$0xff] %v1473
  %1506 = vst [vmem:[%s3 + $0x38] sm:$0xff] %v1474
  %1507 = vst [vmem:[%s3 + $0x40] sm:$0xff] %v1475
  %1508 = vst [vmem:[%s3 + $0x48] sm:$0xff] %v1476
  %1509 = vst [vmem:[%s3 + $0x50] sm:$0xff] %v1477
  %1510 = vst [vmem:[%s3 + $0x58] sm:$0xff] %v1478
  %1511 = vst [vmem:[%s3 + $0x60] sm:$0xff] %v1479
  %1512 = vst [vmem:[%s3 + $0x68] sm:$0xff] %v1480
  %1513 = vst [vmem:[%s3 + $0x70] sm:$0xff] %v1481
  %1514 = vst [vmem:[%s3 + $0x78] sm:$0xff] %v1482
  %1515 = vst [vmem:[%s3 + $0x80] sm:$0xff] %v1483
  %1516 = vst [vmem:[%s3 + $0x88] sm:$0xff] %v1484
  %1517 = vst [vmem:[%s3 + $0x90] sm:$0xff] %v1485
  %1518 = vst [vmem:[%s3 + $0x98] sm:$0xff] %v1486
  %1519 = vst [vmem:[%s3 + $0xa0] sm:$0xff] %v1487
  %1520 = vst [vmem:[%s3 + $0xa8] sm:$0xff] %v1488
  %1521 = vst [vmem:[%s3 + $0xb0] sm:$0xff] %v1489
  %1522 = vst [vmem:[%s3 + $0xb8] sm:$0xff] %v1490
  %1523 = vst [vmem:[%s3 + $0xc0] sm:$0xff] %v1491
  %1524 = vst [vmem:[%s3 + $0xc8] sm:$0xff] %v1492
  %1525 = vst [vmem:[%s3 + $0xd0] sm:$0xff] %v1493
  %1526 = vst [vmem:[%s3 + $0xd8] sm:$0xff] %v1494
  %1527 = vst [vmem:[%s3 + $0xe0] sm:$0xff] %v1495
  %1528 = vst [vmem:[%s3 + $0xe8] sm:$0xff] %v1496
  %1529 = vst [vmem:[%s3 + $0xf0] sm:$0xff] %v1497
  %1530 = vst [vmem:[%s3 + $0xf8] sm:$0xff] %v1498
  // Predicated region
  $region14: #{video_transformer_forward.4} parent=0 // pred_check
    _
  $region15: #{video_transformer_forward.4} parent=0 // pred_check_branch
    %1532 = sbr.rel (0) target = $region17
  $region16: #{video_transformer_forward.4} parent=0 // pred_region
    _
  $region17: #{video_transformer_forward.4} parent=0 // pred_fallthru
    _
  // Predicated region
  $region18: #{video_transformer_forward.4} parent=0 // pred_check
    _
  $region19: #{video_transformer_forward.4} parent=0 // pred_check_branch
    %1534 = sbr.rel (0) target = $region21
  $region20: #{video_transformer_forward.4} parent=0 // pred_region
    _
  $region21: #{video_transformer_forward.4} parent=0 // pred_fallthru
    _

// kernel: video_transformer_forward.5
$region0: #{video_transformer_forward.5}
  #allocation0 [shape = 'u32[]', space=smem, size = 0x4, offset = 0x4, fixed_abs, tag = 'smem constant byte address 0x4 - core index']
  #allocation1 [shape = 'u32[72,128]{1,0:T(1,128)}', space=vmem, size = 0x9000, scoped, tag = 'internal scratch']
  #allocation2 [shape = 'f32[8,32]{1,0:T(8,128)}', space=vmem, size = 0x1000, scoped, tag = 'scratch operand']
  %s0 = inlined_call_operand.vmem [shape: f32[2,8,128], index: 0, kind: input, shape index: {}]
  %s1 = inlined_call_operand.vmem [shape: f32[8,32], index: 1, kind: input, shape index: {}]
  %s2 = inlined_call_operand.vmem [shape: f32[128,32], index: 2, kind: input, shape index: {}]
  %s3 = inlined_call_operand.vmem [shape: f32[1,32], index: 3, kind: input, shape index: {}]
  %s4 = inlined_call_operand.vmem [shape: f32[2,32,96], index: 4, kind: input, shape index: {}]
  %s5 = inlined_call_operand.vmem [shape: f32[2,1,96], index: 5, kind: input, shape index: {}]
  %s6 = inlined_call_operand.vmem [shape: f32[2,32,32], index: 6, kind: input, shape index: {}]
  %s7 = inlined_call_operand.vmem [shape: f32[2,1,32], index: 7, kind: input, shape index: {}]
  %s8 = inlined_call_operand.vmem [shape: f32[2,1,32], index: 8, kind: input, shape index: {}]
  %s9 = inlined_call_operand.vmem [shape: f32[2,1,32], index: 9, kind: input, shape index: {}]
  %s10 = inlined_call_operand.vmem [shape: f32[2,32,64], index: 10, kind: input, shape index: {}]
  %s11 = inlined_call_operand.vmem [shape: f32[2,1,64], index: 11, kind: input, shape index: {}]
  %s12 = inlined_call_operand.vmem [shape: f32[2,64,32], index: 12, kind: input, shape index: {}]
  %s13 = inlined_call_operand.vmem [shape: f32[2,1,32], index: 13, kind: input, shape index: {}]
  %s14 = inlined_call_operand.vmem [shape: f32[2,1,32], index: 14, kind: input, shape index: {}]
  %s15 = inlined_call_operand.vmem [shape: f32[2,1,32], index: 15, kind: input, shape index: {}]
  %s16 = inlined_call_operand.vmem [shape: f32[32,128], index: 16, kind: input, shape index: {}]
  %s17 = inlined_call_operand.vmem [shape: f32[1,128], index: 17, kind: input, shape index: {}]
  %s18 = inlined_call_operand.hbm [shape: f32[2,8,128], index: 18, kind: output, shape index: {}]
  %s19 = sld [smem:[#allocation0]]
  $region113: #{video_transformer_forward.5} parent=0
    _
  %s21 = ssub.s32 1, %s19
  %s22 = scalar_select 0, %s21, %s19
  $region1: #{video_transformer_forward.5} parent=0
    #allocation3 [shape = 'u8[8192]{0}', space=vmem, size = 0x2000, scoped, tag = 'output window, operand 0']
    #allocation4 [shape = 's32[2]{0}', space=sflag, size = 0x8, scoped, tag = 'scoped memory for video_transformer_forward.5']
    %23 = vsyncpa [#allocation4], 0
    %s24 = scalar_lea.sflag [#allocation4], 1
    %25 = vsyncpa %s24, 0
    loop: start=0, step=1, limit=6
    $region2: #{video_transformer_forward.5} parent=1 // loop_pre_header
      _
    $region3: #{video_transformer_forward.5} parent=1 // loop_header
      %s27 = sphi 0, %s31
      %p28 = scmp.ge.s32.totalorder %s27, 6
      %s34 = sphi 0, %s46
      %s35 = sphi 0, %s42
      %s36 = sphi 0, %s34
      %s37 = sphi 0, %s35
      %s38 = sphi 0, %s36
      %s39 = sphi 0, %s37
      %s49 = sphi 0, %s51
      %s52 = sphi 0, %s49
      %s53 = sphi 0, %s52
      %s69 = sphi 0, %s53
      %s73 = sphi 0, %s73
      %s75 = sphi 0, %s73
      %s76 = sphi 0, %s75
      %s90 = sphi 0, %s76
      %s94 = sphi 0, %s94
      %s96 = sphi 0, %s94
      %s97 = sphi 0, %s96
      %s111 = sphi 0, %s97
      %s115 = sphi 0, %s115
      %s117 = sphi 0, %s115
      %s118 = sphi 0, %s117
      %s132 = sphi 0, %s118
      %s138 = sphi 0, %s140
      %s141 = sphi 0, %s138
      %s142 = sphi 0, %s141
      %s158 = sphi 0, %s142
      %s164 = sphi 0, %s166
      %s167 = sphi 0, %s164
      %s168 = sphi 0, %s167
      %s184 = sphi 0, %s168
      %s190 = sphi 0, %s192
      %s193 = sphi 0, %s190
      %s194 = sphi 0, %s193
      %s210 = sphi 0, %s194
      %s216 = sphi 0, %s218
      %s219 = sphi 0, %s216
      %s220 = sphi 0, %s219
      %s236 = sphi 0, %s220
      %s242 = sphi 0, %s244
      %s245 = sphi 0, %s242
      %s246 = sphi 0, %s245
      %s262 = sphi 0, %s246
      %s268 = sphi 0, %s270
      %s271 = sphi 0, %s268
      %s272 = sphi 0, %s271
      %s288 = sphi 0, %s272
      %s294 = sphi 0, %s296
      %s297 = sphi 0, %s294
      %s298 = sphi 0, %s297
      %s314 = sphi 0, %s298
      %s320 = sphi 0, %s322
      %s323 = sphi 0, %s320
      %s324 = sphi 0, %s323
      %s340 = sphi 0, %s324
      %s346 = sphi 0, %s348
      %s349 = sphi 0, %s346
      %s350 = sphi 0, %s349
      %s366 = sphi 0, %s350
      %s372 = sphi 0, %s374
      %s375 = sphi 0, %s372
      %s376 = sphi 0, %s375
      %s392 = sphi 0, %s376
      %s398 = sphi 0, %s400
      %s401 = sphi 0, %s398
      %s402 = sphi 0, %s401
      %s418 = sphi 0, %s402
      %s424 = sphi 0, %s426
      %s427 = sphi 0, %s424
      %s428 = sphi 0, %s427
      %s444 = sphi 0, %s428
      %s448 = sphi 0, %s448
      %s450 = sphi 0, %s448
      %s451 = sphi 0, %s450
      %s465 = sphi 0, %s451
      %s469 = sphi 0, %s469
      %s471 = sphi 0, %s469
      %s472 = sphi 0, %s471
      %s486 = sphi 0, %s472
      %s492 = sphi 0, %s494
      %s495 = sphi 0, %s492
      %s496 = sphi 0, %s495
      %s512 = sphi 0, %s496
    $region4: #{video_transformer_forward.5} parent=1 // loop_header_branch
      %30 = sbr.rel (%p28) target = $region8
    $region5: #{video_transformer_forward.5} parent=1 // loop_body
      %s32 = ssub.s32 %s27, 1
      %s33 = ssub.s32 %s27, 2
      %s40 = sadd.s32 1, %s35
      %p41 = scmp.ge.s32.totalorder %s40, 2
      %s42 = scalar_select %p41, 0, %s40
      %s43 = sadd.s32 1, %s34
      %s44 = scalar_select %p41, %s43, %s34
      %p45 = scmp.ge.s32.totalorder %s44, 2
      %s46 = scalar_select %p45, 0, %s44
      %s47 = ssub.s32 %s34, %s46
      %p48 = scmp.eq.s32.totalorder %s47, 0
      %s50 = sadd.s32 %s49, 1
      %s51 = scalar_select %p48, %s49, %s50
      %p54 = pneg %p48
      %p55 = scmp.eq.s32.totalorder %s27, 3
      %p56 = por %p54, %p55
      %p57 = scmp.ne.s32.totalorder %s49, %s52
      %p58 = scmp.eq.s32.totalorder %s27, 0
      %p59 = por %p57, %p58
      %p60 = scmp.ne.s32.totalorder %s49, %s52
      %p61 = scmp.eq.s32.totalorder %s32, 3
      %p62 = por %p60, %p61
      %p63 = scmp.ne.s32.totalorder %s52, %s53
      %p64 = scmp.eq.s32.totalorder %s32, 0
      %p65 = por %p63, %p64
      %p66 = scmp.ne.s32.totalorder %s52, %s53
      %p67 = scmp.eq.s32.totalorder %s33, 3
      %p68 = por %p66, %p67
      %p70 = scmp.ne.s32.totalorder %s53, %s69
      %p71 = scmp.eq.s32.totalorder %s33, 0
      %p72 = por %p70, %p71
      %s74 = sadd.s32 %s73, 1
      %p77 = scmp.eq.s32.totalorder %s27, 3
      %p78 = scmp.ne.s32.totalorder %s73, %s75
      %p79 = scmp.eq.s32.totalorder %s27, 0
      %p80 = por %p78, %p79
      %p81 = scmp.ne.s32.totalorder %s73, %s75
      %p82 = scmp.eq.s32.totalorder %s32, 3
      %p83 = por %p81, %p82
      %p84 = scmp.ne.s32.totalorder %s75, %s76
      %p85 = scmp.eq.s32.totalorder %s32, 0
      %p86 = por %p84, %p85
      %p87 = scmp.ne.s32.totalorder %s75, %s76
      %p88 = scmp.eq.s32.totalorder %s33, 3
      %p89 = por %p87, %p88
      %p91 = scmp.ne.s32.totalorder %s76, %s90
      %p92 = scmp.eq.s32.totalorder %s33, 0
      %p93 = por %p91, %p92
      %s95 = sadd.s32 %s94, 1
      %p98 = scmp.eq.s32.totalorder %s27, 3
      %p99 = scmp.ne.s32.totalorder %s94, %s96
      %p100 = scmp.eq.s32.totalorder %s27, 0
      %p101 = por %p99, %p100
      %p102 = scmp.ne.s32.totalorder %s94, %s96
      %p103 = scmp.eq.s32.totalorder %s32, 3
      %p104 = por %p102, %p103
      %p105 = scmp.ne.s32.totalorder %s96, %s97
      %p106 = scmp.eq.s32.totalorder %s32, 0
      %p107 = por %p105, %p106
      %p108 = scmp.ne.s32.totalorder %s96, %s97
      %p109 = scmp.eq.s32.totalorder %s33, 3
      %p110 = por %p108, %p109
      %p112 = scmp.ne.s32.totalorder %s97, %s111
      %p113 = scmp.eq.s32.totalorder %s33, 0
      %p114 = por %p112, %p113
      %s116 = sadd.s32 %s115, 1
      %p119 = scmp.eq.s32.totalorder %s27, 3
      %p120 = scmp.ne.s32.totalorder %s115, %s117
      %p121 = scmp.eq.s32.totalorder %s27, 0
      %p122 = por %p120, %p121
      %p123 = scmp.ne.s32.totalorder %s115, %s117
      %p124 = scmp.eq.s32.totalorder %s32, 3
      %p125 = por %p123, %p124
      %p126 = scmp.ne.s32.totalorder %s117, %s118
      %p127 = scmp.eq.s32.totalorder %s32, 0
      %p128 = por %p126, %p127
      %p129 = scmp.ne.s32.totalorder %s117, %s118
      %p130 = scmp.eq.s32.totalorder %s33, 3
      %p131 = por %p129, %p130
      %p133 = scmp.ne.s32.totalorder %s118, %s132
      %p134 = scmp.eq.s32.totalorder %s33, 0
      %p135 = por %p133, %p134
      %s136 = ssub.s32 %s35, %s42
      %p137 = scmp.eq.s32.totalorder %s136, 0
      %s139 = sadd.s32 %s138, 1
      %s140 = scalar_select %p137, %s138, %s139
      %p143 = pneg %p137
      %p144 = scmp.eq.s32.totalorder %s27, 3
      %p145 = por %p143, %p144
      %p146 = scmp.ne.s32.totalorder %s138, %s141
      %p147 = scmp.eq.s32.totalorder %s27, 0
      %p148 = por %p146, %p147
      %p149 = scmp.ne.s32.totalorder %s138, %s141
      %p150 = scmp.eq.s32.totalorder %s32, 3
      %p151 = por %p149, %p150
      %p152 = scmp.ne.s32.totalorder %s141, %s142
      %p153 = scmp.eq.s32.totalorder %s32, 0
      %p154 = por %p152, %p153
      %p155 = scmp.ne.s32.totalorder %s141, %s142
      %p156 = scmp.eq.s32.totalorder %s33, 3
      %p157 = por %p155, %p156
      %p159 = scmp.ne.s32.totalorder %s142, %s158
      %p160 = scmp.eq.s32.totalorder %s33, 0
      %p161 = por %p159, %p160
      %s162 = ssub.s32 %s35, %s42
      %p163 = scmp.eq.s32.totalorder %s162, 0
      %s165 = sadd.s32 %s164, 1
      %s166 = scalar_select %p163, %s164, %s165
      %p169 = pneg %p163
      %p170 = scmp.eq.s32.totalorder %s27, 3
      %p171 = por %p169, %p170
      %p172 = scmp.ne.s32.totalorder %s164, %s167
      %p173 = scmp.eq.s32.totalorder %s27, 0
      %p174 = por %p172, %p173
      %p175 = scmp.ne.s32.totalorder %s164, %s167
      %p176 = scmp.eq.s32.totalorder %s32, 3
      %p177 = por %p175, %p176
      %p178 = scmp.ne.s32.totalorder %s167, %s168
      %p179 = scmp.eq.s32.totalorder %s32, 0
      %p180 = por %p178, %p179
      %p181 = scmp.ne.s32.totalorder %s167, %s168
      %p182 = scmp.eq.s32.totalorder %s33, 3
      %p183 = por %p181, %p182
      %p185 = scmp.ne.s32.totalorder %s168, %s184
      %p186 = scmp.eq.s32.totalorder %s33, 0
      %p187 = por %p185, %p186
      %s188 = ssub.s32 %s35, %s42
      %p189 = scmp.eq.s32.totalorder %s188, 0
      %s191 = sadd.s32 %s190, 1
      %s192 = scalar_select %p189, %s190, %s191
      %p195 = pneg %p189
      %p196 = scmp.eq.s32.totalorder %s27, 3
      %p197 = por %p195, %p196
      %p198 = scmp.ne.s32.totalorder %s190, %s193
      %p199 = scmp.eq.s32.totalorder %s27, 0
      %p200 = por %p198, %p199
      %p201 = scmp.ne.s32.totalorder %s190, %s193
      %p202 = scmp.eq.s32.totalorder %s32, 3
      %p203 = por %p201, %p202
      %p204 = scmp.ne.s32.totalorder %s193, %s194
      %p205 = scmp.eq.s32.totalorder %s32, 0
      %p206 = por %p204, %p205
      %p207 = scmp.ne.s32.totalorder %s193, %s194
      %p208 = scmp.eq.s32.totalorder %s33, 3
      %p209 = por %p207, %p208
      %p211 = scmp.ne.s32.totalorder %s194, %s210
      %p212 = scmp.eq.s32.totalorder %s33, 0
      %p213 = por %p211, %p212
      %s214 = ssub.s32 %s35, %s42
      %p215 = scmp.eq.s32.totalorder %s214, 0
      %s217 = sadd.s32 %s216, 1
      %s218 = scalar_select %p215, %s216, %s217
      %p221 = pneg %p215
      %p222 = scmp.eq.s32.totalorder %s27, 3
      %p223 = por %p221, %p222
      %p224 = scmp.ne.s32.totalorder %s216, %s219
      %p225 = scmp.eq.s32.totalorder %s27, 0
      %p226 = por %p224, %p225
      %p227 = scmp.ne.s32.totalorder %s216, %s219
      %p228 = scmp.eq.s32.totalorder %s32, 3
      %p229 = por %p227, %p228
      %p230 = scmp.ne.s32.totalorder %s219, %s220
      %p231 = scmp.eq.s32.totalorder %s32, 0
      %p232 = por %p230, %p231
      %p233 = scmp.ne.s32.totalorder %s219, %s220
      %p234 = scmp.eq.s32.totalorder %s33, 3
      %p235 = por %p233, %p234
      %p237 = scmp.ne.s32.totalorder %s220, %s236
      %p238 = scmp.eq.s32.totalorder %s33, 0
      %p239 = por %p237, %p238
      %s240 = ssub.s32 %s35, %s42
      %p241 = scmp.eq.s32.totalorder %s240, 0
      %s243 = sadd.s32 %s242, 1
      %s244 = scalar_select %p241, %s242, %s243
      %p247 = pneg %p241
      %p248 = scmp.eq.s32.totalorder %s27, 3
      %p249 = por %p247, %p248
      %p250 = scmp.ne.s32.totalorder %s242, %s245
      %p251 = scmp.eq.s32.totalorder %s27, 0
      %p252 = por %p250, %p251
      %p253 = scmp.ne.s32.totalorder %s242, %s245
      %p254 = scmp.eq.s32.totalorder %s32, 3
      %p255 = por %p253, %p254
      %p256 = scmp.ne.s32.totalorder %s245, %s246
      %p257 = scmp.eq.s32.totalorder %s32, 0
      %p258 = por %p256, %p257
      %p259 = scmp.ne.s32.totalorder %s245, %s246
      %p260 = scmp.eq.s32.totalorder %s33, 3
      %p261 = por %p259, %p260
      %p263 = scmp.ne.s32.totalorder %s246, %s262
      %p264 = scmp.eq.s32.totalorder %s33, 0
      %p265 = por %p263, %p264
      %s266 = ssub.s32 %s35, %s42
      %p267 = scmp.eq.s32.totalorder %s266, 0
      %s269 = sadd.s32 %s268, 1
      %s270 = scalar_select %p267, %s268, %s269
      %p273 = pneg %p267
      %p274 = scmp.eq.s32.totalorder %s27, 3
      %p275 = por %p273, %p274
      %p276 = scmp.ne.s32.totalorder %s268, %s271
      %p277 = scmp.eq.s32.totalorder %s27, 0
      %p278 = por %p276, %p277
      %p279 = scmp.ne.s32.totalorder %s268, %s271
      %p280 = scmp.eq.s32.totalorder %s32, 3
      %p281 = por %p279, %p280
      %p282 = scmp.ne.s32.totalorder %s271, %s272
      %p283 = scmp.eq.s32.totalorder %s32, 0
      %p284 = por %p282, %p283
      %p285 = scmp.ne.s32.totalorder %s271, %s272
      %p286 = scmp.eq.s32.totalorder %s33, 3
      %p287 = por %p285, %p286
      %p289 = scmp.ne.s32.totalorder %s272, %s288
      %p290 = scmp.eq.s32.totalorder %s33, 0
      %p291 = por %p289, %p290
      %s292 = ssub.s32 %s35, %s42
      %p293 = scmp.eq.s32.totalorder %s292, 0
      %s295 = sadd.s32 %s294, 1
      %s296 = scalar_select %p293, %s294, %s295
      %p299 = pneg %p293
      %p300 = scmp.eq.s32.totalorder %s27, 3
      %p301 = por %p299, %p300
      %p302 = scmp.ne.s32.totalorder %s294, %s297
      %p303 = scmp.eq.s32.totalorder %s27, 0
      %p304 = por %p302, %p303
      %p305 = scmp.ne.s32.totalorder %s294, %s297
      %p306 = scmp.eq.s32.totalorder %s32, 3
      %p307 = por %p305, %p306
      %p308 = scmp.ne.s32.totalorder %s297, %s298
      %p309 = scmp.eq.s32.totalorder %s32, 0
      %p310 = por %p308, %p309
      %p311 = scmp.ne.s32.totalorder %s297, %s298
      %p312 = scmp.eq.s32.totalorder %s33, 3
      %p313 = por %p311, %p312
      %p315 = scmp.ne.s32.totalorder %s298, %s314
      %p316 = scmp.eq.s32.totalorder %s33, 0
      %p317 = por %p315, %p316
      %s318 = ssub.s32 %s35, %s42
      %p319 = scmp.eq.s32.totalorder %s318, 0
      %s321 = sadd.s32 %s320, 1
      %s322 = scalar_select %p319, %s320, %s321
      %p325 = pneg %p319
      %p326 = scmp.eq.s32.totalorder %s27, 3
      %p327 = por %p325, %p326
      %p328 = scmp.ne.s32.totalorder %s320, %s323
      %p329 = scmp.eq.s32.totalorder %s27, 0
      %p330 = por %p328, %p329
      %p331 = scmp.ne.s32.totalorder %s320, %s323
      %p332 = scmp.eq.s32.totalorder %s32, 3
      %p333 = por %p331, %p332
      %p334 = scmp.ne.s32.totalorder %s323, %s324
      %p335 = scmp.eq.s32.totalorder %s32, 0
      %p336 = por %p334, %p335
      %p337 = scmp.ne.s32.totalorder %s323, %s324
      %p338 = scmp.eq.s32.totalorder %s33, 3
      %p339 = por %p337, %p338
      %p341 = scmp.ne.s32.totalorder %s324, %s340
      %p342 = scmp.eq.s32.totalorder %s33, 0
      %p343 = por %p341, %p342
      %s344 = ssub.s32 %s35, %s42
      %p345 = scmp.eq.s32.totalorder %s344, 0
      %s347 = sadd.s32 %s346, 1
      %s348 = scalar_select %p345, %s346, %s347
      %p351 = pneg %p345
      %p352 = scmp.eq.s32.totalorder %s27, 3
      %p353 = por %p351, %p352
      %p354 = scmp.ne.s32.totalorder %s346, %s349
      %p355 = scmp.eq.s32.totalorder %s27, 0
      %p356 = por %p354, %p355
      %p357 = scmp.ne.s32.totalorder %s346, %s349
      %p358 = scmp.eq.s32.totalorder %s32, 3
      %p359 = por %p357, %p358
      %p360 = scmp.ne.s32.totalorder %s349, %s350
      %p361 = scmp.eq.s32.totalorder %s32, 0
      %p362 = por %p360, %p361
      %p363 = scmp.ne.s32.totalorder %s349, %s350
      %p364 = scmp.eq.s32.totalorder %s33, 3
      %p365 = por %p363, %p364
      %p367 = scmp.ne.s32.totalorder %s350, %s366
      %p368 = scmp.eq.s32.totalorder %s33, 0
      %p369 = por %p367, %p368
      %s370 = ssub.s32 %s35, %s42
      %p371 = scmp.eq.s32.totalorder %s370, 0
      %s373 = sadd.s32 %s372, 1
      %s374 = scalar_select %p371, %s372, %s373
      %p377 = pneg %p371
      %p378 = scmp.eq.s32.totalorder %s27, 3
      %p379 = por %p377, %p378
      %p380 = scmp.ne.s32.totalorder %s372, %s375
      %p381 = scmp.eq.s32.totalorder %s27, 0
      %p382 = por %p380, %p381
      %p383 = scmp.ne.s32.totalorder %s372, %s375
      %p384 = scmp.eq.s32.totalorder %s32, 3
      %p385 = por %p383, %p384
      %p386 = scmp.ne.s32.totalorder %s375, %s376
      %p387 = scmp.eq.s32.totalorder %s32, 0
      %p388 = por %p386, %p387
      %p389 = scmp.ne.s32.totalorder %s375, %s376
      %p390 = scmp.eq.s32.totalorder %s33, 3
      %p391 = por %p389, %p390
      %p393 = scmp.ne.s32.totalorder %s376, %s392
      %p394 = scmp.eq.s32.totalorder %s33, 0
      %p395 = por %p393, %p394
      %s396 = ssub.s32 %s35, %s42
      %p397 = scmp.eq.s32.totalorder %s396, 0
      %s399 = sadd.s32 %s398, 1
      %s400 = scalar_select %p397, %s398, %s399
      %p403 = pneg %p397
      %p404 = scmp.eq.s32.totalorder %s27, 3
      %p405 = por %p403, %p404
      %p406 = scmp.ne.s32.totalorder %s398, %s401
      %p407 = scmp.eq.s32.totalorder %s27, 0
      %p408 = por %p406, %p407
      %p409 = scmp.ne.s32.totalorder %s398, %s401
      %p410 = scmp.eq.s32.totalorder %s32, 3
      %p411 = por %p409, %p410
      %p412 = scmp.ne.s32.totalorder %s401, %s402
      %p413 = scmp.eq.s32.totalorder %s32, 0
      %p414 = por %p412, %p413
      %p415 = scmp.ne.s32.totalorder %s401, %s402
      %p416 = scmp.eq.s32.totalorder %s33, 3
      %p417 = por %p415, %p416
      %p419 = scmp.ne.s32.totalorder %s402, %s418
      %p420 = scmp.eq.s32.totalorder %s33, 0
      %p421 = por %p419, %p420
      %s422 = ssub.s32 %s35, %s42
      %p423 = scmp.eq.s32.totalorder %s422, 0
      %s425 = sadd.s32 %s424, 1
      %s426 = scalar_select %p423, %s424, %s425
      %p429 = pneg %p423
      %p430 = scmp.eq.s32.totalorder %s27, 3
      %p431 = por %p429, %p430
      %p432 = scmp.ne.s32.totalorder %s424, %s427
      %p433 = scmp.eq.s32.totalorder %s27, 0
      %p434 = por %p432, %p433
      %p435 = scmp.ne.s32.totalorder %s424, %s427
      %p436 = scmp.eq.s32.totalorder %s32, 3
      %p437 = por %p435, %p436
      %p438 = scmp.ne.s32.totalorder %s427, %s428
      %p439 = scmp.eq.s32.totalorder %s32, 0
      %p440 = por %p438, %p439
      %p441 = scmp.ne.s32.totalorder %s427, %s428
      %p442 = scmp.eq.s32.totalorder %s33, 3
      %p443 = por %p441, %p442
      %p445 = scmp.ne.s32.totalorder %s428, %s444
      %p446 = scmp.eq.s32.totalorder %s33, 0
      %p447 = por %p445, %p446
      %s449 = sadd.s32 %s448, 1
      %p452 = scmp.eq.s32.totalorder %s27, 3
      %p453 = scmp.ne.s32.totalorder %s448, %s450
      %p454 = scmp.eq.s32.totalorder %s27, 0
      %p455 = por %p453, %p454
      %p456 = scmp.ne.s32.totalorder %s448, %s450
      %p457 = scmp.eq.s32.totalorder %s32, 3
      %p458 = por %p456, %p457
      %p459 = scmp.ne.s32.totalorder %s450, %s451
      %p460 = scmp.eq.s32.totalorder %s32, 0
      %p461 = por %p459, %p460
      %p462 = scmp.ne.s32.totalorder %s450, %s451
      %p463 = scmp.eq.s32.totalorder %s33, 3
      %p464 = por %p462, %p463
      %p466 = scmp.ne.s32.totalorder %s451, %s465
      %p467 = scmp.eq.s32.totalorder %s33, 0
      %p468 = por %p466, %p467
      %s470 = sadd.s32 %s469, 1
      %p473 = scmp.eq.s32.totalorder %s27, 3
      %p474 = scmp.ne.s32.totalorder %s469, %s471
      %p475 = scmp.eq.s32.totalorder %s27, 0
      %p476 = por %p474, %p475
      %p477 = scmp.ne.s32.totalorder %s469, %s471
      %p478 = scmp.eq.s32.totalorder %s32, 3
      %p479 = por %p477, %p478
      %p480 = scmp.ne.s32.totalorder %s471, %s472
      %p481 = scmp.eq.s32.totalorder %s32, 0
      %p482 = por %p480, %p481
      %p483 = scmp.ne.s32.totalorder %s471, %s472
      %p484 = scmp.eq.s32.totalorder %s33, 3
      %p485 = por %p483, %p484
      %p487 = scmp.ne.s32.totalorder %s472, %s486
      %p488 = scmp.eq.s32.totalorder %s33, 0
      %p489 = por %p487, %p488
      %s490 = ssub.s32 %s34, %s46
      %p491 = scmp.eq.s32.totalorder %s490, 0
      %s493 = sadd.s32 %s492, 1
      %s494 = scalar_select %p491, %s492, %s493
      %p497 = pneg %p491
      %p498 = scmp.eq.s32.totalorder %s27, 3
      %p499 = por %p497, %p498
      %p500 = scmp.ne.s32.totalorder %s492, %s495
      %p501 = scmp.eq.s32.totalorder %s27, 0
      %p502 = por %p500, %p501
      %p503 = scmp.ne.s32.totalorder %s492, %s495
      %p504 = scmp.eq.s32.totalorder %s32, 3
      %p505 = por %p503, %p504
      %p506 = scmp.ne.s32.totalorder %s495, %s496
      %p507 = scmp.eq.s32.totalorder %s32, 0
      %p508 = por %p506, %p507
      %p509 = scmp.ne.s32.totalorder %s495, %s496
      %p510 = scmp.eq.s32.totalorder %s33, 3
      %p511 = por %p509, %p510
      %p513 = scmp.ne.s32.totalorder %s496, %s512
      %p514 = scmp.eq.s32.totalorder %s33, 0
      %p515 = por %p513, %p514
      %p516 = scmp.le.s32.totalorder 1, %s27
      %p517 = scmp.lt.s32.totalorder %s27, 5
      %p518 = pnand %p516, %p517
      %p519 = pneg %p518
      // Predicated region
      $region9: #{video_transformer_forward.5} parent=5 // pred_check
        _
      $region10: #{video_transformer_forward.5} parent=5 // pred_check_branch
        %521 = sbr.rel (%p518) target = $region12
      $region11: #{video_transformer_forward.5} parent=5 // pred_region
        %s522 = ssub.s32 %s27, 1
        // Predicated region
        $region13: #{video_transformer_forward.5} parent=11 // pred_check
          %p523 = pneg %p86
        $region14: #{video_transformer_forward.5} parent=11 // pred_check_branch
          %525 = sbr.rel (%p523) target = $region16
        $region15: #{video_transformer_forward.5} parent=11 // pred_region
          _
        $region16: #{video_transformer_forward.5} parent=11 // pred_fallthru
          _
        // Predicated region
        $region17: #{video_transformer_forward.5} parent=11 // pred_check
          %p526 = pneg %p107
        $region18: #{video_transformer_forward.5} parent=11 // pred_check_branch
          %528 = sbr.rel (%p526) target = $region20
        $region19: #{video_transformer_forward.5} parent=11 // pred_region
          _
        $region20: #{video_transformer_forward.5} parent=11 // pred_fallthru
          _
        // Predicated region
        $region21: #{video_transformer_forward.5} parent=11 // pred_check
          %p529 = pneg %p128
        $region22: #{video_transformer_forward.5} parent=11 // pred_check_branch
          %531 = sbr.rel (%p529) target = $region24
        $region23: #{video_transformer_forward.5} parent=11 // pred_region
          _
        $region24: #{video_transformer_forward.5} parent=11 // pred_fallthru
          _
        // Predicated region
        $region25: #{video_transformer_forward.5} parent=11 // pred_check
          %p532 = pneg %p461
        $region26: #{video_transformer_forward.5} parent=11 // pred_check_branch
          %534 = sbr.rel (%p532) target = $region28
        $region27: #{video_transformer_forward.5} parent=11 // pred_region
          _
        $region28: #{video_transformer_forward.5} parent=11 // pred_fallthru
          _
        // Predicated region
        $region29: #{video_transformer_forward.5} parent=11 // pred_check
          %p535 = pneg %p482
        $region30: #{video_transformer_forward.5} parent=11 // pred_check_branch
          %537 = sbr.rel (%p535) target = $region32
        $region31: #{video_transformer_forward.5} parent=11 // pred_region
          _
        $region32: #{video_transformer_forward.5} parent=11 // pred_fallthru
          _
      $region12: #{video_transformer_forward.5} parent=5 // pred_fallthru
        _
      %p538 = scmp.lt.s32.totalorder %s27, 4
      // Predicated region
      $region33: #{video_transformer_forward.5} parent=5 // pred_check
        %p539 = pneg %p538
      $region34: #{video_transformer_forward.5} parent=5 // pred_check_branch
        %541 = sbr.rel (%p539) target = $region36
      $region35: #{video_transformer_forward.5} parent=5 // pred_region
        // Predicated region
        $region37: #{video_transformer_forward.5} parent=35 // pred_check
          %p542 = pneg %p59
        $region38: #{video_transformer_forward.5} parent=35 // pred_check_branch
          %544 = sbr.rel (%p542) target = $region40
        $region39: #{video_transformer_forward.5} parent=35 // pred_region
          %p545 = scmp.lt.s32.totalorder %s34, 1
          %s546 = scalar_select %p545, %s34, 1
          %s547 = smul.addr %s546, 8
          %s548 = scalar_lea.vmem %s0, %s547
        $region40: #{video_transformer_forward.5} parent=35 // pred_fallthru
          _
        // Predicated region
        $region41: #{video_transformer_forward.5} parent=35 // pred_check
          %p549 = pneg %p148
        $region42: #{video_transformer_forward.5} parent=35 // pred_check_branch
          %551 = sbr.rel (%p549) target = $region44
        $region43: #{video_transformer_forward.5} parent=35 // pred_region
          %p552 = scmp.lt.s32.totalorder %s35, 1
          %s553 = scalar_select %p552, %s35, 1
          %s554 = smul.addr %s553, 4
          %s555 = smul.addr %s554, 8
          %s556 = scalar_lea.vmem %s4, %s555
        $region44: #{video_transformer_forward.5} parent=35 // pred_fallthru
          _
        // Predicated region
        $region45: #{video_transformer_forward.5} parent=35 // pred_check
          %p557 = pneg %p174
        $region46: #{video_transformer_forward.5} parent=35 // pred_check_branch
          %559 = sbr.rel (%p557) target = $region48
        $region47: #{video_transformer_forward.5} parent=35 // pred_region
          %p560 = scmp.lt.s32.totalorder %s35, 1
          %s561 = scalar_select %p560, %s35, 1
          %s562 = scalar_lea.vmem %s5, %s561
        $region48: #{video_transformer_forward.5} parent=35 // pred_fallthru
          _
        // Predicated region
        $region49: #{video_transformer_forward.5} parent=35 // pred_check
          %p563 = pneg %p200
        $region50: #{video_transformer_forward.5} parent=35 // pred_check_branch
          %565 = sbr.rel (%p563) target = $region52
        $region51: #{video_transformer_forward.5} parent=35 // pred_region
          %p566 = scmp.lt.s32.totalorder %s35, 1
          %s567 = scalar_select %p566, %s35, 1
          %s568 = smul.addr %s567, 4
          %s569 = smul.addr %s568, 8
          %s570 = scalar_lea.vmem %s6, %s569
        $region52: #{video_transformer_forward.5} parent=35 // pred_fallthru
          _
        // Predicated region
        $region53: #{video_transformer_forward.5} parent=35 // pred_check
          %p571 = pneg %p226
        $region54: #{video_transformer_forward.5} parent=35 // pred_check_branch
          %573 = sbr.rel (%p571) target = $region56
        $region55: #{video_transformer_forward.5} parent=35 // pred_region
          %p574 = scmp.lt.s32.totalorder %s35, 1
          %s575 = scalar_select %p574, %s35, 1
          %s576 = scalar_lea.vmem %s7, %s575
        $region56: #{video_transformer_forward.5} parent=35 // pred_fallthru
          _
        // Predicated region
        $region57: #{video_transformer_forward.5} parent=35 // pred_check
          %p577 = pneg %p252
        $region58: #{video_transformer_forward.5} parent=35 // pred_check_branch
          %579 = sbr.rel (%p577) target = $region60
        $region59: #{video_transformer_forward.5} parent=35 // pred_region
          %p580 = scmp.lt.s32.totalorder %s35, 1
          %s581 = scalar_select %p580, %s35, 1
          %s582 = scalar_lea.vmem %s8, %s581
        $region60: #{video_transformer_forward.5} parent=35 // pred_fallthru
          _
        // Predicated region
        $region61: #{video_transformer_forward.5} parent=35 // pred_check
          %p583 = pneg %p278
        $region62: #{video_transformer_forward.5} parent=35 // pred_check_branch
          %585 = sbr.rel (%p583) target = $region64
        $region63: #{video_transformer_forward.5} parent=35 // pred_region
          %p586 = scmp.lt.s32.totalorder %s35, 1
          %s587 = scalar_select %p586, %s35, 1
          %s588 = scalar_lea.vmem %s9, %s587
        $region64: #{video_transformer_forward.5} parent=35 // pred_fallthru
          _
        // Predicated region
        $region65: #{video_transformer_forward.5} parent=35 // pred_check
          %p589 = pneg %p304
        $region66: #{video_transformer_forward.5} parent=35 // pred_check_branch
          %591 = sbr.rel (%p589) target = $region68
        $region67: #{video_transformer_forward.5} parent=35 // pred_region
          %p592 = scmp.lt.s32.totalorder %s35, 1
          %s593 = scalar_select %p592, %s35, 1
          %s594 = smul.addr %s593, 4
          %s595 = smul.addr %s594, 8
          %s596 = scalar_lea.vmem %s10, %s595
        $region68: #{video_transformer_forward.5} parent=35 // pred_fallthru
          _
        // Predicated region
        $region69: #{video_transformer_forward.5} parent=35 // pred_check
          %p597 = pneg %p330
        $region70: #{video_transformer_forward.5} parent=35 // pred_check_branch
          %599 = sbr.rel (%p597) target = $region72
        $region71: #{video_transformer_forward.5} parent=35 // pred_region
          %p600 = scmp.lt.s32.totalorder %s35, 1
          %s601 = scalar_select %p600, %s35, 1
          %s602 = scalar_lea.vmem %s11, %s601
        $region72: #{video_transformer_forward.5} parent=35 // pred_fallthru
          _
        // Predicated region
        $region73: #{video_transformer_forward.5} parent=35 // pred_check
          %p603 = pneg %p356
        $region74: #{video_transformer_forward.5} parent=35 // pred_check_branch
          %605 = sbr.rel (%p603) target = $region76
        $region75: #{video_transformer_forward.5} parent=35 // pred_region
          %p606 = scmp.lt.s32.totalorder %s35, 1
          %s607 = scalar_select %p606, %s35, 1
          %s608 = smul.addr %s607, 8
          %s609 = smul.addr %s608, 8
          %s610 = scalar_lea.vmem %s12, %s609
        $region76: #{video_transformer_forward.5} parent=35 // pred_fallthru
          _
        // Predicated region
        $region77: #{video_transformer_forward.5} parent=35 // pred_check
          %p611 = pneg %p382
        $region78: #{video_transformer_forward.5} parent=35 // pred_check_branch
          %613 = sbr.rel (%p611) target = $region80
        $region79: #{video_transformer_forward.5} parent=35 // pred_region
          %p614 = scmp.lt.s32.totalorder %s35, 1
          %s615 = scalar_select %p614, %s35, 1
          %s616 = scalar_lea.vmem %s13, %s615
        $region80: #{video_transformer_forward.5} parent=35 // pred_fallthru
          _
        // Predicated region
        $region81: #{video_transformer_forward.5} parent=35 // pred_check
          %p617 = pneg %p408
        $region82: #{video_transformer_forward.5} parent=35 // pred_check_branch
          %619 = sbr.rel (%p617) target = $region84
        $region83: #{video_transformer_forward.5} parent=35 // pred_region
          %p620 = scmp.lt.s32.totalorder %s35, 1
          %s621 = scalar_select %p620, %s35, 1
          %s622 = scalar_lea.vmem %s14, %s621
        $region84: #{video_transformer_forward.5} parent=35 // pred_fallthru
          _
        // Predicated region
        $region85: #{video_transformer_forward.5} parent=35 // pred_check
          %p623 = pneg %p434
        $region86: #{video_transformer_forward.5} parent=35 // pred_check_branch
          %625 = sbr.rel (%p623) target = $region88
        $region87: #{video_transformer_forward.5} parent=35 // pred_region
          %p626 = scmp.lt.s32.totalorder %s35, 1
          %s627 = scalar_select %p626, %s35, 1
          %s628 = scalar_lea.vmem %s15, %s627
        $region88: #{video_transformer_forward.5} parent=35 // pred_fallthru
          _
      $region36: #{video_transformer_forward.5} parent=5 // pred_fallthru
        _
      %p629 = scmp.le.s32.totalorder 1, %s27
      %p630 = scmp.lt.s32.totalorder %s27, 5
      %p631 = pnand %p629, %p630
      %p632 = pneg %p631
      // Predicated region
      $region89: #{video_transformer_forward.5} parent=5 // pred_check
        _
      $region90: #{video_transformer_forward.5} parent=5 // pred_check_branch
        %634 = sbr.rel (%p631) target = $region92
      $region91: #{video_transformer_forward.5} parent=5 // pred_region
        %s635 = ssub.s32 %s27, 1
        %p636 = scmp.lt.s32.totalorder %s36, 1
        %s637 = scalar_select %p636, %s36, 1
        %s638 = smul.addr %s637, 8
        %s639 = scalar_lea.vmem %s0, %s638
        %p640 = pneg %p65
        %p641 = pneg %p62
        %p642 = pneg %p86
        %p643 = pneg %p83
        %p644 = pneg %p107
        %p645 = pneg %p104
        %p646 = pneg %p128
        %p647 = pneg %p125
        %p648 = scmp.lt.s32.totalorder %s37, 1
        %s649 = scalar_select %p648, %s37, 1
        %s650 = smul.addr %s649, 4
        %s651 = smul.addr %s650, 8
        %s652 = scalar_lea.vmem %s4, %s651
        %p653 = pneg %p154
        %p654 = pneg %p151
        %p655 = scmp.lt.s32.totalorder %s37, 1
        %s656 = scalar_select %p655, %s37, 1
        %s657 = scalar_lea.vmem %s5, %s656
        %p658 = pneg %p180
        %p659 = pneg %p177
        %p660 = scmp.lt.s32.totalorder %s37, 1
        %s661 = scalar_select %p660, %s37, 1
        %s662 = smul.addr %s661, 4
        %s663 = smul.addr %s662, 8
        %s664 = scalar_lea.vmem %s6, %s663
        %p665 = pneg %p206
        %p666 = pneg %p203
        %p667 = scmp.lt.s32.totalorder %s37, 1
        %s668 = scalar_select %p667, %s37, 1
        %s669 = scalar_lea.vmem %s7, %s668
        %p670 = pneg %p232
        %p671 = pneg %p229
        %p672 = scmp.lt.s32.totalorder %s37, 1
        %s673 = scalar_select %p672, %s37, 1
        %s674 = scalar_lea.vmem %s8, %s673
        %p675 = pneg %p258
        %p676 = pneg %p255
        %p677 = scmp.lt.s32.totalorder %s37, 1
        %s678 = scalar_select %p677, %s37, 1
        %s679 = scalar_lea.vmem %s9, %s678
        %p680 = pneg %p284
        %p681 = pneg %p281
        %p682 = scmp.lt.s32.totalorder %s37, 1
        %s683 = scalar_select %p682, %s37, 1
        %s684 = smul.addr %s683, 4
        %s685 = smul.addr %s684, 8
        %s686 = scalar_lea.vmem %s10, %s685
        %p687 = pneg %p310
        %p688 = pneg %p307
        %p689 = scmp.lt.s32.totalorder %s37, 1
        %s690 = scalar_select %p689, %s37, 1
        %s691 = scalar_lea.vmem %s11, %s690
        %p692 = pneg %p336
        %p693 = pneg %p333
        %p694 = scmp.lt.s32.totalorder %s37, 1
        %s695 = scalar_select %p694, %s37, 1
        %s696 = smul.addr %s695, 8
        %s697 = smul.addr %s696, 8
        %s698 = scalar_lea.vmem %s12, %s697
        %p699 = pneg %p362
        %p700 = pneg %p359
        %p701 = scmp.lt.s32.totalorder %s37, 1
        %s702 = scalar_select %p701, %s37, 1
        %s703 = scalar_lea.vmem %s13, %s702
        %p704 = pneg %p388
        %p705 = pneg %p385
        %p706 = scmp.lt.s32.totalorder %s37, 1
        %s707 = scalar_select %p706, %s37, 1
        %s708 = scalar_lea.vmem %s14, %s707
        %p709 = pneg %p414
        %p710 = pneg %p411
        %p711 = scmp.lt.s32.totalorder %s37, 1
        %s712 = scalar_select %p711, %s37, 1
        %s713 = scalar_lea.vmem %s15, %s712
        %p714 = pneg %p440
        %p715 = pneg %p437
        %p716 = pneg %p461
        %p717 = pneg %p458
        %p718 = pneg %p482
        %p719 = pneg %p479
        %p720 = pneg %p508
        %p721 = pneg %p505
        %s722 = sand.u32 %s495, 1
        %s723 = scalar_lea.sflag [#allocation4], %s722
        %s724 = sand.u32 %s495, 1
        %s725 = smul.addr %s724, 8
        %s726 = scalar_lea.vmem [#allocation3], %s725
        %p727 = scmp.lt.s32.totalorder %s36, 1
        %s728 = scalar_select %p727, %s36, 1
        %s729 = smul.addr %s728, 8
        %s730 = scalar_lea.vmem %s0, %s729
        %p731 = scmp.lt.s32.totalorder %s37, 1
        %s732 = scalar_select %p731, %s37, 1
        %s733 = smul.addr %s732, 4
        %s734 = smul.addr %s733, 8
        %s735 = scalar_lea.vmem %s4, %s734
        %p736 = scmp.lt.s32.totalorder %s37, 1
        %s737 = scalar_select %p736, %s37, 1
        %s738 = scalar_lea.vmem %s5, %s737
        %p739 = scmp.lt.s32.totalorder %s37, 1
        %s740 = scalar_select %p739, %s37, 1
        %s741 = smul.addr %s740, 4
        %s742 = smul.addr %s741, 8
        %s743 = scalar_lea.vmem %s6, %s742
        %p744 = scmp.lt.s32.totalorder %s37, 1
        %s745 = scalar_select %p744, %s37, 1
        %s746 = scalar_lea.vmem %s7, %s745
        %p747 = scmp.lt.s32.totalorder %s37, 1
        %s748 = scalar_select %p747, %s37, 1
        %s749 = scalar_lea.vmem %s8, %s748
        %p750 = scmp.lt.s32.totalorder %s37, 1
        %s751 = scalar_select %p750, %s37, 1
        %s752 = scalar_lea.vmem %s9, %s751
        %p753 = scmp.lt.s32.totalorder %s37, 1
        %s754 = scalar_select %p753, %s37, 1
        %s755 = smul.addr %s754, 4
        %s756 = smul.addr %s755, 8
        %s757 = scalar_lea.vmem %s10, %s756
        %p758 = scmp.lt.s32.totalorder %s37, 1
        %s759 = scalar_select %p758, %s37, 1
        %s760 = scalar_lea.vmem %s11, %s759
        %p761 = scmp.lt.s32.totalorder %s37, 1
        %s762 = scalar_select %p761, %s37, 1
        %s763 = smul.addr %s762, 8
        %s764 = smul.addr %s763, 8
        %s765 = scalar_lea.vmem %s12, %s764
        %p766 = scmp.lt.s32.totalorder %s37, 1
        %s767 = scalar_select %p766, %s37, 1
        %s768 = scalar_lea.vmem %s13, %s767
        %p769 = scmp.lt.s32.totalorder %s37, 1
        %s770 = scalar_select %p769, %s37, 1
        %s771 = scalar_lea.vmem %s14, %s770
        %p772 = scmp.lt.s32.totalorder %s37, 1
        %s773 = scalar_select %p772, %s37, 1
        %s774 = scalar_lea.vmem %s15, %s773
        %p775 = scmp.eq.s32.totalorder %s37, 0
        // Predicated region
        $region93: #{video_transformer_forward.5} parent=91 // pred_check
          %p776 = pneg %p775
        $region94: #{video_transformer_forward.5} parent=91 // pred_check_branch
          %778 = sbr.rel (%p776) target = $region96
        $region95: #{video_transformer_forward.5} parent=91 // pred_region
          %v779 = vld [vmem:[%s730] sm:$0xff]
          %v780 = vld [vmem:[%s2] sm:$0xff]
          %v781 = vld [vmem:[%s2 + $0x8] sm:$0xff]
          %v782 = vld [vmem:[%s2 + $0x10] sm:$0xff]
          %v783 = vld [vmem:[%s2 + $0x18] sm:$0xff]
          %v784 = vld [vmem:[%s2 + $0x20] sm:$0xff]
          %v785 = vld [vmem:[%s2 + $0x28] sm:$0xff]
          %v786 = vld [vmem:[%s2 + $0x30] sm:$0xff]
          %v787 = vld [vmem:[%s2 + $0x38] sm:$0xff]
          %v788 = vld [vmem:[%s2 + $0x40] sm:$0xff]
          %v789 = vld [vmem:[%s2 + $0x48] sm:$0xff]
          %v790 = vld [vmem:[%s2 + $0x50] sm:$0xff]
          %v791 = vld [vmem:[%s2 + $0x58] sm:$0xff]
          %v792 = vld [vmem:[%s2 + $0x60] sm:$0xff]
          %v793 = vld [vmem:[%s2 + $0x68] sm:$0xff]
          %v794 = vld [vmem:[%s2 + $0x70] sm:$0xff]
          %v795 = vld [vmem:[%s2 + $0x78] sm:$0xff]
          %v796 = vld [vmem:[%s3] sm:$0x1]
          %v798 = vperm.slane %v796, 0
          %800 = vmatpush.msra.mxu0 %v795
          %801 = vmatpush.msra.mxu0 %v794
          %802 = vmatpush.msra.mxu0 %v793
          %803 = vmatpush.msra.mxu0 %v792
          %804 = vmatpush.msra.mxu0 %v791
          %805 = vmatpush.msra.mxu0 %v790
          %806 = vmatpush.msra.mxu0 %v789
          %807 = vmatpush.msra.mxu0 %v788
          %808 = vmatpush.msra.mxu0 %v787
          %809 = vmatpush.msra.mxu0 %v786
          %810 = vmatpush.msra.mxu0 %v785
          %811 = vmatpush.msra.mxu0 %v784
          %812 = vmatpush.msra.mxu0 %v783
          %813 = vmatpush.msra.mxu0 %v782
          %814 = vmatpush.msra.mxu0 %v781
          %815 = vmatpush.msra.mxu0 %v780
          %816 = vmatmul.f32.gmra.mxu0 %v779
          %v817 = vpop.f32.mrf.mxu0
          %v818 = vadd.f32 %v798, %v817
          %819 = vdwg.mxu0
          %v820 = vld [vmem:[%s1] sm:$0xff]
          %v821 = vadd.f32 %v818, %v820
          %vm822 = vcmask 261120
          %823 = vst.msk [vmem:[#allocation2] sm:$0xff] %vm822, %v821
        $region96: #{video_transformer_forward.5} parent=91 // pred_fallthru
          _
        %v824 = vld [vmem:[#allocation2] sm:$0xff]
        %v825 = vld [vmem:[%s735] sm:$0xff]
        %v826 = vld [vmem:[%s735 + $0x8] sm:$0xff]
        %v827 = vld [vmem:[%s735 + $0x10] sm:$0xff]
        %v828 = vld [vmem:[%s735 + $0x18] sm:$0xff]
        %v829 = vld [vmem:[%s738] sm:$0x1]
        %v831 = vperm.slane %v829, 0
        %vm833 = vcmask 261120
        %v835 = vsel %vm833, %v824, 0
        %837 = vmatpush.msra.mxu0 0.0
        %838 = vmatpush.msra.mxu0 0.0
        %839 = vmatpush.msra.mxu0 0.0
        %840 = vmatpush.msra.mxu0 0.0
        %841 = vmatpush.msra.mxu0 0.0
        %842 = vmatpush.msra.mxu0 0.0
        %843 = vmatpush.msra.mxu0 0.0
        %844 = vmatpush.msra.mxu0 0.0
        %845 = vmatpush.msra.mxu0 0.0
        %846 = vmatpush.msra.mxu0 0.0
        %847 = vmatpush.msra.mxu0 0.0
        %848 = vmatpush.msra.mxu0 0.0
        %849 = vmatpush.msra.mxu0 %v828
        %850 = vmatpush.msra.mxu0 %v827
        %851 = vmatpush.msra.mxu0 %v826
        %852 = vmatpush.msra.mxu0 %v825
        %853 = vmatmul.f32.gmra.mxu0 %v835
        %v854 = vpop.f32.mrf.mxu0
        %v855 = vadd.f32 %v831, %v854
        %856 = vdwg.mxu0
        %858 = vrot.lane.b32.xlu0 %v855, 96
        %v859 = vpop.permute.xlu0 %858
        %vm860 = vcmask 31744
        %v861 = vsel %vm860, %v855, 0
        %v863 = vsel %vm860, %v859, 0
        %865 = vmatpush.xpose.msra.mxu0 0.0
        %866 = vmatpush.xpose.msra.mxu0 0.0
        %867 = vmatpush.xpose.msra.mxu0 0.0
        %868 = vmatpush.xpose.msra.mxu0 0.0
        %869 = vmatpush.xpose.msra.mxu0 0.0
        %870 = vmatpush.xpose.msra.mxu0 0.0
        %871 = vmatpush.xpose.msra.mxu0 0.0
        %872 = vmatpush.xpose.msra.mxu0 0.0
        %873 = vmatpush.xpose.msra.mxu0 0.0
        %874 = vmatpush.xpose.msra.mxu0 0.0
        %875 = vmatpush.xpose.msra.mxu0 0.0
        %876 = vmatpush.xpose.msra.mxu0 0.0
        %877 = vmatpush.xpose.msra.mxu0 0.0
        %878 = vmatpush.xpose.msra.mxu0 0.0
        %879 = vmatpush.xpose.msra.mxu0 0.0
        %880 = vmatpush.xpose.msra.mxu0 %v863
        %881 = vmatmul.f32.gmra.mxu0 %v861
        %v882 = vpop.f32.mrf.mxu0
        %v883 = vadd.f32 0.0, %v882
        %884 = vdwg.mxu0
        %v885 = vmul.f32 %v883, 0.5
        %vm886 = vcmask 64512
        %v887 = vsel %vm886, %v885, -inf
        %888 = vmax.xlane.f32.xlu0 %v887
        %v889 = vpop.xlane.xlu0 %888
        %v890 = vsub.f32 %v885, %v889
        %v891 = vmul.f32 %v890, 1.442695
        %v892 = vpow.pop %v891
        %v893 = vsel %vm886, %v892, 0.0
        %894 = vadd.xlane.f32.xlu0 %v893
        %v895 = vpop.xlane.xlu0 %894
        %v896 = vrcp.pop %v895
        %v897 = vmul.f32 %v895, %v896
        %v898 = vsub.f32 1.0, %v897
        %v899 = vmul.f32 %v896, %v898
        %v900 = vadd.f32 %v896, %v899
        %vm901 = vweird.f32 %v895
        %vm902 = vweird.f32 %v896
        %vm903 = vmor %vm901, %vm902
        %v904 = vsel %vm903, %v896, %v900
        %v905 = vand.u32 2147483647, %v895
        %vm906 = vcmp.eq.f32.partialorder %v905, 8.507059e+37
        %v907 = vand.u32 %v895, 2147483648
        %v908 = vor.u32 1.1754944e-38, %v907
        %v909 = vsel %vm906, %v908, %v904
        %v910 = vmul.f32 %v892, %v909
        %911 = vrot.lane.b32.xlu0 %v855, 64
        %v912 = vpop.permute.xlu0 %911
        %v915 = vsel %vm886, %v910, 0
        %917 = vmatpush.msra.mxu0 0.0
        %918 = vmatpush.msra.mxu0 0.0
        %919 = vmatpush.msra.mxu0 0.0
        %920 = vmatpush.msra.mxu0 0.0
        %921 = vmatpush.msra.mxu0 0.0
        %922 = vmatpush.msra.mxu0 0.0
        %923 = vmatpush.msra.mxu0 0.0
        %924 = vmatpush.msra.mxu0 0.0
        %925 = vmatpush.msra.mxu0 0.0
        %926 = vmatpush.msra.mxu0 0.0
        %927 = vmatpush.msra.mxu0 0.0
        %928 = vmatpush.msra.mxu0 0.0
        %929 = vmatpush.msra.mxu0 0.0
        %930 = vmatpush.msra.mxu0 0.0
        %931 = vmatpush.msra.mxu0 0.0
        %932 = vmatpush.msra.mxu0 %v912
        %933 = vmatmul.f32.gmra.mxu0 %v915
        %v934 = vpop.f32.mrf.mxu0
        %v935 = vadd.f32 0.0, %v934
        %936 = vdwg.mxu0
        %937 = vrot.lane.b32.xlu0 %v855, 124
        %v938 = vpop.permute.xlu0 %937
        %939 = vrot.lane.b32.xlu0 %v855, 92
        %v940 = vpop.permute.xlu0 %939
        %v941 = vsel %vm860, %v938, 0
        %v943 = vsel %vm860, %v940, 0
        %945 = vmatpush.xpose.msra.mxu0 0.0
        %946 = vmatpush.xpose.msra.mxu0 0.0
        %947 = vmatpush.xpose.msra.mxu0 0.0
        %948 = vmatpush.xpose.msra.mxu0 0.0
        %949 = vmatpush.xpose.msra.mxu0 0.0
        %950 = vmatpush.xpose.msra.mxu0 0.0
        %951 = vmatpush.xpose.msra.mxu0 0.0
        %952 = vmatpush.xpose.msra.mxu0 0.0
        %953 = vmatpush.xpose.msra.mxu0 0.0
        %954 = vmatpush.xpose.msra.mxu0 0.0
        %955 = vmatpush.xpose.msra.mxu0 0.0
        %956 = vmatpush.xpose.msra.mxu0 0.0
        %957 = vmatpush.xpose.msra.mxu0 0.0
        %958 = vmatpush.xpose.msra.mxu0 0.0
        %959 = vmatpush.xpose.msra.mxu0 0.0
        %960 = vmatpush.xpose.msra.mxu0 %v943
        %961 = vmatmul.f32.gmra.mxu0 %v941
        %v962 = vpop.f32.mrf.mxu0
        %v963 = vadd.f32 0.0, %v962
        %964 = vdwg.mxu0
        %v965 = vmul.f32 %v963, 0.5
        %v966 = vsel %vm886, %v965, -inf
        %967 = vmax.xlane.f32.xlu0 %v966
        %v968 = vpop.xlane.xlu0 %967
        %v969 = vsub.f32 %v965, %v968
        %v970 = vmul.f32 %v969, 1.442695
        %v971 = vpow.pop %v970
        %v972 = vsel %vm886, %v971, 0.0
        %973 = vadd.xlane.f32.xlu0 %v972
        %v974 = vpop.xlane.xlu0 %973
        %v975 = vrcp.pop %v974
        %v976 = vmul.f32 %v974, %v975
        %v977 = vsub.f32 1.0, %v976
        %v978 = vmul.f32 %v975, %v977
        %v979 = vadd.f32 %v975, %v978
        %vm980 = vweird.f32 %v974
        %vm981 = vweird.f32 %v975
        %vm982 = vmor %vm980, %vm981
        %v983 = vsel %vm982, %v975, %v979
        %v984 = vand.u32 2147483647, %v974
        %vm985 = vcmp.eq.f32.partialorder %v984, 8.507059e+37
        %v986 = vand.u32 %v974, 2147483648
        %v987 = vor.u32 1.1754944e-38, %v986
        %v988 = vsel %vm985, %v987, %v983
        %v989 = vmul.f32 %v971, %v988
        %990 = vrot.lane.b32.xlu0 %v855, 60
        %v991 = vpop.permute.xlu0 %990
        %v994 = vsel %vm886, %v989, 0
        %996 = vmatpush.msra.mxu0 0.0
        %997 = vmatpush.msra.mxu0 0.0
        %998 = vmatpush.msra.mxu0 0.0
        %999 = vmatpush.msra.mxu0 0.0
        %1000 = vmatpush.msra.mxu0 0.0
        %1001 = vmatpush.msra.mxu0 0.0
        %1002 = vmatpush.msra.mxu0 0.0
        %1003 = vmatpush.msra.mxu0 0.0
        %1004 = vmatpush.msra.mxu0 0.0
        %1005 = vmatpush.msra.mxu0 0.0
        %1006 = vmatpush.msra.mxu0 0.0
        %1007 = vmatpush.msra.mxu0 0.0
        %1008 = vmatpush.msra.mxu0 0.0
        %1009 = vmatpush.msra.mxu0 0.0
        %1010 = vmatpush.msra.mxu0 0.0
        %1011 = vmatpush.msra.mxu0 %v991
        %1012 = vmatmul.f32.gmra.mxu0 %v994
        %v1013 = vpop.f32.mrf.mxu0
        %v1014 = vadd.f32 0.0, %v1013
        %1015 = vdwg.mxu0
        %1016 = vrot.lane.b32.xlu0 %v855, 120
        %v1017 = vpop.permute.xlu0 %1016
        %1018 = vrot.lane.b32.xlu0 %v855, 88
        %v1019 = vpop.permute.xlu0 %1018
        %v1020 = vsel %vm860, %v1017, 0
        %v1022 = vsel %vm860, %v1019, 0
        %1024 = vmatpush.xpose.msra.mxu0 0.0
        %1025 = vmatpush.xpose.msra.mxu0 0.0
        %1026 = vmatpush.xpose.msra.mxu0 0.0
        %1027 = vmatpush.xpose.msra.mxu0 0.0
        %1028 = vmatpush.xpose.msra.mxu0 0.0
        %1029 = vmatpush.xpose.msra.mxu0 0.0
        %1030 = vmatpush.xpose.msra.mxu0 0.0
        %1031 = vmatpush.xpose.msra.mxu0 0.0
        %1032 = vmatpush.xpose.msra.mxu0 0.0
        %1033 = vmatpush.xpose.msra.mxu0 0.0
        %1034 = vmatpush.xpose.msra.mxu0 0.0
        %1035 = vmatpush.xpose.msra.mxu0 0.0
        %1036 = vmatpush.xpose.msra.mxu0 0.0
        %1037 = vmatpush.xpose.msra.mxu0 0.0
        %1038 = vmatpush.xpose.msra.mxu0 0.0
        %1039 = vmatpush.xpose.msra.mxu0 %v1022
        %1040 = vmatmul.f32.gmra.mxu0 %v1020
        %v1041 = vpop.f32.mrf.mxu0
        %v1042 = vadd.f32 0.0, %v1041
        %1043 = vdwg.mxu0
        %v1044 = vmul.f32 %v1042, 0.5
        %v1045 = vsel %vm886, %v1044, -inf
        %1046 = vmax.xlane.f32.xlu0 %v1045
        %v1047 = vpop.xlane.xlu0 %1046
        %v1048 = vsub.f32 %v1044, %v1047
        %v1049 = vmul.f32 %v1048, 1.442695
        %v1050 = vpow.pop %v1049
        %v1051 = vsel %vm886, %v1050, 0.0
        %1052 = vadd.xlane.f32.xlu0 %v1051
        %v1053 = vpop.xlane.xlu0 %1052
        %v1054 = vrcp.pop %v1053
        %v1055 = vmul.f32 %v1053, %v1054
        %v1056 = vsub.f32 1.0, %v1055
        %v1057 = vmul.f32 %v1054, %v1056
        %v1058 = vadd.f32 %v1054, %v1057
        %vm1059 = vweird.f32 %v1053
        %vm1060 = vweird.f32 %v1054
        %vm1061 = vmor %vm1059, %vm1060
        %v1062 = vsel %vm1061, %v1054, %v1058
        %v1063 = vand.u32 2147483647, %v1053
        %vm1064 = vcmp.eq.f32.partialorder %v1063, 8.507059e+37
        %v1065 = vand.u32 %v1053, 2147483648
        %v1066 = vor.u32 1.1754944e-38, %v1065
        %v1067 = vsel %vm1064, %v1066, %v1062
        %v1068 = vmul.f32 %v1050, %v1067
        %1069 = vrot.lane.b32.xlu0 %v855, 56
        %v1070 = vpop.permute.xlu0 %1069
        %v1073 = vsel %vm886, %v1068, 0
        %1075 = vmatpush.msra.mxu0 0.0
        %1076 = vmatpush.msra.mxu0 0.0
        %1077 = vmatpush.msra.mxu0 0.0
        %1078 = vmatpush.msra.mxu0 0.0
        %1079 = vmatpush.msra.mxu0 0.0
        %1080 = vmatpush.msra.mxu0 0.0
        %1081 = vmatpush.msra.mxu0 0.0
        %1082 = vmatpush.msra.mxu0 0.0
        %1083 = vmatpush.msra.mxu0 0.0
        %1084 = vmatpush.msra.mxu0 0.0
        %1085 = vmatpush.msra.mxu0 0.0
        %1086 = vmatpush.msra.mxu0 0.0
        %1087 = vmatpush.msra.mxu0 0.0
        %1088 = vmatpush.msra.mxu0 0.0
        %1089 = vmatpush.msra.mxu0 0.0
        %1090 = vmatpush.msra.mxu0 %v1070
        %1091 = vmatmul.f32.gmra.mxu0 %v1073
        %v1092 = vpop.f32.mrf.mxu0
        %v1093 = vadd.f32 0.0, %v1092
        %1094 = vdwg.mxu0
        %1095 = vrot.lane.b32.xlu0 %v855, 116
        %v1096 = vpop.permute.xlu0 %1095
        %1097 = vrot.lane.b32.xlu0 %v855, 84
        %v1098 = vpop.permute.xlu0 %1097
        %v1099 = vsel %vm860, %v1096, 0
        %v1101 = vsel %vm860, %v1098, 0
        %1103 = vmatpush.xpose.msra.mxu0 0.0
        %1104 = vmatpush.xpose.msra.mxu0 0.0
        %1105 = vmatpush.xpose.msra.mxu0 0.0
        %1106 = vmatpush.xpose.msra.mxu0 0.0
        %1107 = vmatpush.xpose.msra.mxu0 0.0
        %1108 = vmatpush.xpose.msra.mxu0 0.0
        %1109 = vmatpush.xpose.msra.mxu0 0.0
        %1110 = vmatpush.xpose.msra.mxu0 0.0
        %1111 = vmatpush.xpose.msra.mxu0 0.0
        %1112 = vmatpush.xpose.msra.mxu0 0.0
        %1113 = vmatpush.xpose.msra.mxu0 0.0
        %1114 = vmatpush.xpose.msra.mxu0 0.0
        %1115 = vmatpush.xpose.msra.mxu0 0.0
        %1116 = vmatpush.xpose.msra.mxu0 0.0
        %1117 = vmatpush.xpose.msra.mxu0 0.0
        %1118 = vmatpush.xpose.msra.mxu0 %v1101
        %1119 = vmatmul.f32.gmra.mxu0 %v1099
        %v1120 = vpop.f32.mrf.mxu0
        %v1121 = vadd.f32 0.0, %v1120
        %1122 = vdwg.mxu0
        %v1123 = vmul.f32 %v1121, 0.5
        %v1124 = vsel %vm886, %v1123, -inf
        %1125 = vmax.xlane.f32.xlu0 %v1124
        %v1126 = vpop.xlane.xlu0 %1125
        %v1127 = vsub.f32 %v1123, %v1126
        %v1128 = vmul.f32 %v1127, 1.442695
        %v1129 = vpow.pop %v1128
        %v1130 = vsel %vm886, %v1129, 0.0
        %1131 = vadd.xlane.f32.xlu0 %v1130
        %v1132 = vpop.xlane.xlu0 %1131
        %v1133 = vrcp.pop %v1132
        %v1134 = vmul.f32 %v1132, %v1133
        %v1135 = vsub.f32 1.0, %v1134
        %v1136 = vmul.f32 %v1133, %v1135
        %v1137 = vadd.f32 %v1133, %v1136
        %vm1138 = vweird.f32 %v1132
        %vm1139 = vweird.f32 %v1133
        %vm1140 = vmor %vm1138, %vm1139
        %v1141 = vsel %vm1140, %v1133, %v1137
        %v1142 = vand.u32 2147483647, %v1132
        %vm1143 = vcmp.eq.f32.partialorder %v1142, 8.507059e+37
        %v1144 = vand.u32 %v1132, 2147483648
        %v1145 = vor.u32 1.1754944e-38, %v1144
        %v1146 = vsel %vm1143, %v1145, %v1141
        %v1147 = vmul.f32 %v1129, %v1146
        %1148 = vrot.lane.b32.xlu0 %v855, 52
        %v1149 = vpop.permute.xlu0 %1148
        %v1152 = vsel %vm886, %v1147, 0
        %1154 = vmatpush.msra.mxu0 0.0
        %1155 = vmatpush.msra.mxu0 0.0
        %1156 = vmatpush.msra.mxu0 0.0
        %1157 = vmatpush.msra.mxu0 0.0
        %1158 = vmatpush.msra.mxu0 0.0
        %1159 = vmatpush.msra.mxu0 0.0
        %1160 = vmatpush.msra.mxu0 0.0
        %1161 = vmatpush.msra.mxu0 0.0
        %1162 = vmatpush.msra.mxu0 0.0
        %1163 = vmatpush.msra.mxu0 0.0
        %1164 = vmatpush.msra.mxu0 0.0
        %1165 = vmatpush.msra.mxu0 0.0
        %1166 = vmatpush.msra.mxu0 0.0
        %1167 = vmatpush.msra.mxu0 0.0
        %1168 = vmatpush.msra.mxu0 0.0
        %1169 = vmatpush.msra.mxu0 %v1149
        %1170 = vmatmul.f32.gmra.mxu0 %v1152
        %v1171 = vpop.f32.mrf.mxu0
        %v1172 = vadd.f32 0.0, %v1171
        %1173 = vdwg.mxu0
        %1174 = vrot.lane.b32.xlu0 %v855, 112
        %v1175 = vpop.permute.xlu0 %1174
        %1176 = vrot.lane.b32.xlu0 %v855, 80
        %v1177 = vpop.permute.xlu0 %1176
        %v1178 = vsel %vm860, %v1175, 0
        %v1180 = vsel %vm860, %v1177, 0
        %1182 = vmatpush.xpose.msra.mxu0 0.0
        %1183 = vmatpush.xpose.msra.mxu0 0.0
        %1184 = vmatpush.xpose.msra.mxu0 0.0
        %1185 = vmatpush.xpose.msra.mxu0 0.0
        %1186 = vmatpush.xpose.msra.mxu0 0.0
        %1187 = vmatpush.xpose.msra.mxu0 0.0
        %1188 = vmatpush.xpose.msra.mxu0 0.0
        %1189 = vmatpush.xpose.msra.mxu0 0.0
        %1190 = vmatpush.xpose.msra.mxu0 0.0
        %1191 = vmatpush.xpose.msra.mxu0 0.0
        %1192 = vmatpush.xpose.msra.mxu0 0.0
        %1193 = vmatpush.xpose.msra.mxu0 0.0
        %1194 = vmatpush.xpose.msra.mxu0 0.0
        %1195 = vmatpush.xpose.msra.mxu0 0.0
        %1196 = vmatpush.xpose.msra.mxu0 0.0
        %1197 = vmatpush.xpose.msra.mxu0 %v1180
        %1198 = vmatmul.f32.gmra.mxu0 %v1178
        %v1199 = vpop.f32.mrf.mxu0
        %v1200 = vadd.f32 0.0, %v1199
        %1201 = vdwg.mxu0
        %v1202 = vmul.f32 %v1200, 0.5
        %v1203 = vsel %vm886, %v1202, -inf
        %1204 = vmax.xlane.f32.xlu0 %v1203
        %v1205 = vpop.xlane.xlu0 %1204
        %v1206 = vsub.f32 %v1202, %v1205
        %v1207 = vmul.f32 %v1206, 1.442695
        %v1208 = vpow.pop %v1207
        %v1209 = vsel %vm886, %v1208, 0.0
        %1210 = vadd.xlane.f32.xlu0 %v1209
        %v1211 = vpop.xlane.xlu0 %1210
        %v1212 = vrcp.pop %v1211
        %v1213 = vmul.f32 %v1211, %v1212
        %v1214 = vsub.f32 1.0, %v1213
        %v1215 = vmul.f32 %v1212, %v1214
        %v1216 = vadd.f32 %v1212, %v1215
        %vm1217 = vweird.f32 %v1211
        %vm1218 = vweird.f32 %v1212
        %vm1219 = vmor %vm1217, %vm1218
        %v1220 = vsel %vm1219, %v1212, %v1216
        %v1221 = vand.u32 2147483647, %v1211
        %vm1222 = vcmp.eq.f32.partialorder %v1221, 8.507059e+37
        %v1223 = vand.u32 %v1211, 2147483648
        %v1224 = vor.u32 1.1754944e-38, %v1223
        %v1225 = vsel %vm1222, %v1224, %v1220
        %v1226 = vmul.f32 %v1208, %v1225
        %1227 = vrot.lane.b32.xlu0 %v855, 48
        %v1228 = vpop.permute.xlu0 %1227
        %v1231 = vsel %vm886, %v1226, 0
        %1233 = vmatpush.msra.mxu0 0.0
        %1234 = vmatpush.msra.mxu0 0.0
        %1235 = vmatpush.msra.mxu0 0.0
        %1236 = vmatpush.msra.mxu0 0.0
        %1237 = vmatpush.msra.mxu0 0.0
        %1238 = vmatpush.msra.mxu0 0.0
        %1239 = vmatpush.msra.mxu0 0.0
        %1240 = vmatpush.msra.mxu0 0.0
        %1241 = vmatpush.msra.mxu0 0.0
        %1242 = vmatpush.msra.mxu0 0.0
        %1243 = vmatpush.msra.mxu0 0.0
        %1244 = vmatpush.msra.mxu0 0.0
        %1245 = vmatpush.msra.mxu0 0.0
        %1246 = vmatpush.msra.mxu0 0.0
        %1247 = vmatpush.msra.mxu0 0.0
        %1248 = vmatpush.msra.mxu0 %v1228
        %1249 = vmatmul.f32.gmra.mxu0 %v1231
        %v1250 = vpop.f32.mrf.mxu0
        %v1251 = vadd.f32 0.0, %v1250
        %1252 = vdwg.mxu0
        %1253 = vrot.lane.b32.xlu0 %v855, 108
        %v1254 = vpop.permute.xlu0 %1253
        %1255 = vrot.lane.b32.xlu0 %v855, 76
        %v1256 = vpop.permute.xlu0 %1255
        %v1257 = vsel %vm860, %v1254, 0
        %v1259 = vsel %vm860, %v1256, 0
        %1261 = vmatpush.xpose.msra.mxu0 0.0
        %1262 = vmatpush.xpose.msra.mxu0 0.0
        %1263 = vmatpush.xpose.msra.mxu0 0.0
        %1264 = vmatpush.xpose.msra.mxu0 0.0
        %1265 = vmatpush.xpose.msra.mxu0 0.0
        %1266 = vmatpush.xpose.msra.mxu0 0.0
        %1267 = vmatpush.xpose.msra.mxu0 0.0
        %1268 = vmatpush.xpose.msra.mxu0 0.0
        %1269 = vmatpush.xpose.msra.mxu0 0.0
        %1270 = vmatpush.xpose.msra.mxu0 0.0
        %1271 = vmatpush.xpose.msra.mxu0 0.0
        %1272 = vmatpush.xpose.msra.mxu0 0.0
        %1273 = vmatpush.xpose.msra.mxu0 0.0
        %1274 = vmatpush.xpose.msra.mxu0 0.0
        %1275 = vmatpush.xpose.msra.mxu0 0.0
        %1276 = vmatpush.xpose.msra.mxu0 %v1259
        %1277 = vmatmul.f32.gmra.mxu0 %v1257
        %v1278 = vpop.f32.mrf.mxu0
        %v1279 = vadd.f32 0.0, %v1278
        %1280 = vdwg.mxu0
        %v1281 = vmul.f32 %v1279, 0.5
        %v1282 = vsel %vm886, %v1281, -inf
        %1283 = vmax.xlane.f32.xlu0 %v1282
        %v1284 = vpop.xlane.xlu0 %1283
        %v1285 = vsub.f32 %v1281, %v1284
        %v1286 = vmul.f32 %v1285, 1.442695
        %v1287 = vpow.pop %v1286
        %v1288 = vsel %vm886, %v1287, 0.0
        %1289 = vadd.xlane.f32.xlu0 %v1288
        %v1290 = vpop.xlane.xlu0 %1289
        %v1291 = vrcp.pop %v1290
        %v1292 = vmul.f32 %v1290, %v1291
        %v1293 = vsub.f32 1.0, %v1292
        %v1294 = vmul.f32 %v1291, %v1293
        %v1295 = vadd.f32 %v1291, %v1294
        %vm1296 = vweird.f32 %v1290
        %vm1297 = vweird.f32 %v1291
        %vm1298 = vmor %vm1296, %vm1297
        %v1299 = vsel %vm1298, %v1291, %v1295
        %v1300 = vand.u32 2147483647, %v1290
        %vm1301 = vcmp.eq.f32.partialorder %v1300, 8.507059e+37
        %v1302 = vand.u32 %v1290, 2147483648
        %v1303 = vor.u32 1.1754944e-38, %v1302
        %v1304 = vsel %vm1301, %v1303, %v1299
        %v1305 = vmul.f32 %v1287, %v1304
        %1306 = vrot.lane.b32.xlu0 %v855, 44
        %v1307 = vpop.permute.xlu0 %1306
        %v1310 = vsel %vm886, %v1305, 0
        %1312 = vmatpush.msra.mxu0 0.0
        %1313 = vmatpush.msra.mxu0 0.0
        %1314 = vmatpush.msra.mxu0 0.0
        %1315 = vmatpush.msra.mxu0 0.0
        %1316 = vmatpush.msra.mxu0 0.0
        %1317 = vmatpush.msra.mxu0 0.0
        %1318 = vmatpush.msra.mxu0 0.0
        %1319 = vmatpush.msra.mxu0 0.0
        %1320 = vmatpush.msra.mxu0 0.0
        %1321 = vmatpush.msra.mxu0 0.0
        %1322 = vmatpush.msra.mxu0 0.0
        %1323 = vmatpush.msra.mxu0 0.0
        %1324 = vmatpush.msra.mxu0 0.0
        %1325 = vmatpush.msra.mxu0 0.0
        %1326 = vmatpush.msra.mxu0 0.0
        %1327 = vmatpush.msra.mxu0 %v1307
        %1328 = vmatmul.f32.gmra.mxu0 %v1310
        %v1329 = vpop.f32.mrf.mxu0
        %v1330 = vadd.f32 0.0, %v1329
        %1331 = vdwg.mxu0
        %1332 = vrot.lane.b32.xlu0 %v855, 104
        %v1333 = vpop.permute.xlu0 %1332
        %1334 = vrot.lane.b32.xlu0 %v855, 72
        %v1335 = vpop.permute.xlu0 %1334
        %v1336 = vsel %vm860, %v1333, 0
        %v1338 = vsel %vm860, %v1335, 0
        %1340 = vmatpush.xpose.msra.mxu0 0.0
        %1341 = vmatpush.xpose.msra.mxu0 0.0
        %1342 = vmatpush.xpose.msra.mxu0 0.0
        %1343 = vmatpush.xpose.msra.mxu0 0.0
        %1344 = vmatpush.xpose.msra.mxu0 0.0
        %1345 = vmatpush.xpose.msra.mxu0 0.0
        %1346 = vmatpush.xpose.msra.mxu0 0.0
        %1347 = vmatpush.xpose.msra.mxu0 0.0
        %1348 = vmatpush.xpose.msra.mxu0 0.0
        %1349 = vmatpush.xpose.msra.mxu0 0.0
        %1350 = vmatpush.xpose.msra.mxu0 0.0
        %1351 = vmatpush.xpose.msra.mxu0 0.0
        %1352 = vmatpush.xpose.msra.mxu0 0.0
        %1353 = vmatpush.xpose.msra.mxu0 0.0
        %1354 = vmatpush.xpose.msra.mxu0 0.0
        %1355 = vmatpush.xpose.msra.mxu0 %v1338
        %1356 = vmatmul.f32.gmra.mxu0 %v1336
        %v1357 = vpop.f32.mrf.mxu0
        %v1358 = vadd.f32 0.0, %v1357
        %1359 = vdwg.mxu0
        %v1360 = vmul.f32 %v1358, 0.5
        %v1361 = vsel %vm886, %v1360, -inf
        %1362 = vmax.xlane.f32.xlu0 %v1361
        %v1363 = vpop.xlane.xlu0 %1362
        %v1364 = vsub.f32 %v1360, %v1363
        %v1365 = vmul.f32 %v1364, 1.442695
        %v1366 = vpow.pop %v1365
        %v1367 = vsel %vm886, %v1366, 0.0
        %1368 = vadd.xlane.f32.xlu0 %v1367
        %v1369 = vpop.xlane.xlu0 %1368
        %v1370 = vrcp.pop %v1369
        %v1371 = vmul.f32 %v1369, %v1370
        %v1372 = vsub.f32 1.0, %v1371
        %v1373 = vmul.f32 %v1370, %v1372
        %v1374 = vadd.f32 %v1370, %v1373
        %vm1375 = vweird.f32 %v1369
        %vm1376 = vweird.f32 %v1370
        %vm1377 = vmor %vm1375, %vm1376
        %v1378 = vsel %vm1377, %v1370, %v1374
        %v1379 = vand.u32 2147483647, %v1369
        %vm1380 = vcmp.eq.f32.partialorder %v1379, 8.507059e+37
        %v1381 = vand.u32 %v1369, 2147483648
        %v1382 = vor.u32 1.1754944e-38, %v1381
        %v1383 = vsel %vm1380, %v1382, %v1378
        %v1384 = vmul.f32 %v1366, %v1383
        %1385 = vrot.lane.b32.xlu0 %v855, 40
        %v1386 = vpop.permute.xlu0 %1385
        %v1389 = vsel %vm886, %v1384, 0
        %1391 = vmatpush.msra.mxu0 0.0
        %1392 = vmatpush.msra.mxu0 0.0
        %1393 = vmatpush.msra.mxu0 0.0
        %1394 = vmatpush.msra.mxu0 0.0
        %1395 = vmatpush.msra.mxu0 0.0
        %1396 = vmatpush.msra.mxu0 0.0
        %1397 = vmatpush.msra.mxu0 0.0
        %1398 = vmatpush.msra.mxu0 0.0
        %1399 = vmatpush.msra.mxu0 0.0
        %1400 = vmatpush.msra.mxu0 0.0
        %1401 = vmatpush.msra.mxu0 0.0
        %1402 = vmatpush.msra.mxu0 0.0
        %1403 = vmatpush.msra.mxu0 0.0
        %1404 = vmatpush.msra.mxu0 0.0
        %1405 = vmatpush.msra.mxu0 0.0
        %1406 = vmatpush.msra.mxu0 %v1386
        %1407 = vmatmul.f32.gmra.mxu0 %v1389
        %v1408 = vpop.f32.mrf.mxu0
        %v1409 = vadd.f32 0.0, %v1408
        %1410 = vdwg.mxu0
        %1411 = vrot.lane.b32.xlu0 %v855, 100
        %v1412 = vpop.permute.xlu0 %1411
        %1413 = vrot.lane.b32.xlu0 %v855, 68
        %v1414 = vpop.permute.xlu0 %1413
        %v1415 = vsel %vm860, %v1412, 0
        %v1417 = vsel %vm860, %v1414, 0
        %1419 = vmatpush.xpose.msra.mxu0 0.0
        %1420 = vmatpush.xpose.msra.mxu0 0.0
        %1421 = vmatpush.xpose.msra.mxu0 0.0
        %1422 = vmatpush.xpose.msra.mxu0 0.0
        %1423 = vmatpush.xpose.msra.mxu0 0.0
        %1424 = vmatpush.xpose.msra.mxu0 0.0
        %1425 = vmatpush.xpose.msra.mxu0 0.0
        %1426 = vmatpush.xpose.msra.mxu0 0.0
        %1427 = vmatpush.xpose.msra.mxu0 0.0
        %1428 = vmatpush.xpose.msra.mxu0 0.0
        %1429 = vmatpush.xpose.msra.mxu0 0.0
        %1430 = vmatpush.xpose.msra.mxu0 0.0
        %1431 = vmatpush.xpose.msra.mxu0 0.0
        %1432 = vmatpush.xpose.msra.mxu0 0.0
        %1433 = vmatpush.xpose.msra.mxu0 0.0
        %1434 = vmatpush.xpose.msra.mxu0 %v1417
        %1435 = vmatmul.f32.gmra.mxu0 %v1415
        %v1436 = vpop.f32.mrf.mxu0
        %v1437 = vadd.f32 0.0, %v1436
        %1438 = vdwg.mxu0
        %v1439 = vmul.f32 %v1437, 0.5
        %v1440 = vsel %vm886, %v1439, -inf
        %1441 = vmax.xlane.f32.xlu0 %v1440
        %v1442 = vpop.xlane.xlu0 %1441
        %v1443 = vsub.f32 %v1439, %v1442
        %v1444 = vmul.f32 %v1443, 1.442695
        %v1445 = vpow.pop %v1444
        %v1446 = vsel %vm886, %v1445, 0.0
        %1447 = vadd.xlane.f32.xlu0 %v1446
        %v1448 = vpop.xlane.xlu0 %1447
        %v1449 = vrcp.pop %v1448
        %v1450 = vmul.f32 %v1448, %v1449
        %v1451 = vsub.f32 1.0, %v1450
        %v1452 = vmul.f32 %v1449, %v1451
        %v1453 = vadd.f32 %v1449, %v1452
        %vm1454 = vweird.f32 %v1448
        %vm1455 = vweird.f32 %v1449
        %vm1456 = vmor %vm1454, %vm1455
        %v1457 = vsel %vm1456, %v1449, %v1453
        %v1458 = vand.u32 2147483647, %v1448
        %vm1459 = vcmp.eq.f32.partialorder %v1458, 8.507059e+37
        %v1460 = vand.u32 %v1448, 2147483648
        %v1461 = vor.u32 1.1754944e-38, %v1460
        %v1462 = vsel %vm1459, %v1461, %v1457
        %v1463 = vmul.f32 %v1445, %v1462
        %1464 = vrot.lane.b32.xlu0 %v855, 36
        %v1465 = vpop.permute.xlu0 %1464
        %v1468 = vsel %vm886, %v1463, 0
        %1470 = vmatpush.msra.mxu0 0.0
        %1471 = vmatpush.msra.mxu0 0.0
        %1472 = vmatpush.msra.mxu0 0.0
        %1473 = vmatpush.msra.mxu0 0.0
        %1474 = vmatpush.msra.mxu0 0.0
        %1475 = vmatpush.msra.mxu0 0.0
        %1476 = vmatpush.msra.mxu0 0.0
        %1477 = vmatpush.msra.mxu0 0.0
        %1478 = vmatpush.msra.mxu0 0.0
        %1479 = vmatpush.msra.mxu0 0.0
        %1480 = vmatpush.msra.mxu0 0.0
        %1481 = vmatpush.msra.mxu0 0.0
        %1482 = vmatpush.msra.mxu0 0.0
        %1483 = vmatpush.msra.mxu0 0.0
        %1484 = vmatpush.msra.mxu0 0.0
        %1485 = vmatpush.msra.mxu0 %v1465
        %1486 = vmatmul.f32.gmra.mxu0 %v1468
        %v1487 = vpop.f32.mrf.mxu0
        %v1488 = vadd.f32 0.0, %v1487
        %1489 = vdwg.mxu0
        %1491 = vrot.lane.b32.xlu0 %v1014, 4
        %v1492 = vpop.permute.xlu0 %1491
        %1495 = vrot.lane.b32.xlu0 %v1093, 8
        %v1496 = vpop.permute.xlu0 %1495
        %1499 = vrot.lane.b32.xlu0 %v1172, 12
        %v1500 = vpop.permute.xlu0 %1499
        %1503 = vrot.lane.b32.xlu0 %v1251, 16
        %v1504 = vpop.permute.xlu0 %1503
        %1507 = vrot.lane.b32.xlu0 %v1330, 20
        %v1508 = vpop.permute.xlu0 %1507
        %1511 = vrot.lane.b32.xlu0 %v1409, 24
        %v1512 = vpop.permute.xlu0 %1511
        %1515 = vrot.lane.b32.xlu0 %v1488, 28
        %v1516 = vpop.permute.xlu0 %1515
        %v1518 = vsel %vm860, %v935, %v1492
        %v1519 = vsel %vm886, %v1518, %v1496
        %vm1520 = vcmask 97280
        %v1521 = vsel %vm1520, %v1519, %v1500
        %vm1522 = vcmask 130048
        %v1523 = vsel %vm1522, %v1521, %v1504
        %vm1524 = vcmask 162816
        %v1525 = vsel %vm1524, %v1523, %v1508
        %vm1526 = vcmask 195584
        %v1527 = vsel %vm1526, %v1525, %v1512
        %vm1528 = vcmask 228352
        %v1529 = vsel %vm1528, %v1527, %v1516
        %v1530 = vld [vmem:[%s743] sm:$0xff]
        %v1531 = vld [vmem:[%s743 + $0x8] sm:$0xff]
        %v1532 = vld [vmem:[%s743 + $0x10] sm:$0xff]
        %v1533 = vld [vmem:[%s743 + $0x18] sm:$0xff]
        %v1534 = vld [vmem:[%s746] sm:$0x1]
        %v1536 = vperm.slane %v1534, 0
        %v1539 = vsel %vm833, %v1529, 0
        %1541 = vmatpush.msra.mxu0 0.0
        %1542 = vmatpush.msra.mxu0 0.0
        %1543 = vmatpush.msra.mxu0 0.0
        %1544 = vmatpush.msra.mxu0 0.0
        %1545 = vmatpush.msra.mxu0 0.0
        %1546 = vmatpush.msra.mxu0 0.0
        %1547 = vmatpush.msra.mxu0 0.0
        %1548 = vmatpush.msra.mxu0 0.0
        %1549 = vmatpush.msra.mxu0 0.0
        %1550 = vmatpush.msra.mxu0 0.0
        %1551 = vmatpush.msra.mxu0 0.0
        %1552 = vmatpush.msra.mxu0 0.0
        %1553 = vmatpush.msra.mxu0 %v1533
        %1554 = vmatpush.msra.mxu0 %v1532
        %1555 = vmatpush.msra.mxu0 %v1531
        %1556 = vmatpush.msra.mxu0 %v1530
        %1557 = vmatmul.f32.gmra.mxu0 %v1539
        %v1558 = vpop.f32.mrf.mxu0
        %v1559 = vadd.f32 %v1536, %v1558
        %1560 = vdwg.mxu0
        %v1561 = vadd.f32 %v1559, %v824
        %v1562 = vld [vmem:[%s749] sm:$0x1]
        %v1563 = vld [vmem:[%s752] sm:$0x1]
        %v1564 = vsel %vm833, %v1561, 0.0
        %1565 = vadd.xlane.f32.xlu0 %v1564
        %v1566 = vpop.xlane.xlu0 %1565
        %v1567 = vrcp.pop 32.0
        %v1568 = vmul.f32 32.0, %v1567
        %v1569 = vsub.f32 1.0, %v1568
        %v1570 = vmul.f32 %v1567, %v1569
        %v1571 = vadd.f32 %v1567, %v1570
        %vm1572 = vweird.f32 %v1567
        %v1573 = vsel %vm1572, %v1567, %v1571
        %v1574 = vmul.f32 %v1566, %v1573
        %v1575 = vsub.f32 %v1561, %v1574
        %v1576 = vmul.f32 %v1575, %v1575
        %v1577 = vsel %vm833, %v1576, 0.0
        %1578 = vadd.xlane.f32.xlu0 %v1577
        %v1579 = vpop.xlane.xlu0 %1578
        %v1580 = vmul.f32 %v1579, %v1573
        %v1581 = vadd.f32 %v1580, 1e-05
        %v1582 = vrsqrt.pop %v1581
        %v1583 = vmul.f32 %v1582, %v1581
        %v1584 = vmul.f32 %v1583, %v1582
        %v1585 = vmul.f32 0.5, %v1584
        %v1586 = vsub.f32 1.5, %v1585
        %v1587 = vmul.f32 %v1582, %v1586
        %vm1588 = vweird.f32 %v1581
        %vm1589 = vweird.f32 %v1582
        %vm1590 = vmor %vm1588, %vm1589
        %v1591 = vsel %vm1590, %v1582, %v1587
        %v1592 = vmul.f32 %v1575, %v1591
        %v1594 = vperm.slane %v1562, 0
        %v1596 = vmul.f32 %v1592, %v1594
        %v1598 = vperm.slane %v1563, 0
        %v1600 = vadd.f32 %v1596, %v1598
        %v1601 = vld [vmem:[%s757] sm:$0xff]
        %v1602 = vld [vmem:[%s757 + $0x8] sm:$0xff]
        %v1603 = vld [vmem:[%s757 + $0x10] sm:$0xff]
        %v1604 = vld [vmem:[%s757 + $0x18] sm:$0xff]
        %v1605 = vld [vmem:[%s760] sm:$0x1]
        %v1607 = vperm.slane %v1605, 0
        %v1610 = vsel %vm833, %v1600, 0
        %1612 = vmatpush.msra.mxu0 0.0
        %1613 = vmatpush.msra.mxu0 0.0
        %1614 = vmatpush.msra.mxu0 0.0
        %1615 = vmatpush.msra.mxu0 0.0
        %1616 = vmatpush.msra.mxu0 0.0
        %1617 = vmatpush.msra.mxu0 0.0
        %1618 = vmatpush.msra.mxu0 0.0
        %1619 = vmatpush.msra.mxu0 0.0
        %1620 = vmatpush.msra.mxu0 0.0
        %1621 = vmatpush.msra.mxu0 0.0
        %1622 = vmatpush.msra.mxu0 0.0
        %1623 = vmatpush.msra.mxu0 0.0
        %1624 = vmatpush.msra.mxu0 %v1604
        %1625 = vmatpush.msra.mxu0 %v1603
        %1626 = vmatpush.msra.mxu0 %v1602
        %1627 = vmatpush.msra.mxu0 %v1601
        %1628 = vmatmul.f32.gmra.mxu0 %v1610
        %v1629 = vpop.f32.mrf.mxu0
        %v1630 = vadd.f32 %v1607, %v1629
        %1631 = vdwg.mxu0
        %v1632 = vmax.f32 %v1630, 0.0
        %v1633 = vld [vmem:[%s765] sm:$0xff]
        %v1634 = vld [vmem:[%s765 + $0x8] sm:$0xff]
        %v1635 = vld [vmem:[%s765 + $0x10] sm:$0xff]
        %v1636 = vld [vmem:[%s765 + $0x18] sm:$0xff]
        %v1637 = vld [vmem:[%s765 + $0x20] sm:$0xff]
        %v1638 = vld [vmem:[%s765 + $0x28] sm:$0xff]
        %v1639 = vld [vmem:[%s765 + $0x30] sm:$0xff]
        %v1640 = vld [vmem:[%s765 + $0x38] sm:$0xff]
        %v1641 = vld [vmem:[%s768] sm:$0x1]
        %v1643 = vperm.slane %v1641, 0
        %vm1645 = vcmask 523264
        %v1647 = vsel %vm1645, %v1632, 0
        %1649 = vmatpush.msra.mxu0 0.0
        %1650 = vmatpush.msra.mxu0 0.0
        %1651 = vmatpush.msra.mxu0 0.0
        %1652 = vmatpush.msra.mxu0 0.0
        %1653 = vmatpush.msra.mxu0 0.0
        %1654 = vmatpush.msra.mxu0 0.0
        %1655 = vmatpush.msra.mxu0 0.0
        %1656 = vmatpush.msra.mxu0 0.0
        %1657 = vmatpush.msra.mxu0 %v1640
        %1658 = vmatpush.msra.mxu0 %v1639
        %1659 = vmatpush.msra.mxu0 %v1638
        %1660 = vmatpush.msra.mxu0 %v1637
        %1661 = vmatpush.msra.mxu0 %v1636
        %1662 = vmatpush.msra.mxu0 %v1635
        %1663 = vmatpush.msra.mxu0 %v1634
        %1664 = vmatpush.msra.mxu0 %v1633
        %1665 = vmatmul.f32.gmra.mxu0 %v1647
        %v1666 = vpop.f32.mrf.mxu0
        %v1667 = vadd.f32 %v1643, %v1666
        %1668 = vdwg.mxu0
        %v1669 = vadd.f32 %v1667, %v1600
        %v1670 = vld [vmem:[%s771] sm:$0x1]
        %v1671 = vld [vmem:[%s774] sm:$0x1]
        %v1672 = vsel %vm833, %v1669, 0.0
        %1673 = vadd.xlane.f32.xlu0 %v1672
        %v1674 = vpop.xlane.xlu0 %1673
        %v1675 = vmul.f32 %v1674, %v1573
        %v1676 = vsub.f32 %v1669, %v1675
        %v1677 = vmul.f32 %v1676, %v1676
        %v1678 = vsel %vm833, %v1677, 0.0
        %1679 = vadd.xlane.f32.xlu0 %v1678
        %v1680 = vpop.xlane.xlu0 %1679
        %v1681 = vmul.f32 %v1680, %v1573
        %v1682 = vadd.f32 %v1681, 1e-05
        %v1683 = vrsqrt.pop %v1682
        %v1684 = vmul.f32 %v1683, %v1682
        %v1685 = vmul.f32 %v1684, %v1683
        %v1686 = vmul.f32 0.5, %v1685
        %v1687 = vsub.f32 1.5, %v1686
        %v1688 = vmul.f32 %v1683, %v1687
        %vm1689 = vweird.f32 %v1682
        %vm1690 = vweird.f32 %v1683
        %vm1691 = vmor %vm1689, %vm1690
        %v1692 = vsel %vm1691, %v1683, %v1688
        %v1693 = vmul.f32 %v1676, %v1692
        %v1695 = vperm.slane %v1670, 0
        %v1697 = vmul.f32 %v1693, %v1695
        %v1699 = vperm.slane %v1671, 0
        %v1701 = vadd.f32 %v1697, %v1699
        %1702 = vst.msk [vmem:[#allocation2] sm:$0xff] %vm833, %v1701
        %p1703 = scmp.eq.s32.totalorder %s37, 1
        // Predicated region
        $region97: #{video_transformer_forward.5} parent=91 // pred_check
          %p1704 = pneg %p1703
        $region98: #{video_transformer_forward.5} parent=91 // pred_check_branch
          %1706 = sbr.rel (%p1704) target = $region100
        $region99: #{video_transformer_forward.5} parent=91 // pred_region
          %v1707 = vld [vmem:[%s16] sm:$0xff]
          %v1708 = vld [vmem:[%s16 + $0x8] sm:$0xff]
          %v1709 = vld [vmem:[%s16 + $0x10] sm:$0xff]
          %v1710 = vld [vmem:[%s16 + $0x18] sm:$0xff]
          %v1711 = vld [vmem:[%s17] sm:$0x1]
          %v1713 = vperm.slane %v1711, 0
          %v1716 = vsel %vm833, %v1701, 0
          %1718 = vmatpush.msra.mxu0 0.0
          %1719 = vmatpush.msra.mxu0 0.0
          %1720 = vmatpush.msra.mxu0 0.0
          %1721 = vmatpush.msra.mxu0 0.0
          %1722 = vmatpush.msra.mxu0 0.0
          %1723 = vmatpush.msra.mxu0 0.0
          %1724 = vmatpush.msra.mxu0 0.0
          %1725 = vmatpush.msra.mxu0 0.0
          %1726 = vmatpush.msra.mxu0 0.0
          %1727 = vmatpush.msra.mxu0 0.0
          %1728 = vmatpush.msra.mxu0 0.0
          %1729 = vmatpush.msra.mxu0 0.0
          %1730 = vmatpush.msra.mxu0 %v1710
          %1731 = vmatpush.msra.mxu0 %v1709
          %1732 = vmatpush.msra.mxu0 %v1708
          %1733 = vmatpush.msra.mxu0 %v1707
          %1734 = vmatmul.f32.gmra.mxu0 %v1716
          %v1735 = vpop.f32.mrf.mxu0
          %v1736 = vadd.f32 %v1713, %v1735
          %1737 = vdwg.mxu0
          %1738 = vst [vmem:[%s726] sm:$0xff] %v1736
        $region100: #{video_transformer_forward.5} parent=91 // pred_fallthru
          _
        %s1739 = sand.u32 %s495, 1
        %s1740 = scalar_lea.sflag [#allocation4], %s1739
        %s1741 = sand.u32 %s495, 1
        %s1742 = smul.addr %s1741, 8
        %s1743 = scalar_lea.vmem [#allocation3], %s1742
        // Predicated region
        $region101: #{video_transformer_forward.5} parent=91 // pred_check
          %p1744 = pneg %p505
        $region102: #{video_transformer_forward.5} parent=91 // pred_check_branch
          %1746 = sbr.rel (%p1744) target = $region104
        $region103: #{video_transformer_forward.5} parent=91 // pred_region
          %1748 = vsyncadd %s1740, 0
          %s1749 = smul.addr %s36, 8
          %s1750 = scalar_lea.hbm %s18, %s1749
          %s1752 = sshll.u32 %s1743, 4
          %s1753 = int_to_ptr.vmem [resolvable:$true] %s1752
          %s1754 = sshll.u32 %s1750, 4
          %s1755 = int_to_ptr.hbm [resolvable:$true] %s1754
          %1757 = dma.vmem_to_hbm [thread:$0]  %s1753, 128, %s1755, %s1740
        $region104: #{video_transformer_forward.5} parent=91 // pred_fallthru
          _
      $region92: #{video_transformer_forward.5} parent=5 // pred_fallthru
        _
      %p1758 = scmp.le.s32.totalorder 2, %s27
      // Predicated region
      $region105: #{video_transformer_forward.5} parent=5 // pred_check
        %p1759 = pneg %p1758
      $region106: #{video_transformer_forward.5} parent=5 // pred_check_branch
        %1761 = sbr.rel (%p1759) target = $region108
      $region107: #{video_transformer_forward.5} parent=5 // pred_region
        %s1762 = ssub.s32 %s27, 2
        // Predicated region
        $region109: #{video_transformer_forward.5} parent=107 // pred_check
          %p1763 = pneg %p511
        $region110: #{video_transformer_forward.5} parent=107 // pred_check_branch
          %1765 = sbr.rel (%p1763) target = $region112
        $region111: #{video_transformer_forward.5} parent=107 // pred_region
          %s1766 = sand.u32 %s496, 1
          %s1767 = scalar_lea.sflag [#allocation4], %s1766
          %s1768 = sand.u32 %s496, 1
          %s1769 = smul.addr %s1768, 8
          %s1770 = scalar_lea.vmem [#allocation3], %s1769
          %1772 = dma.done %s1767, 128
        $region112: #{video_transformer_forward.5} parent=107 // pred_fallthru
          _
      $region108: #{video_transformer_forward.5} parent=5 // pred_fallthru
        _
    $region6: #{video_transformer_forward.5} parent=1 // loop_footer
      %s31 = sadd.s32 1, %s27
    $region7: #{video_transformer_forward.5} parent=1 // loop_footer_branch
      %26 = sbr.rel target = $region3
    $region8: #{video_transformer_forward.5} parent=1 // loop_exit
      _
    %1773 = vsyncpa [#allocation4], 1
    %s1774 = scalar_lea.sflag [#allocation4], 1
    %1775 = vsyncpa %s1774, 1

</llo_original>
